<compile_context>
chip_gen: v7x
topology: tpu7x:2x2x1
jax: 0.10.0
libtpu: 0.0.40
codegen_flags: <defaults>
</compile_context>

<pallas_src>
import jax
import jax.numpy as jnp
from jax import lax
from jax.experimental import pallas as pl
from jax.experimental.pallas import tpu as pltpu

B = 8          # example batch
L_IN = 24      # input signal length (forced by the .view(-1, 320) in forward)

C1, C2 = 8, 16                 # conv channel counts
L0, L1, L1P, L2, L2P = 24, 23, 22, 21, 20   # lengths after each conv / pool stage
FLAT = C2 * L2P                # 320  (torch .view(-1, 32*10))
N_OUT = 350                    # fc2 / fc3 width
F_PAD = 384                    # 350 padded up to a lane-dense multiple of 128


def _net_kernel(x_ref, w1_ref, b1_ref, w2k0_ref, w2k1_ref, b2_ref,
                wf2t_ref, bf2_ref, wf3t_ref, bf3_ref,
                o_ref, flat_ref):
    # x_ref:    (BT, 24)          one batch tile, length on lanes
    # w1_ref:   (8, 2)            conv1 weight        b1_ref: (8, 1)
    # w2k*_ref: (8, 16, 1)        conv2 tap k per input channel c: [c] -> (16, 1)
    # b2_ref:   (16, 1)
    # wf2t/wf3t:(384, 384)        pre-transposed, zero-padded FC weights
    # bf2/bf3:  (1, 384)          zero-padded biases
    # o_ref:    (BT, 384)         lane-dense padded output (cols 350.. are 0)
    # flat_ref: (BT, 384) VMEM    scratch holding the flattened features

    # ---- conv1 (1 -> 8, k=2, s=1) + ReLU: channel-leading (8, BT, 23) ----
    x = x_ref[...]                                    # (BT, 24)
    w1 = w1_ref[...]                                  # (8, 2)
    y1 = (x[None, :, 0:L1] * w1[:, None, 0:1]
          + x[None, :, 1:L0] * w1[:, None, 1:2]
          + b1_ref[...][:, None, :])
    y1 = jnp.maximum(y1, 0.0)

    # ---- max_pool1 (k=2, s=1): (8, BT, 22) ----
    p1 = jnp.maximum(y1[:, :, 0:L1P], y1[:, :, 1:L1])

    # ---- conv2 (8 -> 16, k=2, s=1) + ReLU: (16, BT, 21) ----
    # Unrolled MAC over the 8 input channels (pure VPU; no 4-D broadcast and
    # no cross-sublane reduce).
    y2 = b2_ref[...][:, None, :]                      # (16, 1, 1), broadcasts up
    for c in range(C1):
        y2 = (y2
              + w2k0_ref[c][:, None, :] * p1[c][None, :, 0:L2]
              + w2k1_ref[c][:, None, :] * p1[c][None, :, 1:L1P])
    y2 = jnp.maximum(y2, 0.0)

    # ---- max_pool2 (k=2, s=1): (16, BT, 20) ----
    p2 = jnp.maximum(y2[:, :, 0:L2P], y2[:, :, 1:L2])

    # ---- flatten (== torch .view(-1, 320), channel-major) into a lane-dense
    #      zero-padded (BT, 384) VMEM buffer ----
    flat_ref[...] = jnp.zeros_like(flat_ref)
    for c in range(C2):
        flat_ref[:, c * L2P:(c + 1) * L2P] = p2[c]

    # ---- fc2 + ReLU + fc3 on the MXU (N padded 350 -> 384 lanes) ----
    h = jnp.dot(flat_ref[...], wf2t_ref[...],
                preferred_element_type=jnp.float32) + bf2_ref[...]
    h = jnp.maximum(h, 0.0)
    o_ref[...] = (jnp.dot(h, wf3t_ref[...],
                          preferred_element_type=jnp.float32)
                  + bf3_ref[...])


def prepare_params(params):
    """One-time repack of the PyTorch-layout parameters into kernel-friendly
    layouts (FC weights pre-transposed + zero-padded to 384 lanes, conv2
    weights laid out per input channel).  Call once, NOT per forward pass."""
    w1, b1, w2, b2, wf2, bf2, wf3, bf3 = params
    f32 = jnp.float32
    w1p = w1[:, 0, :].astype(f32)                            # (8, 2)
    b1p = b1.reshape(C1, 1).astype(f32)                      # (8, 1)
    w2k0 = w2[:, :, 0].T.reshape(C1, C2, 1).astype(f32)      # (8, 16, 1)
    w2k1 = w2[:, :, 1].T.reshape(C1, C2, 1).astype(f32)      # (8, 16, 1)
    b2p = b2.reshape(C2, 1).astype(f32)                      # (16, 1)
    wf2t = jnp.zeros((F_PAD, F_PAD), f32).at[:FLAT, :N_OUT].set(wf2.T.astype(f32))
    bf2p = jnp.zeros((1, F_PAD), f32).at[:, :N_OUT].set(bf2.astype(f32))
    wf3t = jnp.zeros((F_PAD, F_PAD), f32).at[:N_OUT, :N_OUT].set(wf3.T.astype(f32))
    bf3p = jnp.zeros((1, F_PAD), f32).at[:, :N_OUT].set(bf3.astype(f32))
    return (w1p, b1p, w2k0, w2k1, b2p, wf2t, bf2p, wf3t, bf3p)


def net_short_circuit(x, prepared):
    """x: (n, 1, 24) float32 (NCW, like PyTorch). Returns (n, 350) float32."""
    (w1p, b1p, w2k0, w2k1, b2p, wf2t, bf2p, wf3t, bf3p) = prepared
    n = x.shape[0]
    x2d = x[:, 0, :]                                  # squeeze in_channels == 1

    # Batch tiling: up to 128 rows per grid step (parallel axis -> megacore /
    # both v7x TensorCores when the batch is large). Pad batch if needed.
    n8 = -(-n // 8) * 8
    bt = min(n8, 128)
    n_pad = -(-n8 // bt) * bt
    if n_pad != n:
        x2d = jnp.pad(x2d, ((0, n_pad - n), (0, 0)))
    grid = (n_pad // bt,)

    def _w(shape):                                    # resident weight block
        zero = (0,) * len(shape)
        return pl.BlockSpec(shape, lambda i, zero=zero: zero)

    flops = int(n_pad * (4 * F_PAD * F_PAD            # fc2 + fc3
                         + 4 * C1 * L1                # conv1
                         + 4 * C1 * C2 * L2))         # conv2
    bytes_accessed = int(4 * (2 * F_PAD * F_PAD + 2 * F_PAD
                              + n_pad * (L0 + F_PAD)
                              + 2 * C1 + C1 + 2 * C1 * C2 + C2))

    out_pad = pl.pallas_call(
        _net_kernel,
        out_shape=jax.ShapeDtypeStruct((n_pad, F_PAD), jnp.float32),
        grid_spec=pltpu.PrefetchScalarGridSpec(
            num_scalar_prefetch=0,
            grid=grid,
            in_specs=[
                pl.BlockSpec((bt, L0), lambda i: (i, 0)),        # x tile
                _w((C1, 2)), _w((C1, 1)),                        # conv1 w, b
                _w((C1, C2, 1)), _w((C1, C2, 1)), _w((C2, 1)),   # conv2 taps, b
                _w((F_PAD, F_PAD)), _w((1, F_PAD)),              # fc2 (pre-T, padded)
                _w((F_PAD, F_PAD)), _w((1, F_PAD)),              # fc3 (pre-T, padded)
            ],
            out_specs=pl.BlockSpec((bt, F_PAD), lambda i: (i, 0)),
            scratch_shapes=[pltpu.VMEM((bt, F_PAD), jnp.float32)],
        ),
        compiler_params=pltpu.CompilerParams(
            dimension_semantics=("parallel",)),
        cost_estimate=pl.CostEstimate(
            flops=flops, transcendentals=0, bytes_accessed=bytes_accessed),
    )(x2d, w1p, b1p, w2k0, w2k1, b2p, wf2t, bf2p, wf3t, bf3p)

    return out_pad[:n, :N_OUT]


def reference(x, params):
    """Pure-JAX reference with lax convolutions (different code path)."""
    w1, b1, w2, b2, wf2, bf2, wf3, bf3 = params
    dn = ('NCH', 'OIH', 'NCH')
    y1 = lax.conv_general_dilated(x, w1, (1,), 'VALID', dimension_numbers=dn) + b1[None, :, None]
    y1 = jnp.maximum(y1, 0.0)
    p1 = jnp.maximum(y1[:, :, :-1], y1[:, :, 1:])
    y2 = lax.conv_general_dilated(p1, w2, (1,), 'VALID', dimension_numbers=dn) + b2[None, :, None]
    y2 = jnp.maximum(y2, 0.0)
    p2 = jnp.maximum(y2[:, :, :-1], y2[:, :, 1:])
    flat = p2.reshape(x.shape[0], FLAT)
    h = jnp.maximum(flat @ wf2.T + bf2, 0.0)
    return h @ wf3.T + bf3


def make_params(key):
    ks = jax.random.split(key, 8)
    w1 = 0.2 * jax.random.normal(ks[0], (8, 1, 2), jnp.float32)
    b1 = 0.1 * jax.random.normal(ks[1], (8,), jnp.float32)
    w2 = 0.1 * jax.random.normal(ks[2], (16, 8, 2), jnp.float32)
    b2 = 0.1 * jax.random.normal(ks[3], (16,), jnp.float32)
    wf2 = 0.05 * jax.random.normal(ks[4], (350, 320), jnp.float32)
    bf2 = 0.05 * jax.random.normal(ks[5], (350,), jnp.float32)
    wf3 = 0.05 * jax.random.normal(ks[6], (350, 350), jnp.float32)
    bf3 = 0.05 * jax.random.normal(ks[7], (350,), jnp.float32)
    return (w1, b1, w2, b2, wf2, bf2, wf3, bf3)


if __name__ == "__main__":
    key = jax.random.PRNGKey(0)
    kx, kp = jax.random.split(key)
    x = jax.random.normal(kx, (B, 1, L_IN), jnp.float32)
    params = make_params(kp)

    prepared = prepare_params(params)          # one-time weight prep (hoisted out of forward)
    fwd = jax.jit(net_short_circuit)

    out = jax.block_until_ready(fwd(x, prepared))
    ref = jax.block_until_ready(reference(x, params))

    assert out.shape == (B, N_OUT), out.shape
    assert jnp.allclose(out, ref, rtol=2e-3, atol=2e-3), float(jnp.max(jnp.abs(out - ref)))
    print("KERNEL_OK")
</pallas_src>

<mosaic_0001>
module attributes {stable_mosaic.version = 11 : i64} {
  func.func @_net_kernel(%arg0: i32, %arg1: memref<8x24xf32, #tpu.memory_space<vmem>>, %arg2: memref<8x2xf32, #tpu.memory_space<vmem>>, %arg3: memref<8x1xf32, #tpu.memory_space<vmem>>, %arg4: memref<8x16x1xf32, #tpu.memory_space<vmem>>, %arg5: memref<8x16x1xf32, #tpu.memory_space<vmem>>, %arg6: memref<16x1xf32, #tpu.memory_space<vmem>>, %arg7: memref<384x384xf32, #tpu.memory_space<vmem>>, %arg8: memref<1x384xf32, #tpu.memory_space<vmem>>, %arg9: memref<384x384xf32, #tpu.memory_space<vmem>>, %arg10: memref<1x384xf32, #tpu.memory_space<vmem>>, %arg11: memref<8x384xf32, #tpu.memory_space<vmem>>, %arg12: memref<8x384xf32, #tpu.memory_space<vmem>>) attributes {dimension_semantics = [#tpu.dimension_semantics<parallel>], iteration_bounds = array<i64: 1>, scalar_prefetch = 0 : i64, scratch_operands = 1 : i64, tpu.core_type = #tpu.core_type<tc>, window_params = [{transform_indices = @transform_0, window_bounds = array<i64: 8, 24>}, {pipeline_mode = #tpu.pipeline_mode<synchronous>, transform_indices = @transform_1, window_bounds = array<i64: 8, 2>}, {pipeline_mode = #tpu.pipeline_mode<synchronous>, transform_indices = @transform_2, window_bounds = array<i64: 8, 1>}, {pipeline_mode = #tpu.pipeline_mode<synchronous>, transform_indices = @transform_3, window_bounds = array<i64: 8, 16, 1>}, {pipeline_mode = #tpu.pipeline_mode<synchronous>, transform_indices = @transform_4, window_bounds = array<i64: 8, 16, 1>}, {pipeline_mode = #tpu.pipeline_mode<synchronous>, transform_indices = @transform_5, window_bounds = array<i64: 16, 1>}, {pipeline_mode = #tpu.pipeline_mode<synchronous>, transform_indices = @transform_6, window_bounds = array<i64: 384, 384>}, {pipeline_mode = #tpu.pipeline_mode<synchronous>, transform_indices = @transform_7, window_bounds = array<i64: 1, 384>}, {pipeline_mode = #tpu.pipeline_mode<synchronous>, transform_indices = @transform_8, window_bounds = array<i64: 384, 384>}, {pipeline_mode = #tpu.pipeline_mode<synchronous>, transform_indices = @transform_9, window_bounds = array<i64: 1, 384>}, {transform_indices = @transform_10, window_bounds = array<i64: 8, 384>}]} {
    %c0 = arith.constant 0 : index
    %c0_0 = arith.constant 0 : index
    %0 = vector.load %arg1[%c0, %c0_0] : memref<8x24xf32, #tpu.memory_space<vmem>>, vector<8x24xf32>
    %c0_1 = arith.constant 0 : index
    %c0_2 = arith.constant 0 : index
    %1 = vector.load %arg2[%c0_1, %c0_2] : memref<8x2xf32, #tpu.memory_space<vmem>>, vector<8x2xf32>
    %2 = vector.extract_strided_slice %0 {offsets = [0, 0], sizes = [8, 23], strides = [1, 1]} : vector<8x24xf32> to vector<8x23xf32>
    %3 = vector.shape_cast %2 : vector<8x23xf32> to vector<1x8x23xf32>
    %4 = vector.extract_strided_slice %1 {offsets = [0, 0], sizes = [8, 1], strides = [1, 1]} : vector<8x2xf32> to vector<8x1xf32>
    %5 = vector.shape_cast %4 : vector<8x1xf32> to vector<8x1x1xf32>
    %6 = vector.broadcast %3 : vector<1x8x23xf32> to vector<8x8x23xf32>
    %7 = vector.broadcast %5 : vector<8x1x1xf32> to vector<8x8x23xf32>
    %8 = arith.mulf %6, %7 : vector<8x8x23xf32>
    %9 = vector.extract_strided_slice %0 {offsets = [0, 1], sizes = [8, 23], strides = [1, 1]} : vector<8x24xf32> to vector<8x23xf32>
    %10 = vector.shape_cast %9 : vector<8x23xf32> to vector<1x8x23xf32>
    %11 = vector.extract_strided_slice %1 {offsets = [0, 1], sizes = [8, 1], strides = [1, 1]} : vector<8x2xf32> to vector<8x1xf32>
    %12 = vector.shape_cast %11 : vector<8x1xf32> to vector<8x1x1xf32>
    %13 = vector.broadcast %10 : vector<1x8x23xf32> to vector<8x8x23xf32>
    %14 = vector.broadcast %12 : vector<8x1x1xf32> to vector<8x8x23xf32>
    %15 = arith.mulf %13, %14 : vector<8x8x23xf32>
    %16 = arith.addf %8, %15 : vector<8x8x23xf32>
    %c0_3 = arith.constant 0 : index
    %c0_4 = arith.constant 0 : index
    %17 = vector.load %arg3[%c0_3, %c0_4] : memref<8x1xf32, #tpu.memory_space<vmem>>, vector<8x1xf32>
    %18 = vector.shape_cast %17 : vector<8x1xf32> to vector<8x1x1xf32>
    %19 = vector.broadcast %18 : vector<8x1x1xf32> to vector<8x8x23xf32>
    %20 = arith.addf %16, %19 : vector<8x8x23xf32>
    %cst = arith.constant 0.000000e+00 : f32
    %21 = vector.broadcast %cst : f32 to vector<8x8x23xf32>
    %22 = arith.maximumf %20, %21 : vector<8x8x23xf32>
    %23 = vector.extract_strided_slice %22 {offsets = [0, 0, 0], sizes = [8, 8, 22], strides = [1, 1, 1]} : vector<8x8x23xf32> to vector<8x8x22xf32>
    %24 = vector.extract_strided_slice %22 {offsets = [0, 0, 1], sizes = [8, 8, 22], strides = [1, 1, 1]} : vector<8x8x23xf32> to vector<8x8x22xf32>
    %25 = arith.maximumf %23, %24 : vector<8x8x22xf32>
    %c0_5 = arith.constant 0 : index
    %c0_6 = arith.constant 0 : index
    %26 = vector.load %arg6[%c0_5, %c0_6] : memref<16x1xf32, #tpu.memory_space<vmem>>, vector<16x1xf32>
    %27 = vector.shape_cast %26 : vector<16x1xf32> to vector<16x1x1xf32>
    %c0_7 = arith.constant 0 : index
    %c0_8 = arith.constant 0 : index
    %c0_9 = arith.constant 0 : index
    %28 = vector.load %arg4[%c0_7, %c0_8, %c0_9] : memref<8x16x1xf32, #tpu.memory_space<vmem>>, vector<1x16x1xf32>
    %29 = vector.shape_cast %28 : vector<1x16x1xf32> to vector<16x1xf32>
    %30 = vector.shape_cast %29 : vector<16x1xf32> to vector<16x1x1xf32>
    %31 = vector.extract_strided_slice %25 {offsets = [0, 0, 0], sizes = [1, 8, 22], strides = [1, 1, 1]} : vector<8x8x22xf32> to vector<1x8x22xf32>
    %32 = vector.shape_cast %31 : vector<1x8x22xf32> to vector<8x22xf32>
    %33 = vector.extract_strided_slice %32 {offsets = [0, 0], sizes = [8, 21], strides = [1, 1]} : vector<8x22xf32> to vector<8x21xf32>
    %34 = vector.shape_cast %33 : vector<8x21xf32> to vector<1x8x21xf32>
    %35 = vector.broadcast %30 : vector<16x1x1xf32> to vector<16x8x21xf32>
    %36 = vector.broadcast %34 : vector<1x8x21xf32> to vector<16x8x21xf32>
    %37 = arith.mulf %35, %36 : vector<16x8x21xf32>
    %38 = vector.broadcast %27 : vector<16x1x1xf32> to vector<16x8x21xf32>
    %39 = arith.addf %38, %37 : vector<16x8x21xf32>
    %c0_10 = arith.constant 0 : index
    %c0_11 = arith.constant 0 : index
    %c0_12 = arith.constant 0 : index
    %40 = vector.load %arg5[%c0_10, %c0_11, %c0_12] : memref<8x16x1xf32, #tpu.memory_space<vmem>>, vector<1x16x1xf32>
    %41 = vector.shape_cast %40 : vector<1x16x1xf32> to vector<16x1xf32>
    %42 = vector.shape_cast %41 : vector<16x1xf32> to vector<16x1x1xf32>
    %43 = vector.extract_strided_slice %25 {offsets = [0, 0, 0], sizes = [1, 8, 22], strides = [1, 1, 1]} : vector<8x8x22xf32> to vector<1x8x22xf32>
    %44 = vector.shape_cast %43 : vector<1x8x22xf32> to vector<8x22xf32>
    %45 = vector.extract_strided_slice %44 {offsets = [0, 1], sizes = [8, 21], strides = [1, 1]} : vector<8x22xf32> to vector<8x21xf32>
    %46 = vector.shape_cast %45 : vector<8x21xf32> to vector<1x8x21xf32>
    %47 = vector.broadcast %42 : vector<16x1x1xf32> to vector<16x8x21xf32>
    %48 = vector.broadcast %46 : vector<1x8x21xf32> to vector<16x8x21xf32>
    %49 = arith.mulf %47, %48 : vector<16x8x21xf32>
    %50 = arith.addf %39, %49 : vector<16x8x21xf32>
    %c1 = arith.constant 1 : index
    %c0_13 = arith.constant 0 : index
    %c0_14 = arith.constant 0 : index
    %51 = vector.load %arg4[%c1, %c0_13, %c0_14] : memref<8x16x1xf32, #tpu.memory_space<vmem>>, vector<1x16x1xf32>
    %52 = vector.shape_cast %51 : vector<1x16x1xf32> to vector<16x1xf32>
    %53 = vector.shape_cast %52 : vector<16x1xf32> to vector<16x1x1xf32>
    %54 = vector.extract_strided_slice %25 {offsets = [1, 0, 0], sizes = [1, 8, 22], strides = [1, 1, 1]} : vector<8x8x22xf32> to vector<1x8x22xf32>
    %55 = vector.shape_cast %54 : vector<1x8x22xf32> to vector<8x22xf32>
    %56 = vector.extract_strided_slice %55 {offsets = [0, 0], sizes = [8, 21], strides = [1, 1]} : vector<8x22xf32> to vector<8x21xf32>
    %57 = vector.shape_cast %56 : vector<8x21xf32> to vector<1x8x21xf32>
    %58 = vector.broadcast %53 : vector<16x1x1xf32> to vector<16x8x21xf32>
    %59 = vector.broadcast %57 : vector<1x8x21xf32> to vector<16x8x21xf32>
    %60 = arith.mulf %58, %59 : vector<16x8x21xf32>
    %61 = arith.addf %50, %60 : vector<16x8x21xf32>
    %c1_15 = arith.constant 1 : index
    %c0_16 = arith.constant 0 : index
    %c0_17 = arith.constant 0 : index
    %62 = vector.load %arg5[%c1_15, %c0_16, %c0_17] : memref<8x16x1xf32, #tpu.memory_space<vmem>>, vector<1x16x1xf32>
    %63 = vector.shape_cast %62 : vector<1x16x1xf32> to vector<16x1xf32>
    %64 = vector.shape_cast %63 : vector<16x1xf32> to vector<16x1x1xf32>
    %65 = vector.extract_strided_slice %25 {offsets = [1, 0, 0], sizes = [1, 8, 22], strides = [1, 1, 1]} : vector<8x8x22xf32> to vector<1x8x22xf32>
    %66 = vector.shape_cast %65 : vector<1x8x22xf32> to vector<8x22xf32>
    %67 = vector.extract_strided_slice %66 {offsets = [0, 1], sizes = [8, 21], strides = [1, 1]} : vector<8x22xf32> to vector<8x21xf32>
    %68 = vector.shape_cast %67 : vector<8x21xf32> to vector<1x8x21xf32>
    %69 = vector.broadcast %64 : vector<16x1x1xf32> to vector<16x8x21xf32>
    %70 = vector.broadcast %68 : vector<1x8x21xf32> to vector<16x8x21xf32>
    %71 = arith.mulf %69, %70 : vector<16x8x21xf32>
    %72 = arith.addf %61, %71 : vector<16x8x21xf32>
    %c2 = arith.constant 2 : index
    %c0_18 = arith.constant 0 : index
    %c0_19 = arith.constant 0 : index
    %73 = vector.load %arg4[%c2, %c0_18, %c0_19] : memref<8x16x1xf32, #tpu.memory_space<vmem>>, vector<1x16x1xf32>
    %74 = vector.shape_cast %73 : vector<1x16x1xf32> to vector<16x1xf32>
    %75 = vector.shape_cast %74 : vector<16x1xf32> to vector<16x1x1xf32>
    %76 = vector.extract_strided_slice %25 {offsets = [2, 0, 0], sizes = [1, 8, 22], strides = [1, 1, 1]} : vector<8x8x22xf32> to vector<1x8x22xf32>
    %77 = vector.shape_cast %76 : vector<1x8x22xf32> to vector<8x22xf32>
    %78 = vector.extract_strided_slice %77 {offsets = [0, 0], sizes = [8, 21], strides = [1, 1]} : vector<8x22xf32> to vector<8x21xf32>
    %79 = vector.shape_cast %78 : vector<8x21xf32> to vector<1x8x21xf32>
    %80 = vector.broadcast %75 : vector<16x1x1xf32> to vector<16x8x21xf32>
    %81 = vector.broadcast %79 : vector<1x8x21xf32> to vector<16x8x21xf32>
    %82 = arith.mulf %80, %81 : vector<16x8x21xf32>
    %83 = arith.addf %72, %82 : vector<16x8x21xf32>
    %c2_20 = arith.constant 2 : index
    %c0_21 = arith.constant 0 : index
    %c0_22 = arith.constant 0 : index
    %84 = vector.load %arg5[%c2_20, %c0_21, %c0_22] : memref<8x16x1xf32, #tpu.memory_space<vmem>>, vector<1x16x1xf32>
    %85 = vector.shape_cast %84 : vector<1x16x1xf32> to vector<16x1xf32>
    %86 = vector.shape_cast %85 : vector<16x1xf32> to vector<16x1x1xf32>
    %87 = vector.extract_strided_slice %25 {offsets = [2, 0, 0], sizes = [1, 8, 22], strides = [1, 1, 1]} : vector<8x8x22xf32> to vector<1x8x22xf32>
    %88 = vector.shape_cast %87 : vector<1x8x22xf32> to vector<8x22xf32>
    %89 = vector.extract_strided_slice %88 {offsets = [0, 1], sizes = [8, 21], strides = [1, 1]} : vector<8x22xf32> to vector<8x21xf32>
    %90 = vector.shape_cast %89 : vector<8x21xf32> to vector<1x8x21xf32>
    %91 = vector.broadcast %86 : vector<16x1x1xf32> to vector<16x8x21xf32>
    %92 = vector.broadcast %90 : vector<1x8x21xf32> to vector<16x8x21xf32>
    %93 = arith.mulf %91, %92 : vector<16x8x21xf32>
    %94 = arith.addf %83, %93 : vector<16x8x21xf32>
    %c3 = arith.constant 3 : index
    %c0_23 = arith.constant 0 : index
    %c0_24 = arith.constant 0 : index
    %95 = vector.load %arg4[%c3, %c0_23, %c0_24] : memref<8x16x1xf32, #tpu.memory_space<vmem>>, vector<1x16x1xf32>
    %96 = vector.shape_cast %95 : vector<1x16x1xf32> to vector<16x1xf32>
    %97 = vector.shape_cast %96 : vector<16x1xf32> to vector<16x1x1xf32>
    %98 = vector.extract_strided_slice %25 {offsets = [3, 0, 0], sizes = [1, 8, 22], strides = [1, 1, 1]} : vector<8x8x22xf32> to vector<1x8x22xf32>
    %99 = vector.shape_cast %98 : vector<1x8x22xf32> to vector<8x22xf32>
    %100 = vector.extract_strided_slice %99 {offsets = [0, 0], sizes = [8, 21], strides = [1, 1]} : vector<8x22xf32> to vector<8x21xf32>
    %101 = vector.shape_cast %100 : vector<8x21xf32> to vector<1x8x21xf32>
    %102 = vector.broadcast %97 : vector<16x1x1xf32> to vector<16x8x21xf32>
    %103 = vector.broadcast %101 : vector<1x8x21xf32> to vector<16x8x21xf32>
    %104 = arith.mulf %102, %103 : vector<16x8x21xf32>
    %105 = arith.addf %94, %104 : vector<16x8x21xf32>
    %c3_25 = arith.constant 3 : index
    %c0_26 = arith.constant 0 : index
    %c0_27 = arith.constant 0 : index
    %106 = vector.load %arg5[%c3_25, %c0_26, %c0_27] : memref<8x16x1xf32, #tpu.memory_space<vmem>>, vector<1x16x1xf32>
    %107 = vector.shape_cast %106 : vector<1x16x1xf32> to vector<16x1xf32>
    %108 = vector.shape_cast %107 : vector<16x1xf32> to vector<16x1x1xf32>
    %109 = vector.extract_strided_slice %25 {offsets = [3, 0, 0], sizes = [1, 8, 22], strides = [1, 1, 1]} : vector<8x8x22xf32> to vector<1x8x22xf32>
    %110 = vector.shape_cast %109 : vector<1x8x22xf32> to vector<8x22xf32>
    %111 = vector.extract_strided_slice %110 {offsets = [0, 1], sizes = [8, 21], strides = [1, 1]} : vector<8x22xf32> to vector<8x21xf32>
    %112 = vector.shape_cast %111 : vector<8x21xf32> to vector<1x8x21xf32>
    %113 = vector.broadcast %108 : vector<16x1x1xf32> to vector<16x8x21xf32>
    %114 = vector.broadcast %112 : vector<1x8x21xf32> to vector<16x8x21xf32>
    %115 = arith.mulf %113, %114 : vector<16x8x21xf32>
    %116 = arith.addf %105, %115 : vector<16x8x21xf32>
    %c4 = arith.constant 4 : index
    %c0_28 = arith.constant 0 : index
    %c0_29 = arith.constant 0 : index
    %117 = vector.load %arg4[%c4, %c0_28, %c0_29] : memref<8x16x1xf32, #tpu.memory_space<vmem>>, vector<1x16x1xf32>
    %118 = vector.shape_cast %117 : vector<1x16x1xf32> to vector<16x1xf32>
    %119 = vector.shape_cast %118 : vector<16x1xf32> to vector<16x1x1xf32>
    %120 = vector.extract_strided_slice %25 {offsets = [4, 0, 0], sizes = [1, 8, 22], strides = [1, 1, 1]} : vector<8x8x22xf32> to vector<1x8x22xf32>
    %121 = vector.shape_cast %120 : vector<1x8x22xf32> to vector<8x22xf32>
    %122 = vector.extract_strided_slice %121 {offsets = [0, 0], sizes = [8, 21], strides = [1, 1]} : vector<8x22xf32> to vector<8x21xf32>
    %123 = vector.shape_cast %122 : vector<8x21xf32> to vector<1x8x21xf32>
    %124 = vector.broadcast %119 : vector<16x1x1xf32> to vector<16x8x21xf32>
    %125 = vector.broadcast %123 : vector<1x8x21xf32> to vector<16x8x21xf32>
    %126 = arith.mulf %124, %125 : vector<16x8x21xf32>
    %127 = arith.addf %116, %126 : vector<16x8x21xf32>
    %c4_30 = arith.constant 4 : index
    %c0_31 = arith.constant 0 : index
    %c0_32 = arith.constant 0 : index
    %128 = vector.load %arg5[%c4_30, %c0_31, %c0_32] : memref<8x16x1xf32, #tpu.memory_space<vmem>>, vector<1x16x1xf32>
    %129 = vector.shape_cast %128 : vector<1x16x1xf32> to vector<16x1xf32>
    %130 = vector.shape_cast %129 : vector<16x1xf32> to vector<16x1x1xf32>
    %131 = vector.extract_strided_slice %25 {offsets = [4, 0, 0], sizes = [1, 8, 22], strides = [1, 1, 1]} : vector<8x8x22xf32> to vector<1x8x22xf32>
    %132 = vector.shape_cast %131 : vector<1x8x22xf32> to vector<8x22xf32>
    %133 = vector.extract_strided_slice %132 {offsets = [0, 1], sizes = [8, 21], strides = [1, 1]} : vector<8x22xf32> to vector<8x21xf32>
    %134 = vector.shape_cast %133 : vector<8x21xf32> to vector<1x8x21xf32>
    %135 = vector.broadcast %130 : vector<16x1x1xf32> to vector<16x8x21xf32>
    %136 = vector.broadcast %134 : vector<1x8x21xf32> to vector<16x8x21xf32>
    %137 = arith.mulf %135, %136 : vector<16x8x21xf32>
    %138 = arith.addf %127, %137 : vector<16x8x21xf32>
    %c5 = arith.constant 5 : index
    %c0_33 = arith.constant 0 : index
    %c0_34 = arith.constant 0 : index
    %139 = vector.load %arg4[%c5, %c0_33, %c0_34] : memref<8x16x1xf32, #tpu.memory_space<vmem>>, vector<1x16x1xf32>
    %140 = vector.shape_cast %139 : vector<1x16x1xf32> to vector<16x1xf32>
    %141 = vector.shape_cast %140 : vector<16x1xf32> to vector<16x1x1xf32>
    %142 = vector.extract_strided_slice %25 {offsets = [5, 0, 0], sizes = [1, 8, 22], strides = [1, 1, 1]} : vector<8x8x22xf32> to vector<1x8x22xf32>
    %143 = vector.shape_cast %142 : vector<1x8x22xf32> to vector<8x22xf32>
    %144 = vector.extract_strided_slice %143 {offsets = [0, 0], sizes = [8, 21], strides = [1, 1]} : vector<8x22xf32> to vector<8x21xf32>
    %145 = vector.shape_cast %144 : vector<8x21xf32> to vector<1x8x21xf32>
    %146 = vector.broadcast %141 : vector<16x1x1xf32> to vector<16x8x21xf32>
    %147 = vector.broadcast %145 : vector<1x8x21xf32> to vector<16x8x21xf32>
    %148 = arith.mulf %146, %147 : vector<16x8x21xf32>
    %149 = arith.addf %138, %148 : vector<16x8x21xf32>
    %c5_35 = arith.constant 5 : index
    %c0_36 = arith.constant 0 : index
    %c0_37 = arith.constant 0 : index
    %150 = vector.load %arg5[%c5_35, %c0_36, %c0_37] : memref<8x16x1xf32, #tpu.memory_space<vmem>>, vector<1x16x1xf32>
    %151 = vector.shape_cast %150 : vector<1x16x1xf32> to vector<16x1xf32>
    %152 = vector.shape_cast %151 : vector<16x1xf32> to vector<16x1x1xf32>
    %153 = vector.extract_strided_slice %25 {offsets = [5, 0, 0], sizes = [1, 8, 22], strides = [1, 1, 1]} : vector<8x8x22xf32> to vector<1x8x22xf32>
    %154 = vector.shape_cast %153 : vector<1x8x22xf32> to vector<8x22xf32>
    %155 = vector.extract_strided_slice %154 {offsets = [0, 1], sizes = [8, 21], strides = [1, 1]} : vector<8x22xf32> to vector<8x21xf32>
    %156 = vector.shape_cast %155 : vector<8x21xf32> to vector<1x8x21xf32>
    %157 = vector.broadcast %152 : vector<16x1x1xf32> to vector<16x8x21xf32>
    %158 = vector.broadcast %156 : vector<1x8x21xf32> to vector<16x8x21xf32>
    %159 = arith.mulf %157, %158 : vector<16x8x21xf32>
    %160 = arith.addf %149, %159 : vector<16x8x21xf32>
    %c6 = arith.constant 6 : index
    %c0_38 = arith.constant 0 : index
    %c0_39 = arith.constant 0 : index
    %161 = vector.load %arg4[%c6, %c0_38, %c0_39] : memref<8x16x1xf32, #tpu.memory_space<vmem>>, vector<1x16x1xf32>
    %162 = vector.shape_cast %161 : vector<1x16x1xf32> to vector<16x1xf32>
    %163 = vector.shape_cast %162 : vector<16x1xf32> to vector<16x1x1xf32>
    %164 = vector.extract_strided_slice %25 {offsets = [6, 0, 0], sizes = [1, 8, 22], strides = [1, 1, 1]} : vector<8x8x22xf32> to vector<1x8x22xf32>
    %165 = vector.shape_cast %164 : vector<1x8x22xf32> to vector<8x22xf32>
    %166 = vector.extract_strided_slice %165 {offsets = [0, 0], sizes = [8, 21], strides = [1, 1]} : vector<8x22xf32> to vector<8x21xf32>
    %167 = vector.shape_cast %166 : vector<8x21xf32> to vector<1x8x21xf32>
    %168 = vector.broadcast %163 : vector<16x1x1xf32> to vector<16x8x21xf32>
    %169 = vector.broadcast %167 : vector<1x8x21xf32> to vector<16x8x21xf32>
    %170 = arith.mulf %168, %169 : vector<16x8x21xf32>
    %171 = arith.addf %160, %170 : vector<16x8x21xf32>
    %c6_40 = arith.constant 6 : index
    %c0_41 = arith.constant 0 : index
    %c0_42 = arith.constant 0 : index
    %172 = vector.load %arg5[%c6_40, %c0_41, %c0_42] : memref<8x16x1xf32, #tpu.memory_space<vmem>>, vector<1x16x1xf32>
    %173 = vector.shape_cast %172 : vector<1x16x1xf32> to vector<16x1xf32>
    %174 = vector.shape_cast %173 : vector<16x1xf32> to vector<16x1x1xf32>
    %175 = vector.extract_strided_slice %25 {offsets = [6, 0, 0], sizes = [1, 8, 22], strides = [1, 1, 1]} : vector<8x8x22xf32> to vector<1x8x22xf32>
    %176 = vector.shape_cast %175 : vector<1x8x22xf32> to vector<8x22xf32>
    %177 = vector.extract_strided_slice %176 {offsets = [0, 1], sizes = [8, 21], strides = [1, 1]} : vector<8x22xf32> to vector<8x21xf32>
    %178 = vector.shape_cast %177 : vector<8x21xf32> to vector<1x8x21xf32>
    %179 = vector.broadcast %174 : vector<16x1x1xf32> to vector<16x8x21xf32>
    %180 = vector.broadcast %178 : vector<1x8x21xf32> to vector<16x8x21xf32>
    %181 = arith.mulf %179, %180 : vector<16x8x21xf32>
    %182 = arith.addf %171, %181 : vector<16x8x21xf32>
    %c7 = arith.constant 7 : index
    %c0_43 = arith.constant 0 : index
    %c0_44 = arith.constant 0 : index
    %183 = vector.load %arg4[%c7, %c0_43, %c0_44] : memref<8x16x1xf32, #tpu.memory_space<vmem>>, vector<1x16x1xf32>
    %184 = vector.shape_cast %183 : vector<1x16x1xf32> to vector<16x1xf32>
    %185 = vector.shape_cast %184 : vector<16x1xf32> to vector<16x1x1xf32>
    %186 = vector.extract_strided_slice %25 {offsets = [7, 0, 0], sizes = [1, 8, 22], strides = [1, 1, 1]} : vector<8x8x22xf32> to vector<1x8x22xf32>
    %187 = vector.shape_cast %186 : vector<1x8x22xf32> to vector<8x22xf32>
    %188 = vector.extract_strided_slice %187 {offsets = [0, 0], sizes = [8, 21], strides = [1, 1]} : vector<8x22xf32> to vector<8x21xf32>
    %189 = vector.shape_cast %188 : vector<8x21xf32> to vector<1x8x21xf32>
    %190 = vector.broadcast %185 : vector<16x1x1xf32> to vector<16x8x21xf32>
    %191 = vector.broadcast %189 : vector<1x8x21xf32> to vector<16x8x21xf32>
    %192 = arith.mulf %190, %191 : vector<16x8x21xf32>
    %193 = arith.addf %182, %192 : vector<16x8x21xf32>
    %c7_45 = arith.constant 7 : index
    %c0_46 = arith.constant 0 : index
    %c0_47 = arith.constant 0 : index
    %194 = vector.load %arg5[%c7_45, %c0_46, %c0_47] : memref<8x16x1xf32, #tpu.memory_space<vmem>>, vector<1x16x1xf32>
    %195 = vector.shape_cast %194 : vector<1x16x1xf32> to vector<16x1xf32>
    %196 = vector.shape_cast %195 : vector<16x1xf32> to vector<16x1x1xf32>
    %197 = vector.extract_strided_slice %25 {offsets = [7, 0, 0], sizes = [1, 8, 22], strides = [1, 1, 1]} : vector<8x8x22xf32> to vector<1x8x22xf32>
    %198 = vector.shape_cast %197 : vector<1x8x22xf32> to vector<8x22xf32>
    %199 = vector.extract_strided_slice %198 {offsets = [0, 1], sizes = [8, 21], strides = [1, 1]} : vector<8x22xf32> to vector<8x21xf32>
    %200 = vector.shape_cast %199 : vector<8x21xf32> to vector<1x8x21xf32>
    %201 = vector.broadcast %196 : vector<16x1x1xf32> to vector<16x8x21xf32>
    %202 = vector.broadcast %200 : vector<1x8x21xf32> to vector<16x8x21xf32>
    %203 = arith.mulf %201, %202 : vector<16x8x21xf32>
    %204 = arith.addf %193, %203 : vector<16x8x21xf32>
    %cst_48 = arith.constant 0.000000e+00 : f32
    %205 = vector.broadcast %cst_48 : f32 to vector<16x8x21xf32>
    %206 = arith.maximumf %204, %205 : vector<16x8x21xf32>
    %207 = vector.extract_strided_slice %206 {offsets = [0, 0, 0], sizes = [16, 8, 20], strides = [1, 1, 1]} : vector<16x8x21xf32> to vector<16x8x20xf32>
    %208 = vector.extract_strided_slice %206 {offsets = [0, 0, 1], sizes = [16, 8, 20], strides = [1, 1, 1]} : vector<16x8x21xf32> to vector<16x8x20xf32>
    %209 = arith.maximumf %207, %208 : vector<16x8x20xf32>
    %cst_49 = arith.constant 0.000000e+00 : f32
    %210 = vector.broadcast %cst_49 : f32 to vector<8x384xf32>
    %c0_50 = arith.constant 0 : index
    %c0_51 = arith.constant 0 : index
    %211 = vector.load %arg12[%c0_50, %c0_51] : memref<8x384xf32, #tpu.memory_space<vmem>>, vector<8x384xf32>
    tpu.vector_store %arg12[%c0_50, %c0_51], %210 {strides = array<i32>} : memref<8x384xf32, #tpu.memory_space<vmem>>, vector<8x384xf32>,
    %212 = vector.extract_strided_slice %209 {offsets = [0, 0, 0], sizes = [1, 8, 20], strides = [1, 1, 1]} : vector<16x8x20xf32> to vector<1x8x20xf32>
    %213 = vector.shape_cast %212 : vector<1x8x20xf32> to vector<8x20xf32>
    %c0_52 = arith.constant 0 : index
    %c0_53 = arith.constant 0 : index
    %214 = vector.load %arg12[%c0_52, %c0_53] : memref<8x384xf32, #tpu.memory_space<vmem>>, vector<8x20xf32>
    tpu.vector_store %arg12[%c0_52, %c0_53], %213 {strides = array<i32>} : memref<8x384xf32, #tpu.memory_space<vmem>>, vector<8x20xf32>,
    %215 = vector.extract_strided_slice %209 {offsets = [1, 0, 0], sizes = [1, 8, 20], strides = [1, 1, 1]} : vector<16x8x20xf32> to vector<1x8x20xf32>
    %216 = vector.shape_cast %215 : vector<1x8x20xf32> to vector<8x20xf32>
    %c0_54 = arith.constant 0 : index
    %c20 = arith.constant 20 : index
    %217 = vector.load %arg12[%c0_54, %c20] : memref<8x384xf32, #tpu.memory_space<vmem>>, vector<8x20xf32>
    tpu.vector_store %arg12[%c0_54, %c20], %216 {strides = array<i32>} : memref<8x384xf32, #tpu.memory_space<vmem>>, vector<8x20xf32>,
    %218 = vector.extract_strided_slice %209 {offsets = [2, 0, 0], sizes = [1, 8, 20], strides = [1, 1, 1]} : vector<16x8x20xf32> to vector<1x8x20xf32>
    %219 = vector.shape_cast %218 : vector<1x8x20xf32> to vector<8x20xf32>
    %c0_55 = arith.constant 0 : index
    %c40 = arith.constant 40 : index
    %220 = vector.load %arg12[%c0_55, %c40] : memref<8x384xf32, #tpu.memory_space<vmem>>, vector<8x20xf32>
    tpu.vector_store %arg12[%c0_55, %c40], %219 {strides = array<i32>} : memref<8x384xf32, #tpu.memory_space<vmem>>, vector<8x20xf32>,
    %221 = vector.extract_strided_slice %209 {offsets = [3, 0, 0], sizes = [1, 8, 20], strides = [1, 1, 1]} : vector<16x8x20xf32> to vector<1x8x20xf32>
    %222 = vector.shape_cast %221 : vector<1x8x20xf32> to vector<8x20xf32>
    %c0_56 = arith.constant 0 : index
    %c60 = arith.constant 60 : index
    %223 = vector.load %arg12[%c0_56, %c60] : memref<8x384xf32, #tpu.memory_space<vmem>>, vector<8x20xf32>
    tpu.vector_store %arg12[%c0_56, %c60], %222 {strides = array<i32>} : memref<8x384xf32, #tpu.memory_space<vmem>>, vector<8x20xf32>,
    %224 = vector.extract_strided_slice %209 {offsets = [4, 0, 0], sizes = [1, 8, 20], strides = [1, 1, 1]} : vector<16x8x20xf32> to vector<1x8x20xf32>
    %225 = vector.shape_cast %224 : vector<1x8x20xf32> to vector<8x20xf32>
    %c0_57 = arith.constant 0 : index
    %c80 = arith.constant 80 : index
    %226 = vector.load %arg12[%c0_57, %c80] : memref<8x384xf32, #tpu.memory_space<vmem>>, vector<8x20xf32>
    tpu.vector_store %arg12[%c0_57, %c80], %225 {strides = array<i32>} : memref<8x384xf32, #tpu.memory_space<vmem>>, vector<8x20xf32>,
    %227 = vector.extract_strided_slice %209 {offsets = [5, 0, 0], sizes = [1, 8, 20], strides = [1, 1, 1]} : vector<16x8x20xf32> to vector<1x8x20xf32>
    %228 = vector.shape_cast %227 : vector<1x8x20xf32> to vector<8x20xf32>
    %c0_58 = arith.constant 0 : index
    %c100 = arith.constant 100 : index
    %229 = vector.load %arg12[%c0_58, %c100] : memref<8x384xf32, #tpu.memory_space<vmem>>, vector<8x20xf32>
    tpu.vector_store %arg12[%c0_58, %c100], %228 {strides = array<i32>} : memref<8x384xf32, #tpu.memory_space<vmem>>, vector<8x20xf32>,
    %230 = vector.extract_strided_slice %209 {offsets = [6, 0, 0], sizes = [1, 8, 20], strides = [1, 1, 1]} : vector<16x8x20xf32> to vector<1x8x20xf32>
    %231 = vector.shape_cast %230 : vector<1x8x20xf32> to vector<8x20xf32>
    %c0_59 = arith.constant 0 : index
    %c120 = arith.constant 120 : index
    %232 = vector.load %arg12[%c0_59, %c120] : memref<8x384xf32, #tpu.memory_space<vmem>>, vector<8x20xf32>
    tpu.vector_store %arg12[%c0_59, %c120], %231 {strides = array<i32>} : memref<8x384xf32, #tpu.memory_space<vmem>>, vector<8x20xf32>,
    %233 = vector.extract_strided_slice %209 {offsets = [7, 0, 0], sizes = [1, 8, 20], strides = [1, 1, 1]} : vector<16x8x20xf32> to vector<1x8x20xf32>
    %234 = vector.shape_cast %233 : vector<1x8x20xf32> to vector<8x20xf32>
    %c0_60 = arith.constant 0 : index
    %c140 = arith.constant 140 : index
    %235 = vector.load %arg12[%c0_60, %c140] : memref<8x384xf32, #tpu.memory_space<vmem>>, vector<8x20xf32>
    tpu.vector_store %arg12[%c0_60, %c140], %234 {strides = array<i32>} : memref<8x384xf32, #tpu.memory_space<vmem>>, vector<8x20xf32>,
    %236 = vector.extract_strided_slice %209 {offsets = [8, 0, 0], sizes = [1, 8, 20], strides = [1, 1, 1]} : vector<16x8x20xf32> to vector<1x8x20xf32>
    %237 = vector.shape_cast %236 : vector<1x8x20xf32> to vector<8x20xf32>
    %c0_61 = arith.constant 0 : index
    %c160 = arith.constant 160 : index
    %238 = vector.load %arg12[%c0_61, %c160] : memref<8x384xf32, #tpu.memory_space<vmem>>, vector<8x20xf32>
    tpu.vector_store %arg12[%c0_61, %c160], %237 {strides = array<i32>} : memref<8x384xf32, #tpu.memory_space<vmem>>, vector<8x20xf32>,
    %239 = vector.extract_strided_slice %209 {offsets = [9, 0, 0], sizes = [1, 8, 20], strides = [1, 1, 1]} : vector<16x8x20xf32> to vector<1x8x20xf32>
    %240 = vector.shape_cast %239 : vector<1x8x20xf32> to vector<8x20xf32>
    %c0_62 = arith.constant 0 : index
    %c180 = arith.constant 180 : index
    %241 = vector.load %arg12[%c0_62, %c180] : memref<8x384xf32, #tpu.memory_space<vmem>>, vector<8x20xf32>
    tpu.vector_store %arg12[%c0_62, %c180], %240 {strides = array<i32>} : memref<8x384xf32, #tpu.memory_space<vmem>>, vector<8x20xf32>,
    %242 = vector.extract_strided_slice %209 {offsets = [10, 0, 0], sizes = [1, 8, 20], strides = [1, 1, 1]} : vector<16x8x20xf32> to vector<1x8x20xf32>
    %243 = vector.shape_cast %242 : vector<1x8x20xf32> to vector<8x20xf32>
    %c0_63 = arith.constant 0 : index
    %c200 = arith.constant 200 : index
    %244 = vector.load %arg12[%c0_63, %c200] : memref<8x384xf32, #tpu.memory_space<vmem>>, vector<8x20xf32>
    tpu.vector_store %arg12[%c0_63, %c200], %243 {strides = array<i32>} : memref<8x384xf32, #tpu.memory_space<vmem>>, vector<8x20xf32>,
    %245 = vector.extract_strided_slice %209 {offsets = [11, 0, 0], sizes = [1, 8, 20], strides = [1, 1, 1]} : vector<16x8x20xf32> to vector<1x8x20xf32>
    %246 = vector.shape_cast %245 : vector<1x8x20xf32> to vector<8x20xf32>
    %c0_64 = arith.constant 0 : index
    %c220 = arith.constant 220 : index
    %247 = vector.load %arg12[%c0_64, %c220] : memref<8x384xf32, #tpu.memory_space<vmem>>, vector<8x20xf32>
    tpu.vector_store %arg12[%c0_64, %c220], %246 {strides = array<i32>} : memref<8x384xf32, #tpu.memory_space<vmem>>, vector<8x20xf32>,
    %248 = vector.extract_strided_slice %209 {offsets = [12, 0, 0], sizes = [1, 8, 20], strides = [1, 1, 1]} : vector<16x8x20xf32> to vector<1x8x20xf32>
    %249 = vector.shape_cast %248 : vector<1x8x20xf32> to vector<8x20xf32>
    %c0_65 = arith.constant 0 : index
    %c240 = arith.constant 240 : index
    %250 = vector.load %arg12[%c0_65, %c240] : memref<8x384xf32, #tpu.memory_space<vmem>>, vector<8x20xf32>
    tpu.vector_store %arg12[%c0_65, %c240], %249 {strides = array<i32>} : memref<8x384xf32, #tpu.memory_space<vmem>>, vector<8x20xf32>,
    %251 = vector.extract_strided_slice %209 {offsets = [13, 0, 0], sizes = [1, 8, 20], strides = [1, 1, 1]} : vector<16x8x20xf32> to vector<1x8x20xf32>
    %252 = vector.shape_cast %251 : vector<1x8x20xf32> to vector<8x20xf32>
    %c0_66 = arith.constant 0 : index
    %c260 = arith.constant 260 : index
    %253 = vector.load %arg12[%c0_66, %c260] : memref<8x384xf32, #tpu.memory_space<vmem>>, vector<8x20xf32>
    tpu.vector_store %arg12[%c0_66, %c260], %252 {strides = array<i32>} : memref<8x384xf32, #tpu.memory_space<vmem>>, vector<8x20xf32>,
    %254 = vector.extract_strided_slice %209 {offsets = [14, 0, 0], sizes = [1, 8, 20], strides = [1, 1, 1]} : vector<16x8x20xf32> to vector<1x8x20xf32>
    %255 = vector.shape_cast %254 : vector<1x8x20xf32> to vector<8x20xf32>
    %c0_67 = arith.constant 0 : index
    %c280 = arith.constant 280 : index
    %256 = vector.load %arg12[%c0_67, %c280] : memref<8x384xf32, #tpu.memory_space<vmem>>, vector<8x20xf32>
    tpu.vector_store %arg12[%c0_67, %c280], %255 {strides = array<i32>} : memref<8x384xf32, #tpu.memory_space<vmem>>, vector<8x20xf32>,
    %257 = vector.extract_strided_slice %209 {offsets = [15, 0, 0], sizes = [1, 8, 20], strides = [1, 1, 1]} : vector<16x8x20xf32> to vector<1x8x20xf32>
    %258 = vector.shape_cast %257 : vector<1x8x20xf32> to vector<8x20xf32>
    %c0_68 = arith.constant 0 : index
    %c300 = arith.constant 300 : index
    %259 = vector.load %arg12[%c0_68, %c300] : memref<8x384xf32, #tpu.memory_space<vmem>>, vector<8x20xf32>
    tpu.vector_store %arg12[%c0_68, %c300], %258 {strides = array<i32>} : memref<8x384xf32, #tpu.memory_space<vmem>>, vector<8x20xf32>,
    %c0_69 = arith.constant 0 : index
    %c0_70 = arith.constant 0 : index
    %260 = vector.load %arg12[%c0_69, %c0_70] : memref<8x384xf32, #tpu.memory_space<vmem>>, vector<8x384xf32>
    %c0_71 = arith.constant 0 : index
    %c0_72 = arith.constant 0 : index
    %261 = vector.load %arg7[%c0_71, %c0_72] : memref<384x384xf32, #tpu.memory_space<vmem>>, vector<384x384xf32>
    %cst_73 = arith.constant dense<0.000000e+00> : vector<8x384xf32>
    %262 = tpu.matmul %260, %261, %cst_73 {dimension_numbers = #tpu.dot_dimension_numbers<[1], [0], [0], [1], [0, 0, 1, 1], [], []>} : vector<8x384xf32>, vector<384x384xf32>, vector<8x384xf32> -> vector<8x384xf32>
    %c0_74 = arith.constant 0 : index
    %c0_75 = arith.constant 0 : index
    %263 = vector.load %arg8[%c0_74, %c0_75] : memref<1x384xf32, #tpu.memory_space<vmem>>, vector<1x384xf32>
    %264 = vector.broadcast %263 : vector<1x384xf32> to vector<8x384xf32>
    %265 = arith.addf %262, %264 : vector<8x384xf32>
    %cst_76 = arith.constant 0.000000e+00 : f32
    %266 = vector.broadcast %cst_76 : f32 to vector<8x384xf32>
    %267 = arith.maximumf %265, %266 : vector<8x384xf32>
    %c0_77 = arith.constant 0 : index
    %c0_78 = arith.constant 0 : index
    %268 = vector.load %arg9[%c0_77, %c0_78] : memref<384x384xf32, #tpu.memory_space<vmem>>, vector<384x384xf32>
    %cst_79 = arith.constant dense<0.000000e+00> : vector<8x384xf32>
    %269 = tpu.matmul %267, %268, %cst_79 {dimension_numbers = #tpu.dot_dimension_numbers<[1], [0], [0], [1], [0, 0, 1, 1], [], []>} : vector<8x384xf32>, vector<384x384xf32>, vector<8x384xf32> -> vector<8x384xf32>
    %c0_80 = arith.constant 0 : index
    %c0_81 = arith.constant 0 : index
    %270 = vector.load %arg10[%c0_80, %c0_81] : memref<1x384xf32, #tpu.memory_space<vmem>>, vector<1x384xf32>
    %271 = vector.broadcast %270 : vector<1x384xf32> to vector<8x384xf32>
    %272 = arith.addf %269, %271 : vector<8x384xf32>
    %c0_82 = arith.constant 0 : index
    %c0_83 = arith.constant 0 : index
    %273 = vector.load %arg11[%c0_82, %c0_83] : memref<8x384xf32, #tpu.memory_space<vmem>>, vector<8x384xf32>
    tpu.vector_store %arg11[%c0_82, %c0_83], %272 {strides = array<i32>} : memref<8x384xf32, #tpu.memory_space<vmem>>, vector<8x384xf32>,
    return
  }
  func.func @transform_0(%arg0: i32) -> (i32, i32) {
    %c0_i32 = arith.constant 0 : i32
    %c0_i32_0 = arith.constant 0 : i32
    return %arg0, %c0_i32 : i32, i32
  }
  func.func @transform_1(%arg0: i32) -> (i32, i32) {
    %c0_i32 = arith.constant 0 : i32
    %c0_i32_0 = arith.constant 0 : i32
    %c0_i32_1 = arith.constant 0 : i32
    return %c0_i32, %c0_i32_0 : i32, i32
  }
  func.func @transform_2(%arg0: i32) -> (i32, i32) {
    %c0_i32 = arith.constant 0 : i32
    %c0_i32_0 = arith.constant 0 : i32
    %c0_i32_1 = arith.constant 0 : i32
    return %c0_i32, %c0_i32_0 : i32, i32
  }
  func.func @transform_3(%arg0: i32) -> (i32, i32, i32) {
    %c0_i32 = arith.constant 0 : i32
    %c0_i32_0 = arith.constant 0 : i32
    %c0_i32_1 = arith.constant 0 : i32
    %c0_i32_2 = arith.constant 0 : i32
    return %c0_i32, %c0_i32_0, %c0_i32_1 : i32, i32, i32
  }
  func.func @transform_4(%arg0: i32) -> (i32, i32, i32) {
    %c0_i32 = arith.constant 0 : i32
    %c0_i32_0 = arith.constant 0 : i32
    %c0_i32_1 = arith.constant 0 : i32
    %c0_i32_2 = arith.constant 0 : i32
    return %c0_i32, %c0_i32_0, %c0_i32_1 : i32, i32, i32
  }
  func.func @transform_5(%arg0: i32) -> (i32, i32) {
    %c0_i32 = arith.constant 0 : i32
    %c0_i32_0 = arith.constant 0 : i32
    %c0_i32_1 = arith.constant 0 : i32
    return %c0_i32, %c0_i32_0 : i32, i32
  }
  func.func @transform_6(%arg0: i32) -> (i32, i32) {
    %c0_i32 = arith.constant 0 : i32
    %c0_i32_0 = arith.constant 0 : i32
    %c0_i32_1 = arith.constant 0 : i32
    return %c0_i32, %c0_i32_0 : i32, i32
  }
  func.func @transform_7(%arg0: i32) -> (i32, i32) {
    %c0_i32 = arith.constant 0 : i32
    %c0_i32_0 = arith.constant 0 : i32
    %c0_i32_1 = arith.constant 0 : i32
    return %c0_i32, %c0_i32_0 : i32, i32
  }
  func.func @transform_8(%arg0: i32) -> (i32, i32) {
    %c0_i32 = arith.constant 0 : i32
    %c0_i32_0 = arith.constant 0 : i32
    %c0_i32_1 = arith.constant 0 : i32
    return %c0_i32, %c0_i32_0 : i32, i32
  }
  func.func @transform_9(%arg0: i32) -> (i32, i32) {
    %c0_i32 = arith.constant 0 : i32
    %c0_i32_0 = arith.constant 0 : i32
    %c0_i32_1 = arith.constant 0 : i32
    return %c0_i32, %c0_i32_0 : i32, i32
  }
  func.func @transform_10(%arg0: i32) -> (i32, i32) {
    %c0_i32 = arith.constant 0 : i32
    %c0_i32_0 = arith.constant 0 : i32
    return %arg0, %c0_i32 : i32, i32
  }
}

</mosaic_0001>

<llo_original>
// kernel: net_short_circuit.1
$region0: #{net_short_circuit.1}
  #allocation0 [shape = 'u32[]', space=smem, size = 0x4, offset = 0x4, fixed_abs, tag = 'smem constant byte address 0x4 - core index']
  #allocation1 [shape = 'u32[144,128]{1,0:T(1,128)}', space=vmem, size = 0x12000, scoped, tag = 'internal scratch']
  #allocation2 [shape = 'f32[8,384]{1,0:T(8,128)}', space=vmem, size = 0x3000, scoped, tag = 'scratch operand']
  %s0 = inlined_call_operand.vmem [shape: f32[8,24], index: 0, kind: input, shape index: {}]
  %s1 = inlined_call_operand.vmem [shape: f32[8,2], index: 1, kind: input, shape index: {}]
  %s2 = inlined_call_operand.vmem [shape: f32[8,1], index: 2, kind: input, shape index: {}]
  %s3 = inlined_call_operand.vmem [shape: f32[8,16,1], index: 3, kind: input, shape index: {}]
  %s4 = inlined_call_operand.vmem [shape: f32[8,16,1], index: 4, kind: input, shape index: {}]
  %s5 = inlined_call_operand.vmem [shape: f32[16,1], index: 5, kind: input, shape index: {}]
  %s6 = inlined_call_operand.hbm [shape: f32[384,384], index: 6, kind: input, shape index: {}]
  %s7 = inlined_call_operand.vmem [shape: f32[1,384], index: 7, kind: input, shape index: {}]
  %s8 = inlined_call_operand.hbm [shape: f32[384,384], index: 8, kind: input, shape index: {}]
  %s9 = inlined_call_operand.vmem [shape: f32[1,384], index: 9, kind: input, shape index: {}]
  %s10 = inlined_call_operand.hbm [shape: f32[8,384], index: 10, kind: output, shape index: {}]
  %s11 = sld [smem:[#allocation0]]
  $region58: #{net_short_circuit.1} parent=0
    _
  %s13 = ssub.s32 1, %s11
  %s14 = scalar_select 0, %s13, %s11
  $region1: #{net_short_circuit.1} parent=0
    #allocation3 [shape = 'u8[589824]{0}', space=vmem, size = 0x90000, scoped, tag = 'input window, operand 6, single buffered']
    #allocation4 [shape = 's32[1]{0}', space=sflag, size = 0x4, scoped, tag = 'scoped memory for net_short_circuit.1']
    #allocation5 [shape = 's32[1]{0}', space=sflag, size = 0x4, scoped, tag = 'scoped memory for net_short_circuit.1']
    #allocation6 [shape = 'u8[589824]{0}', space=vmem, size = 0x90000, scoped, tag = 'input window, operand 8, single buffered']
    #allocation7 [shape = 's32[1]{0}', space=sflag, size = 0x4, scoped, tag = 'scoped memory for net_short_circuit.1']
    #allocation8 [shape = 'u8[12288]{0}', space=vmem, size = 0x3000, scoped, tag = 'output window, operand 0, single buffered']
    %15 = vsyncpa [#allocation4], 0
    %16 = vsyncpa [#allocation7], 0
    %17 = vsyncpa [#allocation5], 0
    // Predicated region
    $region2: #{net_short_circuit.1} parent=1 // pred_check
      _
    $region3: #{net_short_circuit.1} parent=1 // pred_check_branch
      %19 = sbr.rel (0) target = $region5
    $region4: #{net_short_circuit.1} parent=1 // pred_region
      _
    $region5: #{net_short_circuit.1} parent=1 // pred_fallthru
      _
    // Predicated region
    $region6: #{net_short_circuit.1} parent=1 // pred_check
      _
    $region7: #{net_short_circuit.1} parent=1 // pred_check_branch
      %21 = sbr.rel (0) target = $region9
    $region8: #{net_short_circuit.1} parent=1 // pred_region
      _
    $region9: #{net_short_circuit.1} parent=1 // pred_fallthru
      _
    // Predicated region
    $region10: #{net_short_circuit.1} parent=1 // pred_check
      _
    $region11: #{net_short_circuit.1} parent=1 // pred_check_branch
      %23 = sbr.rel (0) target = $region13
    $region12: #{net_short_circuit.1} parent=1 // pred_region
      _
    $region13: #{net_short_circuit.1} parent=1 // pred_fallthru
      _
    // Predicated region
    $region14: #{net_short_circuit.1} parent=1 // pred_check
      _
    $region15: #{net_short_circuit.1} parent=1 // pred_check_branch
      %25 = sbr.rel (0) target = $region17
    $region16: #{net_short_circuit.1} parent=1 // pred_region
      _
    $region17: #{net_short_circuit.1} parent=1 // pred_fallthru
      _
    // Predicated region
    $region18: #{net_short_circuit.1} parent=1 // pred_check
      _
    $region19: #{net_short_circuit.1} parent=1 // pred_check_branch
      %27 = sbr.rel (0) target = $region21
    $region20: #{net_short_circuit.1} parent=1 // pred_region
      _
    $region21: #{net_short_circuit.1} parent=1 // pred_fallthru
      _
    // Predicated region
    $region22: #{net_short_circuit.1} parent=1 // pred_check
      _
    $region23: #{net_short_circuit.1} parent=1 // pred_check_branch
      %29 = sbr.rel (0) target = $region25
    $region24: #{net_short_circuit.1} parent=1 // pred_region
      _
    $region25: #{net_short_circuit.1} parent=1 // pred_fallthru
      _
    // Predicated region
    $region26: #{net_short_circuit.1} parent=1 // pred_check
      _
    $region27: #{net_short_circuit.1} parent=1 // pred_check_branch
      %31 = sbr.rel (0) target = $region29
    $region28: #{net_short_circuit.1} parent=1 // pred_region
      %s33 = ssub.s32 18432, 18432
      %34 = vsyncadd [#allocation4], %s33
      %s35 = sshll.u32 [#allocation3], 4
      %s36 = int_to_ptr.vmem [resolvable:$true] %s35
      %41 = dma.hbm_to_vmem [thread:$0]  %s6, 18432, %s36, [#allocation4], 384, 384, 24
    $region29: #{net_short_circuit.1} parent=1 // pred_fallthru
      _
    // Predicated region
    $region30: #{net_short_circuit.1} parent=1 // pred_check
      _
    $region31: #{net_short_circuit.1} parent=1 // pred_check_branch
      %43 = sbr.rel (0) target = $region33
    $region32: #{net_short_circuit.1} parent=1 // pred_region
      _
    $region33: #{net_short_circuit.1} parent=1 // pred_fallthru
      _
    // Predicated region
    $region34: #{net_short_circuit.1} parent=1 // pred_check
      _
    $region35: #{net_short_circuit.1} parent=1 // pred_check_branch
      %45 = sbr.rel (0) target = $region37
    $region36: #{net_short_circuit.1} parent=1 // pred_region
      %s47 = ssub.s32 18432, 18432
      %48 = vsyncadd [#allocation7], %s47
      %s49 = sshll.u32 [#allocation6], 4
      %s50 = int_to_ptr.vmem [resolvable:$true] %s49
      %55 = dma.hbm_to_vmem [thread:$0]  %s8, 18432, %s50, [#allocation7], 384, 384, 24
    $region37: #{net_short_circuit.1} parent=1 // pred_fallthru
      _
    // Predicated region
    $region38: #{net_short_circuit.1} parent=1 // pred_check
      _
    $region39: #{net_short_circuit.1} parent=1 // pred_check_branch
      %57 = sbr.rel (0) target = $region41
    $region40: #{net_short_circuit.1} parent=1 // pred_region
      _
    $region41: #{net_short_circuit.1} parent=1 // pred_fallthru
      _
    // Predicated region
    $region42: #{net_short_circuit.1} parent=1 // pred_check
      _
    $region43: #{net_short_circuit.1} parent=1 // pred_check_branch
      %59 = sbr.rel (0) target = $region45
    $region44: #{net_short_circuit.1} parent=1 // pred_region
      %60 = dma.done [#allocation4], 18432
    $region45: #{net_short_circuit.1} parent=1 // pred_fallthru
      _
    // Predicated region
    $region46: #{net_short_circuit.1} parent=1 // pred_check
      _
    $region47: #{net_short_circuit.1} parent=1 // pred_check_branch
      %62 = sbr.rel (0) target = $region49
    $region48: #{net_short_circuit.1} parent=1 // pred_region
      %63 = dma.done [#allocation7], 18432
    $region49: #{net_short_circuit.1} parent=1 // pred_fallthru
      _
    %v64 = vld [vmem:[%s0] sm:$0xff]
    %v65 = vld [vmem:[%s1] sm:$0xff]
    %v67 = vcombine.high %v65, %v65
    %v69 = vunpack.c.l.s4 1966171168
    %v70 = vunpack.c.0.s8 %v69
    %v71 = vlaneseq
    %v72 = vshrl.u32 %v71, 7
    %v73 = vsub.s32 %v70, %v72
    %v74 = vrot.slane %v65, %v73
    %v76 = vunpack.c.l.s4 1966171168
    %v77 = vunpack.c.0.s8 %v76
    %v78 = vlaneseq
    %v79 = vshrl.u32 %v78, 7
    %v80 = vsub.s32 %v77, %v79
    %v81 = vrot.slane %v67, %v80
    %v82 = vcombine.high %v74, %v74
    %v83 = vcombine.high %v81, %v81
    %v85 = vunpack.c.l.s4 1966171168
    %v86 = vunpack.c.0.s8 %v85
    %v87 = vlaneseq
    %v88 = vshrl.u32 %v87, 7
    %v89 = vsub.s32 %v86, %v88
    %v90 = vrot.slane %v74, %v89
    %v92 = vunpack.c.l.s4 1966171168
    %v93 = vunpack.c.0.s8 %v92
    %v94 = vlaneseq
    %v95 = vshrl.u32 %v94, 7
    %v96 = vsub.s32 %v93, %v95
    %v97 = vrot.slane %v81, %v96
    %v99 = vunpack.c.l.s4 1966171168
    %v100 = vunpack.c.0.s8 %v99
    %v101 = vlaneseq
    %v102 = vshrl.u32 %v101, 7
    %v103 = vsub.s32 %v100, %v102
    %v104 = vrot.slane %v82, %v103
    %v106 = vunpack.c.l.s4 1966171168
    %v107 = vunpack.c.0.s8 %v106
    %v108 = vlaneseq
    %v109 = vshrl.u32 %v108, 7
    %v110 = vsub.s32 %v107, %v109
    %v111 = vrot.slane %v83, %v110
    %v112 = vcombine.high %v90, %v90
    %v113 = vcombine.high %v97, %v97
    %v114 = vcombine.high %v104, %v104
    %v115 = vcombine.high %v111, %v111
    %v116 = vlaneseq
    %v117 = vshrl.u32 %v116, 7
    %v118 = vsub.s32 0, %v117
    %v119 = vrot.slane %v90, %v118
    %v120 = vlaneseq
    %v121 = vshrl.u32 %v120, 7
    %v122 = vsub.s32 0, %v121
    %v123 = vrot.slane %v104, %v122
    %v124 = vlaneseq
    %v125 = vshrl.u32 %v124, 7
    %v126 = vsub.s32 0, %v125
    %v127 = vrot.slane %v112, %v126
    %v128 = vlaneseq
    %v129 = vshrl.u32 %v128, 7
    %v130 = vsub.s32 0, %v129
    %v131 = vrot.slane %v114, %v130
    %v132 = vlaneseq
    %v133 = vshrl.u32 %v132, 7
    %v134 = vsub.s32 0, %v133
    %v135 = vrot.slane %v97, %v134
    %v136 = vlaneseq
    %v137 = vshrl.u32 %v136, 7
    %v138 = vsub.s32 0, %v137
    %v139 = vrot.slane %v111, %v138
    %v140 = vlaneseq
    %v141 = vshrl.u32 %v140, 7
    %v142 = vsub.s32 0, %v141
    %v143 = vrot.slane %v113, %v142
    %v144 = vlaneseq
    %v145 = vshrl.u32 %v144, 7
    %v146 = vsub.s32 0, %v145
    %v147 = vrot.slane %v115, %v146
    %148 = vset.pattern.permute.xlu0 0
    %149 = vperm.xlu0 %148, %v119
    %v150 = vpop.permute.xlu0 %149
    %152 = vset.pattern.permute.xlu0 0
    %153 = vperm.xlu0 %152, %v123
    %v154 = vpop.permute.xlu0 %153
    %156 = vset.pattern.permute.xlu0 0
    %157 = vperm.xlu0 %156, %v127
    %v158 = vpop.permute.xlu0 %157
    %160 = vset.pattern.permute.xlu0 0
    %161 = vperm.xlu0 %160, %v131
    %v162 = vpop.permute.xlu0 %161
    %164 = vset.pattern.permute.xlu0 0
    %165 = vperm.xlu0 %164, %v135
    %v166 = vpop.permute.xlu0 %165
    %168 = vset.pattern.permute.xlu0 0
    %169 = vperm.xlu0 %168, %v139
    %v170 = vpop.permute.xlu0 %169
    %172 = vset.pattern.permute.xlu0 0
    %173 = vperm.xlu0 %172, %v143
    %v174 = vpop.permute.xlu0 %173
    %176 = vset.pattern.permute.xlu0 0
    %177 = vperm.xlu0 %176, %v147
    %v178 = vpop.permute.xlu0 %177
    %v180 = vmul.f32 %v64, %v150
    %v181 = vmul.f32 %v64, %v154
    %v182 = vmul.f32 %v64, %v158
    %v183 = vmul.f32 %v64, %v162
    %v184 = vmul.f32 %v64, %v166
    %v185 = vmul.f32 %v64, %v170
    %v186 = vmul.f32 %v64, %v174
    %v187 = vmul.f32 %v64, %v178
    %188 = vset.pattern.permute.xlu0 1
    %189 = vperm.xlu0 %188, %v119
    %v190 = vpop.permute.xlu0 %189
    %192 = vset.pattern.permute.xlu0 1
    %193 = vperm.xlu0 %192, %v123
    %v194 = vpop.permute.xlu0 %193
    %196 = vset.pattern.permute.xlu0 1
    %197 = vperm.xlu0 %196, %v127
    %v198 = vpop.permute.xlu0 %197
    %200 = vset.pattern.permute.xlu0 1
    %201 = vperm.xlu0 %200, %v131
    %v202 = vpop.permute.xlu0 %201
    %204 = vset.pattern.permute.xlu0 1
    %205 = vperm.xlu0 %204, %v135
    %v206 = vpop.permute.xlu0 %205
    %208 = vset.pattern.permute.xlu0 1
    %209 = vperm.xlu0 %208, %v139
    %v210 = vpop.permute.xlu0 %209
    %212 = vset.pattern.permute.xlu0 1
    %213 = vperm.xlu0 %212, %v143
    %v214 = vpop.permute.xlu0 %213
    %216 = vset.pattern.permute.xlu0 1
    %217 = vperm.xlu0 %216, %v147
    %v218 = vpop.permute.xlu0 %217
    %v220 = vmul.f32 %v64, %v190
    %v221 = vmul.f32 %v64, %v194
    %v222 = vmul.f32 %v64, %v198
    %v223 = vmul.f32 %v64, %v202
    %v224 = vmul.f32 %v64, %v206
    %v225 = vmul.f32 %v64, %v210
    %v226 = vmul.f32 %v64, %v214
    %v227 = vmul.f32 %v64, %v218
    %236 = vrot.lane.b32.xlu0 %v220, 127
    %v237 = vpop.permute.xlu0 %236
    %238 = vrot.lane.b32.xlu0 %v221, 127
    %v239 = vpop.permute.xlu0 %238
    %240 = vrot.lane.b32.xlu0 %v222, 127
    %v241 = vpop.permute.xlu0 %240
    %242 = vrot.lane.b32.xlu0 %v223, 127
    %v243 = vpop.permute.xlu0 %242
    %244 = vrot.lane.b32.xlu0 %v224, 127
    %v245 = vpop.permute.xlu0 %244
    %246 = vrot.lane.b32.xlu0 %v225, 127
    %v247 = vpop.permute.xlu0 %246
    %248 = vrot.lane.b32.xlu0 %v226, 127
    %v249 = vpop.permute.xlu0 %248
    %250 = vrot.lane.b32.xlu0 %v227, 127
    %v251 = vpop.permute.xlu0 %250
    %v260 = vadd.f32 %v180, %v237
    %v261 = vadd.f32 %v181, %v239
    %v262 = vadd.f32 %v182, %v241
    %v263 = vadd.f32 %v183, %v243
    %v264 = vadd.f32 %v184, %v245
    %v265 = vadd.f32 %v185, %v247
    %v266 = vadd.f32 %v186, %v249
    %v267 = vadd.f32 %v187, %v251
    %v268 = vld [vmem:[%s2] sm:$0xff]
    %v270 = vcombine.high %v268, %v268
    %v272 = vunpack.c.l.s4 1966171168
    %v273 = vunpack.c.0.s8 %v272
    %v274 = vlaneseq
    %v275 = vshrl.u32 %v274, 7
    %v276 = vsub.s32 %v273, %v275
    %v277 = vrot.slane %v268, %v276
    %v279 = vunpack.c.l.s4 1966171168
    %v280 = vunpack.c.0.s8 %v279
    %v281 = vlaneseq
    %v282 = vshrl.u32 %v281, 7
    %v283 = vsub.s32 %v280, %v282
    %v284 = vrot.slane %v270, %v283
    %v285 = vcombine.high %v277, %v277
    %v286 = vcombine.high %v284, %v284
    %v288 = vunpack.c.l.s4 1966171168
    %v289 = vunpack.c.0.s8 %v288
    %v290 = vlaneseq
    %v291 = vshrl.u32 %v290, 7
    %v292 = vsub.s32 %v289, %v291
    %v293 = vrot.slane %v277, %v292
    %v295 = vunpack.c.l.s4 1966171168
    %v296 = vunpack.c.0.s8 %v295
    %v297 = vlaneseq
    %v298 = vshrl.u32 %v297, 7
    %v299 = vsub.s32 %v296, %v298
    %v300 = vrot.slane %v284, %v299
    %v302 = vunpack.c.l.s4 1966171168
    %v303 = vunpack.c.0.s8 %v302
    %v304 = vlaneseq
    %v305 = vshrl.u32 %v304, 7
    %v306 = vsub.s32 %v303, %v305
    %v307 = vrot.slane %v285, %v306
    %v309 = vunpack.c.l.s4 1966171168
    %v310 = vunpack.c.0.s8 %v309
    %v311 = vlaneseq
    %v312 = vshrl.u32 %v311, 7
    %v313 = vsub.s32 %v310, %v312
    %v314 = vrot.slane %v286, %v313
    %v315 = vcombine.high %v293, %v293
    %v316 = vcombine.high %v300, %v300
    %v317 = vcombine.high %v307, %v307
    %v318 = vcombine.high %v314, %v314
    %v319 = vlaneseq
    %v320 = vshrl.u32 %v319, 7
    %v321 = vsub.s32 0, %v320
    %v322 = vrot.slane %v293, %v321
    %v323 = vlaneseq
    %v324 = vshrl.u32 %v323, 7
    %v325 = vsub.s32 0, %v324
    %v326 = vrot.slane %v307, %v325
    %v327 = vlaneseq
    %v328 = vshrl.u32 %v327, 7
    %v329 = vsub.s32 0, %v328
    %v330 = vrot.slane %v315, %v329
    %v331 = vlaneseq
    %v332 = vshrl.u32 %v331, 7
    %v333 = vsub.s32 0, %v332
    %v334 = vrot.slane %v317, %v333
    %v335 = vlaneseq
    %v336 = vshrl.u32 %v335, 7
    %v337 = vsub.s32 0, %v336
    %v338 = vrot.slane %v300, %v337
    %v339 = vlaneseq
    %v340 = vshrl.u32 %v339, 7
    %v341 = vsub.s32 0, %v340
    %v342 = vrot.slane %v314, %v341
    %v343 = vlaneseq
    %v344 = vshrl.u32 %v343, 7
    %v345 = vsub.s32 0, %v344
    %v346 = vrot.slane %v316, %v345
    %v347 = vlaneseq
    %v348 = vshrl.u32 %v347, 7
    %v349 = vsub.s32 0, %v348
    %v350 = vrot.slane %v318, %v349
    %351 = vset.pattern.permute.xlu0 0
    %352 = vperm.xlu0 %351, %v322
    %v353 = vpop.permute.xlu0 %352
    %355 = vset.pattern.permute.xlu0 0
    %356 = vperm.xlu0 %355, %v326
    %v357 = vpop.permute.xlu0 %356
    %359 = vset.pattern.permute.xlu0 0
    %360 = vperm.xlu0 %359, %v330
    %v361 = vpop.permute.xlu0 %360
    %363 = vset.pattern.permute.xlu0 0
    %364 = vperm.xlu0 %363, %v334
    %v365 = vpop.permute.xlu0 %364
    %367 = vset.pattern.permute.xlu0 0
    %368 = vperm.xlu0 %367, %v338
    %v369 = vpop.permute.xlu0 %368
    %371 = vset.pattern.permute.xlu0 0
    %372 = vperm.xlu0 %371, %v342
    %v373 = vpop.permute.xlu0 %372
    %375 = vset.pattern.permute.xlu0 0
    %376 = vperm.xlu0 %375, %v346
    %v377 = vpop.permute.xlu0 %376
    %379 = vset.pattern.permute.xlu0 0
    %380 = vperm.xlu0 %379, %v350
    %v381 = vpop.permute.xlu0 %380
    %v383 = vadd.f32 %v260, %v353
    %v384 = vadd.f32 %v261, %v357
    %v385 = vadd.f32 %v262, %v361
    %v386 = vadd.f32 %v263, %v365
    %v387 = vadd.f32 %v264, %v369
    %v388 = vadd.f32 %v265, %v373
    %v389 = vadd.f32 %v266, %v377
    %v390 = vadd.f32 %v267, %v381
    %v391 = vmax.f32 %v383, 0.0
    %v392 = vmax.f32 %v384, 0.0
    %v393 = vmax.f32 %v385, 0.0
    %v394 = vmax.f32 %v386, 0.0
    %v395 = vmax.f32 %v387, 0.0
    %v396 = vmax.f32 %v388, 0.0
    %v397 = vmax.f32 %v389, 0.0
    %v398 = vmax.f32 %v390, 0.0
    %407 = vrot.lane.b32.xlu0 %v391, 127
    %v408 = vpop.permute.xlu0 %407
    %409 = vrot.lane.b32.xlu0 %v392, 127
    %v410 = vpop.permute.xlu0 %409
    %411 = vrot.lane.b32.xlu0 %v393, 127
    %v412 = vpop.permute.xlu0 %411
    %413 = vrot.lane.b32.xlu0 %v394, 127
    %v414 = vpop.permute.xlu0 %413
    %415 = vrot.lane.b32.xlu0 %v395, 127
    %v416 = vpop.permute.xlu0 %415
    %417 = vrot.lane.b32.xlu0 %v396, 127
    %v418 = vpop.permute.xlu0 %417
    %419 = vrot.lane.b32.xlu0 %v397, 127
    %v420 = vpop.permute.xlu0 %419
    %421 = vrot.lane.b32.xlu0 %v398, 127
    %v422 = vpop.permute.xlu0 %421
    %v431 = vmax.f32 %v391, %v408
    %v432 = vmax.f32 %v392, %v410
    %v433 = vmax.f32 %v393, %v412
    %v434 = vmax.f32 %v394, %v414
    %v435 = vmax.f32 %v395, %v416
    %v436 = vmax.f32 %v396, %v418
    %v437 = vmax.f32 %v397, %v420
    %v438 = vmax.f32 %v398, %v422
    %v439 = vld [vmem:[%s5] sm:$0xff]
    %v440 = vld [vmem:[%s5 + $0x8] sm:$0xff]
    %v443 = vcombine.high %v439, %v439
    %v445 = vunpack.c.l.s4 1966171168
    %v446 = vunpack.c.0.s8 %v445
    %v447 = vlaneseq
    %v448 = vshrl.u32 %v447, 7
    %v449 = vsub.s32 %v446, %v448
    %v450 = vrot.slane %v439, %v449
    %v452 = vunpack.c.l.s4 1966171168
    %v453 = vunpack.c.0.s8 %v452
    %v454 = vlaneseq
    %v455 = vshrl.u32 %v454, 7
    %v456 = vsub.s32 %v453, %v455
    %v457 = vrot.slane %v443, %v456
    %v458 = vcombine.high %v450, %v450
    %v459 = vcombine.high %v457, %v457
    %v461 = vunpack.c.l.s4 1966171168
    %v462 = vunpack.c.0.s8 %v461
    %v463 = vlaneseq
    %v464 = vshrl.u32 %v463, 7
    %v465 = vsub.s32 %v462, %v464
    %v466 = vrot.slane %v450, %v465
    %v468 = vunpack.c.l.s4 1966171168
    %v469 = vunpack.c.0.s8 %v468
    %v470 = vlaneseq
    %v471 = vshrl.u32 %v470, 7
    %v472 = vsub.s32 %v469, %v471
    %v473 = vrot.slane %v457, %v472
    %v475 = vunpack.c.l.s4 1966171168
    %v476 = vunpack.c.0.s8 %v475
    %v477 = vlaneseq
    %v478 = vshrl.u32 %v477, 7
    %v479 = vsub.s32 %v476, %v478
    %v480 = vrot.slane %v458, %v479
    %v482 = vunpack.c.l.s4 1966171168
    %v483 = vunpack.c.0.s8 %v482
    %v484 = vlaneseq
    %v485 = vshrl.u32 %v484, 7
    %v486 = vsub.s32 %v483, %v485
    %v487 = vrot.slane %v459, %v486
    %v488 = vcombine.high %v466, %v466
    %v489 = vcombine.high %v473, %v473
    %v490 = vcombine.high %v480, %v480
    %v491 = vcombine.high %v487, %v487
    %v492 = vcombine.high %v440, %v440
    %v494 = vunpack.c.l.s4 1966171168
    %v495 = vunpack.c.0.s8 %v494
    %v496 = vlaneseq
    %v497 = vshrl.u32 %v496, 7
    %v498 = vsub.s32 %v495, %v497
    %v499 = vrot.slane %v440, %v498
    %v501 = vunpack.c.l.s4 1966171168
    %v502 = vunpack.c.0.s8 %v501
    %v503 = vlaneseq
    %v504 = vshrl.u32 %v503, 7
    %v505 = vsub.s32 %v502, %v504
    %v506 = vrot.slane %v492, %v505
    %v507 = vcombine.high %v499, %v499
    %v508 = vcombine.high %v506, %v506
    %v510 = vunpack.c.l.s4 1966171168
    %v511 = vunpack.c.0.s8 %v510
    %v512 = vlaneseq
    %v513 = vshrl.u32 %v512, 7
    %v514 = vsub.s32 %v511, %v513
    %v515 = vrot.slane %v499, %v514
    %v517 = vunpack.c.l.s4 1966171168
    %v518 = vunpack.c.0.s8 %v517
    %v519 = vlaneseq
    %v520 = vshrl.u32 %v519, 7
    %v521 = vsub.s32 %v518, %v520
    %v522 = vrot.slane %v506, %v521
    %v524 = vunpack.c.l.s4 1966171168
    %v525 = vunpack.c.0.s8 %v524
    %v526 = vlaneseq
    %v527 = vshrl.u32 %v526, 7
    %v528 = vsub.s32 %v525, %v527
    %v529 = vrot.slane %v507, %v528
    %v531 = vunpack.c.l.s4 1966171168
    %v532 = vunpack.c.0.s8 %v531
    %v533 = vlaneseq
    %v534 = vshrl.u32 %v533, 7
    %v535 = vsub.s32 %v532, %v534
    %v536 = vrot.slane %v508, %v535
    %v537 = vcombine.high %v515, %v515
    %v538 = vcombine.high %v522, %v522
    %v539 = vcombine.high %v529, %v529
    %v540 = vcombine.high %v536, %v536
    %v541 = vld [vmem:[%s3] sm:$0xff]
    %v542 = vld [vmem:[%s3 + $0x8] sm:$0xff]
    %v545 = vcombine.high %v541, %v541
    %v547 = vunpack.c.l.s4 1966171168
    %v548 = vunpack.c.0.s8 %v547
    %v549 = vlaneseq
    %v550 = vshrl.u32 %v549, 7
    %v551 = vsub.s32 %v548, %v550
    %v552 = vrot.slane %v541, %v551
    %v554 = vunpack.c.l.s4 1966171168
    %v555 = vunpack.c.0.s8 %v554
    %v556 = vlaneseq
    %v557 = vshrl.u32 %v556, 7
    %v558 = vsub.s32 %v555, %v557
    %v559 = vrot.slane %v545, %v558
    %v560 = vcombine.high %v552, %v552
    %v561 = vcombine.high %v559, %v559
    %v563 = vunpack.c.l.s4 1966171168
    %v564 = vunpack.c.0.s8 %v563
    %v565 = vlaneseq
    %v566 = vshrl.u32 %v565, 7
    %v567 = vsub.s32 %v564, %v566
    %v568 = vrot.slane %v552, %v567
    %v570 = vunpack.c.l.s4 1966171168
    %v571 = vunpack.c.0.s8 %v570
    %v572 = vlaneseq
    %v573 = vshrl.u32 %v572, 7
    %v574 = vsub.s32 %v571, %v573
    %v575 = vrot.slane %v559, %v574
    %v577 = vunpack.c.l.s4 1966171168
    %v578 = vunpack.c.0.s8 %v577
    %v579 = vlaneseq
    %v580 = vshrl.u32 %v579, 7
    %v581 = vsub.s32 %v578, %v580
    %v582 = vrot.slane %v560, %v581
    %v584 = vunpack.c.l.s4 1966171168
    %v585 = vunpack.c.0.s8 %v584
    %v586 = vlaneseq
    %v587 = vshrl.u32 %v586, 7
    %v588 = vsub.s32 %v585, %v587
    %v589 = vrot.slane %v561, %v588
    %v590 = vcombine.high %v568, %v568
    %v591 = vcombine.high %v575, %v575
    %v592 = vcombine.high %v582, %v582
    %v593 = vcombine.high %v589, %v589
    %v594 = vcombine.high %v542, %v542
    %v596 = vunpack.c.l.s4 1966171168
    %v597 = vunpack.c.0.s8 %v596
    %v598 = vlaneseq
    %v599 = vshrl.u32 %v598, 7
    %v600 = vsub.s32 %v597, %v599
    %v601 = vrot.slane %v542, %v600
    %v603 = vunpack.c.l.s4 1966171168
    %v604 = vunpack.c.0.s8 %v603
    %v605 = vlaneseq
    %v606 = vshrl.u32 %v605, 7
    %v607 = vsub.s32 %v604, %v606
    %v608 = vrot.slane %v594, %v607
    %v609 = vcombine.high %v601, %v601
    %v610 = vcombine.high %v608, %v608
    %v612 = vunpack.c.l.s4 1966171168
    %v613 = vunpack.c.0.s8 %v612
    %v614 = vlaneseq
    %v615 = vshrl.u32 %v614, 7
    %v616 = vsub.s32 %v613, %v615
    %v617 = vrot.slane %v601, %v616
    %v619 = vunpack.c.l.s4 1966171168
    %v620 = vunpack.c.0.s8 %v619
    %v621 = vlaneseq
    %v622 = vshrl.u32 %v621, 7
    %v623 = vsub.s32 %v620, %v622
    %v624 = vrot.slane %v608, %v623
    %v626 = vunpack.c.l.s4 1966171168
    %v627 = vunpack.c.0.s8 %v626
    %v628 = vlaneseq
    %v629 = vshrl.u32 %v628, 7
    %v630 = vsub.s32 %v627, %v629
    %v631 = vrot.slane %v609, %v630
    %v633 = vunpack.c.l.s4 1966171168
    %v634 = vunpack.c.0.s8 %v633
    %v635 = vlaneseq
    %v636 = vshrl.u32 %v635, 7
    %v637 = vsub.s32 %v634, %v636
    %v638 = vrot.slane %v610, %v637
    %v639 = vcombine.high %v617, %v617
    %v640 = vcombine.high %v624, %v624
    %v641 = vcombine.high %v631, %v631
    %v642 = vcombine.high %v638, %v638
    %v643 = vlaneseq
    %v644 = vshrl.u32 %v643, 7
    %v645 = vsub.s32 0, %v644
    %v646 = vrot.slane %v568, %v645
    %v647 = vlaneseq
    %v648 = vshrl.u32 %v647, 7
    %v649 = vsub.s32 0, %v648
    %v650 = vrot.slane %v582, %v649
    %v651 = vlaneseq
    %v652 = vshrl.u32 %v651, 7
    %v653 = vsub.s32 0, %v652
    %v654 = vrot.slane %v590, %v653
    %v655 = vlaneseq
    %v656 = vshrl.u32 %v655, 7
    %v657 = vsub.s32 0, %v656
    %v658 = vrot.slane %v592, %v657
    %v659 = vlaneseq
    %v660 = vshrl.u32 %v659, 7
    %v661 = vsub.s32 0, %v660
    %v662 = vrot.slane %v575, %v661
    %v663 = vlaneseq
    %v664 = vshrl.u32 %v663, 7
    %v665 = vsub.s32 0, %v664
    %v666 = vrot.slane %v589, %v665
    %v667 = vlaneseq
    %v668 = vshrl.u32 %v667, 7
    %v669 = vsub.s32 0, %v668
    %v670 = vrot.slane %v591, %v669
    %v671 = vlaneseq
    %v672 = vshrl.u32 %v671, 7
    %v673 = vsub.s32 0, %v672
    %v674 = vrot.slane %v593, %v673
    %v675 = vlaneseq
    %v676 = vshrl.u32 %v675, 7
    %v677 = vsub.s32 0, %v676
    %v678 = vrot.slane %v617, %v677
    %v679 = vlaneseq
    %v680 = vshrl.u32 %v679, 7
    %v681 = vsub.s32 0, %v680
    %v682 = vrot.slane %v631, %v681
    %v683 = vlaneseq
    %v684 = vshrl.u32 %v683, 7
    %v685 = vsub.s32 0, %v684
    %v686 = vrot.slane %v639, %v685
    %v687 = vlaneseq
    %v688 = vshrl.u32 %v687, 7
    %v689 = vsub.s32 0, %v688
    %v690 = vrot.slane %v641, %v689
    %v691 = vlaneseq
    %v692 = vshrl.u32 %v691, 7
    %v693 = vsub.s32 0, %v692
    %v694 = vrot.slane %v624, %v693
    %v695 = vlaneseq
    %v696 = vshrl.u32 %v695, 7
    %v697 = vsub.s32 0, %v696
    %v698 = vrot.slane %v638, %v697
    %v699 = vlaneseq
    %v700 = vshrl.u32 %v699, 7
    %v701 = vsub.s32 0, %v700
    %v702 = vrot.slane %v640, %v701
    %v703 = vlaneseq
    %v704 = vshrl.u32 %v703, 7
    %v705 = vsub.s32 0, %v704
    %v706 = vrot.slane %v642, %v705
    %707 = vset.pattern.permute.xlu0 0
    %708 = vperm.xlu0 %707, %v646
    %v709 = vpop.permute.xlu0 %708
    %711 = vset.pattern.permute.xlu0 0
    %712 = vperm.xlu0 %711, %v650
    %v713 = vpop.permute.xlu0 %712
    %715 = vset.pattern.permute.xlu0 0
    %716 = vperm.xlu0 %715, %v654
    %v717 = vpop.permute.xlu0 %716
    %719 = vset.pattern.permute.xlu0 0
    %720 = vperm.xlu0 %719, %v658
    %v721 = vpop.permute.xlu0 %720
    %723 = vset.pattern.permute.xlu0 0
    %724 = vperm.xlu0 %723, %v662
    %v725 = vpop.permute.xlu0 %724
    %727 = vset.pattern.permute.xlu0 0
    %728 = vperm.xlu0 %727, %v666
    %v729 = vpop.permute.xlu0 %728
    %731 = vset.pattern.permute.xlu0 0
    %732 = vperm.xlu0 %731, %v670
    %v733 = vpop.permute.xlu0 %732
    %735 = vset.pattern.permute.xlu0 0
    %736 = vperm.xlu0 %735, %v674
    %v737 = vpop.permute.xlu0 %736
    %739 = vset.pattern.permute.xlu0 0
    %740 = vperm.xlu0 %739, %v678
    %v741 = vpop.permute.xlu0 %740
    %743 = vset.pattern.permute.xlu0 0
    %744 = vperm.xlu0 %743, %v682
    %v745 = vpop.permute.xlu0 %744
    %747 = vset.pattern.permute.xlu0 0
    %748 = vperm.xlu0 %747, %v686
    %v749 = vpop.permute.xlu0 %748
    %751 = vset.pattern.permute.xlu0 0
    %752 = vperm.xlu0 %751, %v690
    %v753 = vpop.permute.xlu0 %752
    %755 = vset.pattern.permute.xlu0 0
    %756 = vperm.xlu0 %755, %v694
    %v757 = vpop.permute.xlu0 %756
    %759 = vset.pattern.permute.xlu0 0
    %760 = vperm.xlu0 %759, %v698
    %v761 = vpop.permute.xlu0 %760
    %763 = vset.pattern.permute.xlu0 0
    %764 = vperm.xlu0 %763, %v702
    %v765 = vpop.permute.xlu0 %764
    %767 = vset.pattern.permute.xlu0 0
    %768 = vperm.xlu0 %767, %v706
    %v769 = vpop.permute.xlu0 %768
    %v771 = vmul.f32 %v709, %v431
    %v772 = vmul.f32 %v713, %v431
    %v773 = vmul.f32 %v717, %v431
    %v774 = vmul.f32 %v721, %v431
    %v775 = vmul.f32 %v725, %v431
    %v776 = vmul.f32 %v729, %v431
    %v777 = vmul.f32 %v733, %v431
    %v778 = vmul.f32 %v737, %v431
    %v779 = vmul.f32 %v741, %v431
    %v780 = vmul.f32 %v745, %v431
    %v781 = vmul.f32 %v749, %v431
    %v782 = vmul.f32 %v753, %v431
    %v783 = vmul.f32 %v757, %v431
    %v784 = vmul.f32 %v761, %v431
    %v785 = vmul.f32 %v765, %v431
    %v786 = vmul.f32 %v769, %v431
    %v787 = vlaneseq
    %v788 = vshrl.u32 %v787, 7
    %v789 = vsub.s32 0, %v788
    %v790 = vrot.slane %v466, %v789
    %v791 = vlaneseq
    %v792 = vshrl.u32 %v791, 7
    %v793 = vsub.s32 0, %v792
    %v794 = vrot.slane %v480, %v793
    %v795 = vlaneseq
    %v796 = vshrl.u32 %v795, 7
    %v797 = vsub.s32 0, %v796
    %v798 = vrot.slane %v488, %v797
    %v799 = vlaneseq
    %v800 = vshrl.u32 %v799, 7
    %v801 = vsub.s32 0, %v800
    %v802 = vrot.slane %v490, %v801
    %v803 = vlaneseq
    %v804 = vshrl.u32 %v803, 7
    %v805 = vsub.s32 0, %v804
    %v806 = vrot.slane %v473, %v805
    %v807 = vlaneseq
    %v808 = vshrl.u32 %v807, 7
    %v809 = vsub.s32 0, %v808
    %v810 = vrot.slane %v487, %v809
    %v811 = vlaneseq
    %v812 = vshrl.u32 %v811, 7
    %v813 = vsub.s32 0, %v812
    %v814 = vrot.slane %v489, %v813
    %v815 = vlaneseq
    %v816 = vshrl.u32 %v815, 7
    %v817 = vsub.s32 0, %v816
    %v818 = vrot.slane %v491, %v817
    %v819 = vlaneseq
    %v820 = vshrl.u32 %v819, 7
    %v821 = vsub.s32 0, %v820
    %v822 = vrot.slane %v515, %v821
    %v823 = vlaneseq
    %v824 = vshrl.u32 %v823, 7
    %v825 = vsub.s32 0, %v824
    %v826 = vrot.slane %v529, %v825
    %v827 = vlaneseq
    %v828 = vshrl.u32 %v827, 7
    %v829 = vsub.s32 0, %v828
    %v830 = vrot.slane %v537, %v829
    %v831 = vlaneseq
    %v832 = vshrl.u32 %v831, 7
    %v833 = vsub.s32 0, %v832
    %v834 = vrot.slane %v539, %v833
    %v835 = vlaneseq
    %v836 = vshrl.u32 %v835, 7
    %v837 = vsub.s32 0, %v836
    %v838 = vrot.slane %v522, %v837
    %v839 = vlaneseq
    %v840 = vshrl.u32 %v839, 7
    %v841 = vsub.s32 0, %v840
    %v842 = vrot.slane %v536, %v841
    %v843 = vlaneseq
    %v844 = vshrl.u32 %v843, 7
    %v845 = vsub.s32 0, %v844
    %v846 = vrot.slane %v538, %v845
    %v847 = vlaneseq
    %v848 = vshrl.u32 %v847, 7
    %v849 = vsub.s32 0, %v848
    %v850 = vrot.slane %v540, %v849
    %851 = vset.pattern.permute.xlu0 0
    %852 = vperm.xlu0 %851, %v790
    %v853 = vpop.permute.xlu0 %852
    %855 = vset.pattern.permute.xlu0 0
    %856 = vperm.xlu0 %855, %v794
    %v857 = vpop.permute.xlu0 %856
    %859 = vset.pattern.permute.xlu0 0
    %860 = vperm.xlu0 %859, %v798
    %v861 = vpop.permute.xlu0 %860
    %863 = vset.pattern.permute.xlu0 0
    %864 = vperm.xlu0 %863, %v802
    %v865 = vpop.permute.xlu0 %864
    %867 = vset.pattern.permute.xlu0 0
    %868 = vperm.xlu0 %867, %v806
    %v869 = vpop.permute.xlu0 %868
    %871 = vset.pattern.permute.xlu0 0
    %872 = vperm.xlu0 %871, %v810
    %v873 = vpop.permute.xlu0 %872
    %875 = vset.pattern.permute.xlu0 0
    %876 = vperm.xlu0 %875, %v814
    %v877 = vpop.permute.xlu0 %876
    %879 = vset.pattern.permute.xlu0 0
    %880 = vperm.xlu0 %879, %v818
    %v881 = vpop.permute.xlu0 %880
    %883 = vset.pattern.permute.xlu0 0
    %884 = vperm.xlu0 %883, %v822
    %v885 = vpop.permute.xlu0 %884
    %887 = vset.pattern.permute.xlu0 0
    %888 = vperm.xlu0 %887, %v826
    %v889 = vpop.permute.xlu0 %888
    %891 = vset.pattern.permute.xlu0 0
    %892 = vperm.xlu0 %891, %v830
    %v893 = vpop.permute.xlu0 %892
    %895 = vset.pattern.permute.xlu0 0
    %896 = vperm.xlu0 %895, %v834
    %v897 = vpop.permute.xlu0 %896
    %899 = vset.pattern.permute.xlu0 0
    %900 = vperm.xlu0 %899, %v838
    %v901 = vpop.permute.xlu0 %900
    %903 = vset.pattern.permute.xlu0 0
    %904 = vperm.xlu0 %903, %v842
    %v905 = vpop.permute.xlu0 %904
    %907 = vset.pattern.permute.xlu0 0
    %908 = vperm.xlu0 %907, %v846
    %v909 = vpop.permute.xlu0 %908
    %911 = vset.pattern.permute.xlu0 0
    %912 = vperm.xlu0 %911, %v850
    %v913 = vpop.permute.xlu0 %912
    %v915 = vadd.f32 %v853, %v771
    %v916 = vadd.f32 %v857, %v772
    %v917 = vadd.f32 %v861, %v773
    %v918 = vadd.f32 %v865, %v774
    %v919 = vadd.f32 %v869, %v775
    %v920 = vadd.f32 %v873, %v776
    %v921 = vadd.f32 %v877, %v777
    %v922 = vadd.f32 %v881, %v778
    %v923 = vadd.f32 %v885, %v779
    %v924 = vadd.f32 %v889, %v780
    %v925 = vadd.f32 %v893, %v781
    %v926 = vadd.f32 %v897, %v782
    %v927 = vadd.f32 %v901, %v783
    %v928 = vadd.f32 %v905, %v784
    %v929 = vadd.f32 %v909, %v785
    %v930 = vadd.f32 %v913, %v786
    %v931 = vld [vmem:[%s4] sm:$0xff]
    %v932 = vld [vmem:[%s4 + $0x8] sm:$0xff]
    %v935 = vcombine.high %v931, %v931
    %v937 = vunpack.c.l.s4 1966171168
    %v938 = vunpack.c.0.s8 %v937
    %v939 = vlaneseq
    %v940 = vshrl.u32 %v939, 7
    %v941 = vsub.s32 %v938, %v940
    %v942 = vrot.slane %v931, %v941
    %v944 = vunpack.c.l.s4 1966171168
    %v945 = vunpack.c.0.s8 %v944
    %v946 = vlaneseq
    %v947 = vshrl.u32 %v946, 7
    %v948 = vsub.s32 %v945, %v947
    %v949 = vrot.slane %v935, %v948
    %v950 = vcombine.high %v942, %v942
    %v951 = vcombine.high %v949, %v949
    %v953 = vunpack.c.l.s4 1966171168
    %v954 = vunpack.c.0.s8 %v953
    %v955 = vlaneseq
    %v956 = vshrl.u32 %v955, 7
    %v957 = vsub.s32 %v954, %v956
    %v958 = vrot.slane %v942, %v957
    %v960 = vunpack.c.l.s4 1966171168
    %v961 = vunpack.c.0.s8 %v960
    %v962 = vlaneseq
    %v963 = vshrl.u32 %v962, 7
    %v964 = vsub.s32 %v961, %v963
    %v965 = vrot.slane %v949, %v964
    %v967 = vunpack.c.l.s4 1966171168
    %v968 = vunpack.c.0.s8 %v967
    %v969 = vlaneseq
    %v970 = vshrl.u32 %v969, 7
    %v971 = vsub.s32 %v968, %v970
    %v972 = vrot.slane %v950, %v971
    %v974 = vunpack.c.l.s4 1966171168
    %v975 = vunpack.c.0.s8 %v974
    %v976 = vlaneseq
    %v977 = vshrl.u32 %v976, 7
    %v978 = vsub.s32 %v975, %v977
    %v979 = vrot.slane %v951, %v978
    %v980 = vcombine.high %v958, %v958
    %v981 = vcombine.high %v965, %v965
    %v982 = vcombine.high %v972, %v972
    %v983 = vcombine.high %v979, %v979
    %v984 = vcombine.high %v932, %v932
    %v986 = vunpack.c.l.s4 1966171168
    %v987 = vunpack.c.0.s8 %v986
    %v988 = vlaneseq
    %v989 = vshrl.u32 %v988, 7
    %v990 = vsub.s32 %v987, %v989
    %v991 = vrot.slane %v932, %v990
    %v993 = vunpack.c.l.s4 1966171168
    %v994 = vunpack.c.0.s8 %v993
    %v995 = vlaneseq
    %v996 = vshrl.u32 %v995, 7
    %v997 = vsub.s32 %v994, %v996
    %v998 = vrot.slane %v984, %v997
    %v999 = vcombine.high %v991, %v991
    %v1000 = vcombine.high %v998, %v998
    %v1002 = vunpack.c.l.s4 1966171168
    %v1003 = vunpack.c.0.s8 %v1002
    %v1004 = vlaneseq
    %v1005 = vshrl.u32 %v1004, 7
    %v1006 = vsub.s32 %v1003, %v1005
    %v1007 = vrot.slane %v991, %v1006
    %v1009 = vunpack.c.l.s4 1966171168
    %v1010 = vunpack.c.0.s8 %v1009
    %v1011 = vlaneseq
    %v1012 = vshrl.u32 %v1011, 7
    %v1013 = vsub.s32 %v1010, %v1012
    %v1014 = vrot.slane %v998, %v1013
    %v1016 = vunpack.c.l.s4 1966171168
    %v1017 = vunpack.c.0.s8 %v1016
    %v1018 = vlaneseq
    %v1019 = vshrl.u32 %v1018, 7
    %v1020 = vsub.s32 %v1017, %v1019
    %v1021 = vrot.slane %v999, %v1020
    %v1023 = vunpack.c.l.s4 1966171168
    %v1024 = vunpack.c.0.s8 %v1023
    %v1025 = vlaneseq
    %v1026 = vshrl.u32 %v1025, 7
    %v1027 = vsub.s32 %v1024, %v1026
    %v1028 = vrot.slane %v1000, %v1027
    %v1029 = vcombine.high %v1007, %v1007
    %v1030 = vcombine.high %v1014, %v1014
    %v1031 = vcombine.high %v1021, %v1021
    %v1032 = vcombine.high %v1028, %v1028
    %v1033 = vlaneseq
    %v1034 = vshrl.u32 %v1033, 7
    %v1035 = vsub.s32 0, %v1034
    %v1036 = vrot.slane %v958, %v1035
    %v1037 = vlaneseq
    %v1038 = vshrl.u32 %v1037, 7
    %v1039 = vsub.s32 0, %v1038
    %v1040 = vrot.slane %v972, %v1039
    %v1041 = vlaneseq
    %v1042 = vshrl.u32 %v1041, 7
    %v1043 = vsub.s32 0, %v1042
    %v1044 = vrot.slane %v980, %v1043
    %v1045 = vlaneseq
    %v1046 = vshrl.u32 %v1045, 7
    %v1047 = vsub.s32 0, %v1046
    %v1048 = vrot.slane %v982, %v1047
    %v1049 = vlaneseq
    %v1050 = vshrl.u32 %v1049, 7
    %v1051 = vsub.s32 0, %v1050
    %v1052 = vrot.slane %v965, %v1051
    %v1053 = vlaneseq
    %v1054 = vshrl.u32 %v1053, 7
    %v1055 = vsub.s32 0, %v1054
    %v1056 = vrot.slane %v979, %v1055
    %v1057 = vlaneseq
    %v1058 = vshrl.u32 %v1057, 7
    %v1059 = vsub.s32 0, %v1058
    %v1060 = vrot.slane %v981, %v1059
    %v1061 = vlaneseq
    %v1062 = vshrl.u32 %v1061, 7
    %v1063 = vsub.s32 0, %v1062
    %v1064 = vrot.slane %v983, %v1063
    %v1065 = vlaneseq
    %v1066 = vshrl.u32 %v1065, 7
    %v1067 = vsub.s32 0, %v1066
    %v1068 = vrot.slane %v1007, %v1067
    %v1069 = vlaneseq
    %v1070 = vshrl.u32 %v1069, 7
    %v1071 = vsub.s32 0, %v1070
    %v1072 = vrot.slane %v1021, %v1071
    %v1073 = vlaneseq
    %v1074 = vshrl.u32 %v1073, 7
    %v1075 = vsub.s32 0, %v1074
    %v1076 = vrot.slane %v1029, %v1075
    %v1077 = vlaneseq
    %v1078 = vshrl.u32 %v1077, 7
    %v1079 = vsub.s32 0, %v1078
    %v1080 = vrot.slane %v1031, %v1079
    %v1081 = vlaneseq
    %v1082 = vshrl.u32 %v1081, 7
    %v1083 = vsub.s32 0, %v1082
    %v1084 = vrot.slane %v1014, %v1083
    %v1085 = vlaneseq
    %v1086 = vshrl.u32 %v1085, 7
    %v1087 = vsub.s32 0, %v1086
    %v1088 = vrot.slane %v1028, %v1087
    %v1089 = vlaneseq
    %v1090 = vshrl.u32 %v1089, 7
    %v1091 = vsub.s32 0, %v1090
    %v1092 = vrot.slane %v1030, %v1091
    %v1093 = vlaneseq
    %v1094 = vshrl.u32 %v1093, 7
    %v1095 = vsub.s32 0, %v1094
    %v1096 = vrot.slane %v1032, %v1095
    %1097 = vset.pattern.permute.xlu0 0
    %1098 = vperm.xlu0 %1097, %v1036
    %v1099 = vpop.permute.xlu0 %1098
    %1101 = vset.pattern.permute.xlu0 0
    %1102 = vperm.xlu0 %1101, %v1040
    %v1103 = vpop.permute.xlu0 %1102
    %1105 = vset.pattern.permute.xlu0 0
    %1106 = vperm.xlu0 %1105, %v1044
    %v1107 = vpop.permute.xlu0 %1106
    %1109 = vset.pattern.permute.xlu0 0
    %1110 = vperm.xlu0 %1109, %v1048
    %v1111 = vpop.permute.xlu0 %1110
    %1113 = vset.pattern.permute.xlu0 0
    %1114 = vperm.xlu0 %1113, %v1052
    %v1115 = vpop.permute.xlu0 %1114
    %1117 = vset.pattern.permute.xlu0 0
    %1118 = vperm.xlu0 %1117, %v1056
    %v1119 = vpop.permute.xlu0 %1118
    %1121 = vset.pattern.permute.xlu0 0
    %1122 = vperm.xlu0 %1121, %v1060
    %v1123 = vpop.permute.xlu0 %1122
    %1125 = vset.pattern.permute.xlu0 0
    %1126 = vperm.xlu0 %1125, %v1064
    %v1127 = vpop.permute.xlu0 %1126
    %1129 = vset.pattern.permute.xlu0 0
    %1130 = vperm.xlu0 %1129, %v1068
    %v1131 = vpop.permute.xlu0 %1130
    %1133 = vset.pattern.permute.xlu0 0
    %1134 = vperm.xlu0 %1133, %v1072
    %v1135 = vpop.permute.xlu0 %1134
    %1137 = vset.pattern.permute.xlu0 0
    %1138 = vperm.xlu0 %1137, %v1076
    %v1139 = vpop.permute.xlu0 %1138
    %1141 = vset.pattern.permute.xlu0 0
    %1142 = vperm.xlu0 %1141, %v1080
    %v1143 = vpop.permute.xlu0 %1142
    %1145 = vset.pattern.permute.xlu0 0
    %1146 = vperm.xlu0 %1145, %v1084
    %v1147 = vpop.permute.xlu0 %1146
    %1149 = vset.pattern.permute.xlu0 0
    %1150 = vperm.xlu0 %1149, %v1088
    %v1151 = vpop.permute.xlu0 %1150
    %1153 = vset.pattern.permute.xlu0 0
    %1154 = vperm.xlu0 %1153, %v1092
    %v1155 = vpop.permute.xlu0 %1154
    %1157 = vset.pattern.permute.xlu0 0
    %1158 = vperm.xlu0 %1157, %v1096
    %v1159 = vpop.permute.xlu0 %1158
    %v1161 = vmul.f32 %v1099, %v431
    %v1162 = vmul.f32 %v1103, %v431
    %v1163 = vmul.f32 %v1107, %v431
    %v1164 = vmul.f32 %v1111, %v431
    %v1165 = vmul.f32 %v1115, %v431
    %v1166 = vmul.f32 %v1119, %v431
    %v1167 = vmul.f32 %v1123, %v431
    %v1168 = vmul.f32 %v1127, %v431
    %v1169 = vmul.f32 %v1131, %v431
    %v1170 = vmul.f32 %v1135, %v431
    %v1171 = vmul.f32 %v1139, %v431
    %v1172 = vmul.f32 %v1143, %v431
    %v1173 = vmul.f32 %v1147, %v431
    %v1174 = vmul.f32 %v1151, %v431
    %v1175 = vmul.f32 %v1155, %v431
    %v1176 = vmul.f32 %v1159, %v431
    %1193 = vrot.lane.b32.xlu0 %v1161, 127
    %v1194 = vpop.permute.xlu0 %1193
    %1195 = vrot.lane.b32.xlu0 %v1162, 127
    %v1196 = vpop.permute.xlu0 %1195
    %1197 = vrot.lane.b32.xlu0 %v1163, 127
    %v1198 = vpop.permute.xlu0 %1197
    %1199 = vrot.lane.b32.xlu0 %v1164, 127
    %v1200 = vpop.permute.xlu0 %1199
    %1201 = vrot.lane.b32.xlu0 %v1165, 127
    %v1202 = vpop.permute.xlu0 %1201
    %1203 = vrot.lane.b32.xlu0 %v1166, 127
    %v1204 = vpop.permute.xlu0 %1203
    %1205 = vrot.lane.b32.xlu0 %v1167, 127
    %v1206 = vpop.permute.xlu0 %1205
    %1207 = vrot.lane.b32.xlu0 %v1168, 127
    %v1208 = vpop.permute.xlu0 %1207
    %1209 = vrot.lane.b32.xlu0 %v1169, 127
    %v1210 = vpop.permute.xlu0 %1209
    %1211 = vrot.lane.b32.xlu0 %v1170, 127
    %v1212 = vpop.permute.xlu0 %1211
    %1213 = vrot.lane.b32.xlu0 %v1171, 127
    %v1214 = vpop.permute.xlu0 %1213
    %1215 = vrot.lane.b32.xlu0 %v1172, 127
    %v1216 = vpop.permute.xlu0 %1215
    %1217 = vrot.lane.b32.xlu0 %v1173, 127
    %v1218 = vpop.permute.xlu0 %1217
    %1219 = vrot.lane.b32.xlu0 %v1174, 127
    %v1220 = vpop.permute.xlu0 %1219
    %1221 = vrot.lane.b32.xlu0 %v1175, 127
    %v1222 = vpop.permute.xlu0 %1221
    %1223 = vrot.lane.b32.xlu0 %v1176, 127
    %v1224 = vpop.permute.xlu0 %1223
    %v1241 = vadd.f32 %v915, %v1194
    %v1242 = vadd.f32 %v916, %v1196
    %v1243 = vadd.f32 %v917, %v1198
    %v1244 = vadd.f32 %v918, %v1200
    %v1245 = vadd.f32 %v919, %v1202
    %v1246 = vadd.f32 %v920, %v1204
    %v1247 = vadd.f32 %v921, %v1206
    %v1248 = vadd.f32 %v922, %v1208
    %v1249 = vadd.f32 %v923, %v1210
    %v1250 = vadd.f32 %v924, %v1212
    %v1251 = vadd.f32 %v925, %v1214
    %v1252 = vadd.f32 %v926, %v1216
    %v1253 = vadd.f32 %v927, %v1218
    %v1254 = vadd.f32 %v928, %v1220
    %v1255 = vadd.f32 %v929, %v1222
    %v1256 = vadd.f32 %v930, %v1224
    %s1257 = scalar_lea.vmem %s3, 16
    %v1258 = vld [vmem:[%s1257] sm:$0xff]
    %v1259 = vld [vmem:[%s1257 + $0x8] sm:$0xff]
    %v1262 = vcombine.high %v1258, %v1258
    %v1264 = vunpack.c.l.s4 1966171168
    %v1265 = vunpack.c.0.s8 %v1264
    %v1266 = vlaneseq
    %v1267 = vshrl.u32 %v1266, 7
    %v1268 = vsub.s32 %v1265, %v1267
    %v1269 = vrot.slane %v1258, %v1268
    %v1271 = vunpack.c.l.s4 1966171168
    %v1272 = vunpack.c.0.s8 %v1271
    %v1273 = vlaneseq
    %v1274 = vshrl.u32 %v1273, 7
    %v1275 = vsub.s32 %v1272, %v1274
    %v1276 = vrot.slane %v1262, %v1275
    %v1277 = vcombine.high %v1269, %v1269
    %v1278 = vcombine.high %v1276, %v1276
    %v1280 = vunpack.c.l.s4 1966171168
    %v1281 = vunpack.c.0.s8 %v1280
    %v1282 = vlaneseq
    %v1283 = vshrl.u32 %v1282, 7
    %v1284 = vsub.s32 %v1281, %v1283
    %v1285 = vrot.slane %v1269, %v1284
    %v1287 = vunpack.c.l.s4 1966171168
    %v1288 = vunpack.c.0.s8 %v1287
    %v1289 = vlaneseq
    %v1290 = vshrl.u32 %v1289, 7
    %v1291 = vsub.s32 %v1288, %v1290
    %v1292 = vrot.slane %v1276, %v1291
    %v1294 = vunpack.c.l.s4 1966171168
    %v1295 = vunpack.c.0.s8 %v1294
    %v1296 = vlaneseq
    %v1297 = vshrl.u32 %v1296, 7
    %v1298 = vsub.s32 %v1295, %v1297
    %v1299 = vrot.slane %v1277, %v1298
    %v1301 = vunpack.c.l.s4 1966171168
    %v1302 = vunpack.c.0.s8 %v1301
    %v1303 = vlaneseq
    %v1304 = vshrl.u32 %v1303, 7
    %v1305 = vsub.s32 %v1302, %v1304
    %v1306 = vrot.slane %v1278, %v1305
    %v1307 = vcombine.high %v1285, %v1285
    %v1308 = vcombine.high %v1292, %v1292
    %v1309 = vcombine.high %v1299, %v1299
    %v1310 = vcombine.high %v1306, %v1306
    %v1311 = vcombine.high %v1259, %v1259
    %v1313 = vunpack.c.l.s4 1966171168
    %v1314 = vunpack.c.0.s8 %v1313
    %v1315 = vlaneseq
    %v1316 = vshrl.u32 %v1315, 7
    %v1317 = vsub.s32 %v1314, %v1316
    %v1318 = vrot.slane %v1259, %v1317
    %v1320 = vunpack.c.l.s4 1966171168
    %v1321 = vunpack.c.0.s8 %v1320
    %v1322 = vlaneseq
    %v1323 = vshrl.u32 %v1322, 7
    %v1324 = vsub.s32 %v1321, %v1323
    %v1325 = vrot.slane %v1311, %v1324
    %v1326 = vcombine.high %v1318, %v1318
    %v1327 = vcombine.high %v1325, %v1325
    %v1329 = vunpack.c.l.s4 1966171168
    %v1330 = vunpack.c.0.s8 %v1329
    %v1331 = vlaneseq
    %v1332 = vshrl.u32 %v1331, 7
    %v1333 = vsub.s32 %v1330, %v1332
    %v1334 = vrot.slane %v1318, %v1333
    %v1336 = vunpack.c.l.s4 1966171168
    %v1337 = vunpack.c.0.s8 %v1336
    %v1338 = vlaneseq
    %v1339 = vshrl.u32 %v1338, 7
    %v1340 = vsub.s32 %v1337, %v1339
    %v1341 = vrot.slane %v1325, %v1340
    %v1343 = vunpack.c.l.s4 1966171168
    %v1344 = vunpack.c.0.s8 %v1343
    %v1345 = vlaneseq
    %v1346 = vshrl.u32 %v1345, 7
    %v1347 = vsub.s32 %v1344, %v1346
    %v1348 = vrot.slane %v1326, %v1347
    %v1350 = vunpack.c.l.s4 1966171168
    %v1351 = vunpack.c.0.s8 %v1350
    %v1352 = vlaneseq
    %v1353 = vshrl.u32 %v1352, 7
    %v1354 = vsub.s32 %v1351, %v1353
    %v1355 = vrot.slane %v1327, %v1354
    %v1356 = vcombine.high %v1334, %v1334
    %v1357 = vcombine.high %v1341, %v1341
    %v1358 = vcombine.high %v1348, %v1348
    %v1359 = vcombine.high %v1355, %v1355
    %v1360 = vlaneseq
    %v1361 = vshrl.u32 %v1360, 7
    %v1362 = vsub.s32 0, %v1361
    %v1363 = vrot.slane %v1285, %v1362
    %v1364 = vlaneseq
    %v1365 = vshrl.u32 %v1364, 7
    %v1366 = vsub.s32 0, %v1365
    %v1367 = vrot.slane %v1299, %v1366
    %v1368 = vlaneseq
    %v1369 = vshrl.u32 %v1368, 7
    %v1370 = vsub.s32 0, %v1369
    %v1371 = vrot.slane %v1307, %v1370
    %v1372 = vlaneseq
    %v1373 = vshrl.u32 %v1372, 7
    %v1374 = vsub.s32 0, %v1373
    %v1375 = vrot.slane %v1309, %v1374
    %v1376 = vlaneseq
    %v1377 = vshrl.u32 %v1376, 7
    %v1378 = vsub.s32 0, %v1377
    %v1379 = vrot.slane %v1292, %v1378
    %v1380 = vlaneseq
    %v1381 = vshrl.u32 %v1380, 7
    %v1382 = vsub.s32 0, %v1381
    %v1383 = vrot.slane %v1306, %v1382
    %v1384 = vlaneseq
    %v1385 = vshrl.u32 %v1384, 7
    %v1386 = vsub.s32 0, %v1385
    %v1387 = vrot.slane %v1308, %v1386
    %v1388 = vlaneseq
    %v1389 = vshrl.u32 %v1388, 7
    %v1390 = vsub.s32 0, %v1389
    %v1391 = vrot.slane %v1310, %v1390
    %v1392 = vlaneseq
    %v1393 = vshrl.u32 %v1392, 7
    %v1394 = vsub.s32 0, %v1393
    %v1395 = vrot.slane %v1334, %v1394
    %v1396 = vlaneseq
    %v1397 = vshrl.u32 %v1396, 7
    %v1398 = vsub.s32 0, %v1397
    %v1399 = vrot.slane %v1348, %v1398
    %v1400 = vlaneseq
    %v1401 = vshrl.u32 %v1400, 7
    %v1402 = vsub.s32 0, %v1401
    %v1403 = vrot.slane %v1356, %v1402
    %v1404 = vlaneseq
    %v1405 = vshrl.u32 %v1404, 7
    %v1406 = vsub.s32 0, %v1405
    %v1407 = vrot.slane %v1358, %v1406
    %v1408 = vlaneseq
    %v1409 = vshrl.u32 %v1408, 7
    %v1410 = vsub.s32 0, %v1409
    %v1411 = vrot.slane %v1341, %v1410
    %v1412 = vlaneseq
    %v1413 = vshrl.u32 %v1412, 7
    %v1414 = vsub.s32 0, %v1413
    %v1415 = vrot.slane %v1355, %v1414
    %v1416 = vlaneseq
    %v1417 = vshrl.u32 %v1416, 7
    %v1418 = vsub.s32 0, %v1417
    %v1419 = vrot.slane %v1357, %v1418
    %v1420 = vlaneseq
    %v1421 = vshrl.u32 %v1420, 7
    %v1422 = vsub.s32 0, %v1421
    %v1423 = vrot.slane %v1359, %v1422
    %1424 = vset.pattern.permute.xlu0 0
    %1425 = vperm.xlu0 %1424, %v1363
    %v1426 = vpop.permute.xlu0 %1425
    %1428 = vset.pattern.permute.xlu0 0
    %1429 = vperm.xlu0 %1428, %v1367
    %v1430 = vpop.permute.xlu0 %1429
    %1432 = vset.pattern.permute.xlu0 0
    %1433 = vperm.xlu0 %1432, %v1371
    %v1434 = vpop.permute.xlu0 %1433
    %1436 = vset.pattern.permute.xlu0 0
    %1437 = vperm.xlu0 %1436, %v1375
    %v1438 = vpop.permute.xlu0 %1437
    %1440 = vset.pattern.permute.xlu0 0
    %1441 = vperm.xlu0 %1440, %v1379
    %v1442 = vpop.permute.xlu0 %1441
    %1444 = vset.pattern.permute.xlu0 0
    %1445 = vperm.xlu0 %1444, %v1383
    %v1446 = vpop.permute.xlu0 %1445
    %1448 = vset.pattern.permute.xlu0 0
    %1449 = vperm.xlu0 %1448, %v1387
    %v1450 = vpop.permute.xlu0 %1449
    %1452 = vset.pattern.permute.xlu0 0
    %1453 = vperm.xlu0 %1452, %v1391
    %v1454 = vpop.permute.xlu0 %1453
    %1456 = vset.pattern.permute.xlu0 0
    %1457 = vperm.xlu0 %1456, %v1395
    %v1458 = vpop.permute.xlu0 %1457
    %1460 = vset.pattern.permute.xlu0 0
    %1461 = vperm.xlu0 %1460, %v1399
    %v1462 = vpop.permute.xlu0 %1461
    %1464 = vset.pattern.permute.xlu0 0
    %1465 = vperm.xlu0 %1464, %v1403
    %v1466 = vpop.permute.xlu0 %1465
    %1468 = vset.pattern.permute.xlu0 0
    %1469 = vperm.xlu0 %1468, %v1407
    %v1470 = vpop.permute.xlu0 %1469
    %1472 = vset.pattern.permute.xlu0 0
    %1473 = vperm.xlu0 %1472, %v1411
    %v1474 = vpop.permute.xlu0 %1473
    %1476 = vset.pattern.permute.xlu0 0
    %1477 = vperm.xlu0 %1476, %v1415
    %v1478 = vpop.permute.xlu0 %1477
    %1480 = vset.pattern.permute.xlu0 0
    %1481 = vperm.xlu0 %1480, %v1419
    %v1482 = vpop.permute.xlu0 %1481
    %1484 = vset.pattern.permute.xlu0 0
    %1485 = vperm.xlu0 %1484, %v1423
    %v1486 = vpop.permute.xlu0 %1485
    %v1488 = vmul.f32 %v1426, %v432
    %v1489 = vmul.f32 %v1430, %v432
    %v1490 = vmul.f32 %v1434, %v432
    %v1491 = vmul.f32 %v1438, %v432
    %v1492 = vmul.f32 %v1442, %v432
    %v1493 = vmul.f32 %v1446, %v432
    %v1494 = vmul.f32 %v1450, %v432
    %v1495 = vmul.f32 %v1454, %v432
    %v1496 = vmul.f32 %v1458, %v432
    %v1497 = vmul.f32 %v1462, %v432
    %v1498 = vmul.f32 %v1466, %v432
    %v1499 = vmul.f32 %v1470, %v432
    %v1500 = vmul.f32 %v1474, %v432
    %v1501 = vmul.f32 %v1478, %v432
    %v1502 = vmul.f32 %v1482, %v432
    %v1503 = vmul.f32 %v1486, %v432
    %v1504 = vadd.f32 %v1241, %v1488
    %v1505 = vadd.f32 %v1242, %v1489
    %v1506 = vadd.f32 %v1243, %v1490
    %v1507 = vadd.f32 %v1244, %v1491
    %v1508 = vadd.f32 %v1245, %v1492
    %v1509 = vadd.f32 %v1246, %v1493
    %v1510 = vadd.f32 %v1247, %v1494
    %v1511 = vadd.f32 %v1248, %v1495
    %v1512 = vadd.f32 %v1249, %v1496
    %v1513 = vadd.f32 %v1250, %v1497
    %v1514 = vadd.f32 %v1251, %v1498
    %v1515 = vadd.f32 %v1252, %v1499
    %v1516 = vadd.f32 %v1253, %v1500
    %v1517 = vadd.f32 %v1254, %v1501
    %v1518 = vadd.f32 %v1255, %v1502
    %v1519 = vadd.f32 %v1256, %v1503
    %s1520 = scalar_lea.vmem %s4, 16
    %v1521 = vld [vmem:[%s1520] sm:$0xff]
    %v1522 = vld [vmem:[%s1520 + $0x8] sm:$0xff]
    %v1525 = vcombine.high %v1521, %v1521
    %v1527 = vunpack.c.l.s4 1966171168
    %v1528 = vunpack.c.0.s8 %v1527
    %v1529 = vlaneseq
    %v1530 = vshrl.u32 %v1529, 7
    %v1531 = vsub.s32 %v1528, %v1530
    %v1532 = vrot.slane %v1521, %v1531
    %v1534 = vunpack.c.l.s4 1966171168
    %v1535 = vunpack.c.0.s8 %v1534
    %v1536 = vlaneseq
    %v1537 = vshrl.u32 %v1536, 7
    %v1538 = vsub.s32 %v1535, %v1537
    %v1539 = vrot.slane %v1525, %v1538
    %v1540 = vcombine.high %v1532, %v1532
    %v1541 = vcombine.high %v1539, %v1539
    %v1543 = vunpack.c.l.s4 1966171168
    %v1544 = vunpack.c.0.s8 %v1543
    %v1545 = vlaneseq
    %v1546 = vshrl.u32 %v1545, 7
    %v1547 = vsub.s32 %v1544, %v1546
    %v1548 = vrot.slane %v1532, %v1547
    %v1550 = vunpack.c.l.s4 1966171168
    %v1551 = vunpack.c.0.s8 %v1550
    %v1552 = vlaneseq
    %v1553 = vshrl.u32 %v1552, 7
    %v1554 = vsub.s32 %v1551, %v1553
    %v1555 = vrot.slane %v1539, %v1554
    %v1557 = vunpack.c.l.s4 1966171168
    %v1558 = vunpack.c.0.s8 %v1557
    %v1559 = vlaneseq
    %v1560 = vshrl.u32 %v1559, 7
    %v1561 = vsub.s32 %v1558, %v1560
    %v1562 = vrot.slane %v1540, %v1561
    %v1564 = vunpack.c.l.s4 1966171168
    %v1565 = vunpack.c.0.s8 %v1564
    %v1566 = vlaneseq
    %v1567 = vshrl.u32 %v1566, 7
    %v1568 = vsub.s32 %v1565, %v1567
    %v1569 = vrot.slane %v1541, %v1568
    %v1570 = vcombine.high %v1548, %v1548
    %v1571 = vcombine.high %v1555, %v1555
    %v1572 = vcombine.high %v1562, %v1562
    %v1573 = vcombine.high %v1569, %v1569
    %v1574 = vcombine.high %v1522, %v1522
    %v1576 = vunpack.c.l.s4 1966171168
    %v1577 = vunpack.c.0.s8 %v1576
    %v1578 = vlaneseq
    %v1579 = vshrl.u32 %v1578, 7
    %v1580 = vsub.s32 %v1577, %v1579
    %v1581 = vrot.slane %v1522, %v1580
    %v1583 = vunpack.c.l.s4 1966171168
    %v1584 = vunpack.c.0.s8 %v1583
    %v1585 = vlaneseq
    %v1586 = vshrl.u32 %v1585, 7
    %v1587 = vsub.s32 %v1584, %v1586
    %v1588 = vrot.slane %v1574, %v1587
    %v1589 = vcombine.high %v1581, %v1581
    %v1590 = vcombine.high %v1588, %v1588
    %v1592 = vunpack.c.l.s4 1966171168
    %v1593 = vunpack.c.0.s8 %v1592
    %v1594 = vlaneseq
    %v1595 = vshrl.u32 %v1594, 7
    %v1596 = vsub.s32 %v1593, %v1595
    %v1597 = vrot.slane %v1581, %v1596
    %v1599 = vunpack.c.l.s4 1966171168
    %v1600 = vunpack.c.0.s8 %v1599
    %v1601 = vlaneseq
    %v1602 = vshrl.u32 %v1601, 7
    %v1603 = vsub.s32 %v1600, %v1602
    %v1604 = vrot.slane %v1588, %v1603
    %v1606 = vunpack.c.l.s4 1966171168
    %v1607 = vunpack.c.0.s8 %v1606
    %v1608 = vlaneseq
    %v1609 = vshrl.u32 %v1608, 7
    %v1610 = vsub.s32 %v1607, %v1609
    %v1611 = vrot.slane %v1589, %v1610
    %v1613 = vunpack.c.l.s4 1966171168
    %v1614 = vunpack.c.0.s8 %v1613
    %v1615 = vlaneseq
    %v1616 = vshrl.u32 %v1615, 7
    %v1617 = vsub.s32 %v1614, %v1616
    %v1618 = vrot.slane %v1590, %v1617
    %v1619 = vcombine.high %v1597, %v1597
    %v1620 = vcombine.high %v1604, %v1604
    %v1621 = vcombine.high %v1611, %v1611
    %v1622 = vcombine.high %v1618, %v1618
    %v1623 = vlaneseq
    %v1624 = vshrl.u32 %v1623, 7
    %v1625 = vsub.s32 0, %v1624
    %v1626 = vrot.slane %v1548, %v1625
    %v1627 = vlaneseq
    %v1628 = vshrl.u32 %v1627, 7
    %v1629 = vsub.s32 0, %v1628
    %v1630 = vrot.slane %v1562, %v1629
    %v1631 = vlaneseq
    %v1632 = vshrl.u32 %v1631, 7
    %v1633 = vsub.s32 0, %v1632
    %v1634 = vrot.slane %v1570, %v1633
    %v1635 = vlaneseq
    %v1636 = vshrl.u32 %v1635, 7
    %v1637 = vsub.s32 0, %v1636
    %v1638 = vrot.slane %v1572, %v1637
    %v1639 = vlaneseq
    %v1640 = vshrl.u32 %v1639, 7
    %v1641 = vsub.s32 0, %v1640
    %v1642 = vrot.slane %v1555, %v1641
    %v1643 = vlaneseq
    %v1644 = vshrl.u32 %v1643, 7
    %v1645 = vsub.s32 0, %v1644
    %v1646 = vrot.slane %v1569, %v1645
    %v1647 = vlaneseq
    %v1648 = vshrl.u32 %v1647, 7
    %v1649 = vsub.s32 0, %v1648
    %v1650 = vrot.slane %v1571, %v1649
    %v1651 = vlaneseq
    %v1652 = vshrl.u32 %v1651, 7
    %v1653 = vsub.s32 0, %v1652
    %v1654 = vrot.slane %v1573, %v1653
    %v1655 = vlaneseq
    %v1656 = vshrl.u32 %v1655, 7
    %v1657 = vsub.s32 0, %v1656
    %v1658 = vrot.slane %v1597, %v1657
    %v1659 = vlaneseq
    %v1660 = vshrl.u32 %v1659, 7
    %v1661 = vsub.s32 0, %v1660
    %v1662 = vrot.slane %v1611, %v1661
    %v1663 = vlaneseq
    %v1664 = vshrl.u32 %v1663, 7
    %v1665 = vsub.s32 0, %v1664
    %v1666 = vrot.slane %v1619, %v1665
    %v1667 = vlaneseq
    %v1668 = vshrl.u32 %v1667, 7
    %v1669 = vsub.s32 0, %v1668
    %v1670 = vrot.slane %v1621, %v1669
    %v1671 = vlaneseq
    %v1672 = vshrl.u32 %v1671, 7
    %v1673 = vsub.s32 0, %v1672
    %v1674 = vrot.slane %v1604, %v1673
    %v1675 = vlaneseq
    %v1676 = vshrl.u32 %v1675, 7
    %v1677 = vsub.s32 0, %v1676
    %v1678 = vrot.slane %v1618, %v1677
    %v1679 = vlaneseq
    %v1680 = vshrl.u32 %v1679, 7
    %v1681 = vsub.s32 0, %v1680
    %v1682 = vrot.slane %v1620, %v1681
    %v1683 = vlaneseq
    %v1684 = vshrl.u32 %v1683, 7
    %v1685 = vsub.s32 0, %v1684
    %v1686 = vrot.slane %v1622, %v1685
    %1687 = vset.pattern.permute.xlu0 0
    %1688 = vperm.xlu0 %1687, %v1626
    %v1689 = vpop.permute.xlu0 %1688
    %1691 = vset.pattern.permute.xlu0 0
    %1692 = vperm.xlu0 %1691, %v1630
    %v1693 = vpop.permute.xlu0 %1692
    %1695 = vset.pattern.permute.xlu0 0
    %1696 = vperm.xlu0 %1695, %v1634
    %v1697 = vpop.permute.xlu0 %1696
    %1699 = vset.pattern.permute.xlu0 0
    %1700 = vperm.xlu0 %1699, %v1638
    %v1701 = vpop.permute.xlu0 %1700
    %1703 = vset.pattern.permute.xlu0 0
    %1704 = vperm.xlu0 %1703, %v1642
    %v1705 = vpop.permute.xlu0 %1704
    %1707 = vset.pattern.permute.xlu0 0
    %1708 = vperm.xlu0 %1707, %v1646
    %v1709 = vpop.permute.xlu0 %1708
    %1711 = vset.pattern.permute.xlu0 0
    %1712 = vperm.xlu0 %1711, %v1650
    %v1713 = vpop.permute.xlu0 %1712
    %1715 = vset.pattern.permute.xlu0 0
    %1716 = vperm.xlu0 %1715, %v1654
    %v1717 = vpop.permute.xlu0 %1716
    %1719 = vset.pattern.permute.xlu0 0
    %1720 = vperm.xlu0 %1719, %v1658
    %v1721 = vpop.permute.xlu0 %1720
    %1723 = vset.pattern.permute.xlu0 0
    %1724 = vperm.xlu0 %1723, %v1662
    %v1725 = vpop.permute.xlu0 %1724
    %1727 = vset.pattern.permute.xlu0 0
    %1728 = vperm.xlu0 %1727, %v1666
    %v1729 = vpop.permute.xlu0 %1728
    %1731 = vset.pattern.permute.xlu0 0
    %1732 = vperm.xlu0 %1731, %v1670
    %v1733 = vpop.permute.xlu0 %1732
    %1735 = vset.pattern.permute.xlu0 0
    %1736 = vperm.xlu0 %1735, %v1674
    %v1737 = vpop.permute.xlu0 %1736
    %1739 = vset.pattern.permute.xlu0 0
    %1740 = vperm.xlu0 %1739, %v1678
    %v1741 = vpop.permute.xlu0 %1740
    %1743 = vset.pattern.permute.xlu0 0
    %1744 = vperm.xlu0 %1743, %v1682
    %v1745 = vpop.permute.xlu0 %1744
    %1747 = vset.pattern.permute.xlu0 0
    %1748 = vperm.xlu0 %1747, %v1686
    %v1749 = vpop.permute.xlu0 %1748
    %v1751 = vmul.f32 %v1689, %v432
    %v1752 = vmul.f32 %v1693, %v432
    %v1753 = vmul.f32 %v1697, %v432
    %v1754 = vmul.f32 %v1701, %v432
    %v1755 = vmul.f32 %v1705, %v432
    %v1756 = vmul.f32 %v1709, %v432
    %v1757 = vmul.f32 %v1713, %v432
    %v1758 = vmul.f32 %v1717, %v432
    %v1759 = vmul.f32 %v1721, %v432
    %v1760 = vmul.f32 %v1725, %v432
    %v1761 = vmul.f32 %v1729, %v432
    %v1762 = vmul.f32 %v1733, %v432
    %v1763 = vmul.f32 %v1737, %v432
    %v1764 = vmul.f32 %v1741, %v432
    %v1765 = vmul.f32 %v1745, %v432
    %v1766 = vmul.f32 %v1749, %v432
    %1783 = vrot.lane.b32.xlu0 %v1751, 127
    %v1784 = vpop.permute.xlu0 %1783
    %1785 = vrot.lane.b32.xlu0 %v1752, 127
    %v1786 = vpop.permute.xlu0 %1785
    %1787 = vrot.lane.b32.xlu0 %v1753, 127
    %v1788 = vpop.permute.xlu0 %1787
    %1789 = vrot.lane.b32.xlu0 %v1754, 127
    %v1790 = vpop.permute.xlu0 %1789
    %1791 = vrot.lane.b32.xlu0 %v1755, 127
    %v1792 = vpop.permute.xlu0 %1791
    %1793 = vrot.lane.b32.xlu0 %v1756, 127
    %v1794 = vpop.permute.xlu0 %1793
    %1795 = vrot.lane.b32.xlu0 %v1757, 127
    %v1796 = vpop.permute.xlu0 %1795
    %1797 = vrot.lane.b32.xlu0 %v1758, 127
    %v1798 = vpop.permute.xlu0 %1797
    %1799 = vrot.lane.b32.xlu0 %v1759, 127
    %v1800 = vpop.permute.xlu0 %1799
    %1801 = vrot.lane.b32.xlu0 %v1760, 127
    %v1802 = vpop.permute.xlu0 %1801
    %1803 = vrot.lane.b32.xlu0 %v1761, 127
    %v1804 = vpop.permute.xlu0 %1803
    %1805 = vrot.lane.b32.xlu0 %v1762, 127
    %v1806 = vpop.permute.xlu0 %1805
    %1807 = vrot.lane.b32.xlu0 %v1763, 127
    %v1808 = vpop.permute.xlu0 %1807
    %1809 = vrot.lane.b32.xlu0 %v1764, 127
    %v1810 = vpop.permute.xlu0 %1809
    %1811 = vrot.lane.b32.xlu0 %v1765, 127
    %v1812 = vpop.permute.xlu0 %1811
    %1813 = vrot.lane.b32.xlu0 %v1766, 127
    %v1814 = vpop.permute.xlu0 %1813
    %v1831 = vadd.f32 %v1504, %v1784
    %v1832 = vadd.f32 %v1505, %v1786
    %v1833 = vadd.f32 %v1506, %v1788
    %v1834 = vadd.f32 %v1507, %v1790
    %v1835 = vadd.f32 %v1508, %v1792
    %v1836 = vadd.f32 %v1509, %v1794
    %v1837 = vadd.f32 %v1510, %v1796
    %v1838 = vadd.f32 %v1511, %v1798
    %v1839 = vadd.f32 %v1512, %v1800
    %v1840 = vadd.f32 %v1513, %v1802
    %v1841 = vadd.f32 %v1514, %v1804
    %v1842 = vadd.f32 %v1515, %v1806
    %v1843 = vadd.f32 %v1516, %v1808
    %v1844 = vadd.f32 %v1517, %v1810
    %v1845 = vadd.f32 %v1518, %v1812
    %v1846 = vadd.f32 %v1519, %v1814
    %s1847 = scalar_lea.vmem %s3, 32
    %v1848 = vld [vmem:[%s1847] sm:$0xff]
    %v1849 = vld [vmem:[%s1847 + $0x8] sm:$0xff]
    %v1852 = vcombine.high %v1848, %v1848
    %v1854 = vunpack.c.l.s4 1966171168
    %v1855 = vunpack.c.0.s8 %v1854
    %v1856 = vlaneseq
    %v1857 = vshrl.u32 %v1856, 7
    %v1858 = vsub.s32 %v1855, %v1857
    %v1859 = vrot.slane %v1848, %v1858
    %v1861 = vunpack.c.l.s4 1966171168
    %v1862 = vunpack.c.0.s8 %v1861
    %v1863 = vlaneseq
    %v1864 = vshrl.u32 %v1863, 7
    %v1865 = vsub.s32 %v1862, %v1864
    %v1866 = vrot.slane %v1852, %v1865
    %v1867 = vcombine.high %v1859, %v1859
    %v1868 = vcombine.high %v1866, %v1866
    %v1870 = vunpack.c.l.s4 1966171168
    %v1871 = vunpack.c.0.s8 %v1870
    %v1872 = vlaneseq
    %v1873 = vshrl.u32 %v1872, 7
    %v1874 = vsub.s32 %v1871, %v1873
    %v1875 = vrot.slane %v1859, %v1874
    %v1877 = vunpack.c.l.s4 1966171168
    %v1878 = vunpack.c.0.s8 %v1877
    %v1879 = vlaneseq
    %v1880 = vshrl.u32 %v1879, 7
    %v1881 = vsub.s32 %v1878, %v1880
    %v1882 = vrot.slane %v1866, %v1881
    %v1884 = vunpack.c.l.s4 1966171168
    %v1885 = vunpack.c.0.s8 %v1884
    %v1886 = vlaneseq
    %v1887 = vshrl.u32 %v1886, 7
    %v1888 = vsub.s32 %v1885, %v1887
    %v1889 = vrot.slane %v1867, %v1888
    %v1891 = vunpack.c.l.s4 1966171168
    %v1892 = vunpack.c.0.s8 %v1891
    %v1893 = vlaneseq
    %v1894 = vshrl.u32 %v1893, 7
    %v1895 = vsub.s32 %v1892, %v1894
    %v1896 = vrot.slane %v1868, %v1895
    %v1897 = vcombine.high %v1875, %v1875
    %v1898 = vcombine.high %v1882, %v1882
    %v1899 = vcombine.high %v1889, %v1889
    %v1900 = vcombine.high %v1896, %v1896
    %v1901 = vcombine.high %v1849, %v1849
    %v1903 = vunpack.c.l.s4 1966171168
    %v1904 = vunpack.c.0.s8 %v1903
    %v1905 = vlaneseq
    %v1906 = vshrl.u32 %v1905, 7
    %v1907 = vsub.s32 %v1904, %v1906
    %v1908 = vrot.slane %v1849, %v1907
    %v1910 = vunpack.c.l.s4 1966171168
    %v1911 = vunpack.c.0.s8 %v1910
    %v1912 = vlaneseq
    %v1913 = vshrl.u32 %v1912, 7
    %v1914 = vsub.s32 %v1911, %v1913
    %v1915 = vrot.slane %v1901, %v1914
    %v1916 = vcombine.high %v1908, %v1908
    %v1917 = vcombine.high %v1915, %v1915
    %v1919 = vunpack.c.l.s4 1966171168
    %v1920 = vunpack.c.0.s8 %v1919
    %v1921 = vlaneseq
    %v1922 = vshrl.u32 %v1921, 7
    %v1923 = vsub.s32 %v1920, %v1922
    %v1924 = vrot.slane %v1908, %v1923
    %v1926 = vunpack.c.l.s4 1966171168
    %v1927 = vunpack.c.0.s8 %v1926
    %v1928 = vlaneseq
    %v1929 = vshrl.u32 %v1928, 7
    %v1930 = vsub.s32 %v1927, %v1929
    %v1931 = vrot.slane %v1915, %v1930
    %v1933 = vunpack.c.l.s4 1966171168
    %v1934 = vunpack.c.0.s8 %v1933
    %v1935 = vlaneseq
    %v1936 = vshrl.u32 %v1935, 7
    %v1937 = vsub.s32 %v1934, %v1936
    %v1938 = vrot.slane %v1916, %v1937
    %v1940 = vunpack.c.l.s4 1966171168
    %v1941 = vunpack.c.0.s8 %v1940
    %v1942 = vlaneseq
    %v1943 = vshrl.u32 %v1942, 7
    %v1944 = vsub.s32 %v1941, %v1943
    %v1945 = vrot.slane %v1917, %v1944
    %v1946 = vcombine.high %v1924, %v1924
    %v1947 = vcombine.high %v1931, %v1931
    %v1948 = vcombine.high %v1938, %v1938
    %v1949 = vcombine.high %v1945, %v1945
    %v1950 = vlaneseq
    %v1951 = vshrl.u32 %v1950, 7
    %v1952 = vsub.s32 0, %v1951
    %v1953 = vrot.slane %v1875, %v1952
    %v1954 = vlaneseq
    %v1955 = vshrl.u32 %v1954, 7
    %v1956 = vsub.s32 0, %v1955
    %v1957 = vrot.slane %v1889, %v1956
    %v1958 = vlaneseq
    %v1959 = vshrl.u32 %v1958, 7
    %v1960 = vsub.s32 0, %v1959
    %v1961 = vrot.slane %v1897, %v1960
    %v1962 = vlaneseq
    %v1963 = vshrl.u32 %v1962, 7
    %v1964 = vsub.s32 0, %v1963
    %v1965 = vrot.slane %v1899, %v1964
    %v1966 = vlaneseq
    %v1967 = vshrl.u32 %v1966, 7
    %v1968 = vsub.s32 0, %v1967
    %v1969 = vrot.slane %v1882, %v1968
    %v1970 = vlaneseq
    %v1971 = vshrl.u32 %v1970, 7
    %v1972 = vsub.s32 0, %v1971
    %v1973 = vrot.slane %v1896, %v1972
    %v1974 = vlaneseq
    %v1975 = vshrl.u32 %v1974, 7
    %v1976 = vsub.s32 0, %v1975
    %v1977 = vrot.slane %v1898, %v1976
    %v1978 = vlaneseq
    %v1979 = vshrl.u32 %v1978, 7
    %v1980 = vsub.s32 0, %v1979
    %v1981 = vrot.slane %v1900, %v1980
    %v1982 = vlaneseq
    %v1983 = vshrl.u32 %v1982, 7
    %v1984 = vsub.s32 0, %v1983
    %v1985 = vrot.slane %v1924, %v1984
    %v1986 = vlaneseq
    %v1987 = vshrl.u32 %v1986, 7
    %v1988 = vsub.s32 0, %v1987
    %v1989 = vrot.slane %v1938, %v1988
    %v1990 = vlaneseq
    %v1991 = vshrl.u32 %v1990, 7
    %v1992 = vsub.s32 0, %v1991
    %v1993 = vrot.slane %v1946, %v1992
    %v1994 = vlaneseq
    %v1995 = vshrl.u32 %v1994, 7
    %v1996 = vsub.s32 0, %v1995
    %v1997 = vrot.slane %v1948, %v1996
    %v1998 = vlaneseq
    %v1999 = vshrl.u32 %v1998, 7
    %v2000 = vsub.s32 0, %v1999
    %v2001 = vrot.slane %v1931, %v2000
    %v2002 = vlaneseq
    %v2003 = vshrl.u32 %v2002, 7
    %v2004 = vsub.s32 0, %v2003
    %v2005 = vrot.slane %v1945, %v2004
    %v2006 = vlaneseq
    %v2007 = vshrl.u32 %v2006, 7
    %v2008 = vsub.s32 0, %v2007
    %v2009 = vrot.slane %v1947, %v2008
    %v2010 = vlaneseq
    %v2011 = vshrl.u32 %v2010, 7
    %v2012 = vsub.s32 0, %v2011
    %v2013 = vrot.slane %v1949, %v2012
    %2014 = vset.pattern.permute.xlu0 0
    %2015 = vperm.xlu0 %2014, %v1953
    %v2016 = vpop.permute.xlu0 %2015
    %2018 = vset.pattern.permute.xlu0 0
    %2019 = vperm.xlu0 %2018, %v1957
    %v2020 = vpop.permute.xlu0 %2019
    %2022 = vset.pattern.permute.xlu0 0
    %2023 = vperm.xlu0 %2022, %v1961
    %v2024 = vpop.permute.xlu0 %2023
    %2026 = vset.pattern.permute.xlu0 0
    %2027 = vperm.xlu0 %2026, %v1965
    %v2028 = vpop.permute.xlu0 %2027
    %2030 = vset.pattern.permute.xlu0 0
    %2031 = vperm.xlu0 %2030, %v1969
    %v2032 = vpop.permute.xlu0 %2031
    %2034 = vset.pattern.permute.xlu0 0
    %2035 = vperm.xlu0 %2034, %v1973
    %v2036 = vpop.permute.xlu0 %2035
    %2038 = vset.pattern.permute.xlu0 0
    %2039 = vperm.xlu0 %2038, %v1977
    %v2040 = vpop.permute.xlu0 %2039
    %2042 = vset.pattern.permute.xlu0 0
    %2043 = vperm.xlu0 %2042, %v1981
    %v2044 = vpop.permute.xlu0 %2043
    %2046 = vset.pattern.permute.xlu0 0
    %2047 = vperm.xlu0 %2046, %v1985
    %v2048 = vpop.permute.xlu0 %2047
    %2050 = vset.pattern.permute.xlu0 0
    %2051 = vperm.xlu0 %2050, %v1989
    %v2052 = vpop.permute.xlu0 %2051
    %2054 = vset.pattern.permute.xlu0 0
    %2055 = vperm.xlu0 %2054, %v1993
    %v2056 = vpop.permute.xlu0 %2055
    %2058 = vset.pattern.permute.xlu0 0
    %2059 = vperm.xlu0 %2058, %v1997
    %v2060 = vpop.permute.xlu0 %2059
    %2062 = vset.pattern.permute.xlu0 0
    %2063 = vperm.xlu0 %2062, %v2001
    %v2064 = vpop.permute.xlu0 %2063
    %2066 = vset.pattern.permute.xlu0 0
    %2067 = vperm.xlu0 %2066, %v2005
    %v2068 = vpop.permute.xlu0 %2067
    %2070 = vset.pattern.permute.xlu0 0
    %2071 = vperm.xlu0 %2070, %v2009
    %v2072 = vpop.permute.xlu0 %2071
    %2074 = vset.pattern.permute.xlu0 0
    %2075 = vperm.xlu0 %2074, %v2013
    %v2076 = vpop.permute.xlu0 %2075
    %v2078 = vmul.f32 %v2016, %v433
    %v2079 = vmul.f32 %v2020, %v433
    %v2080 = vmul.f32 %v2024, %v433
    %v2081 = vmul.f32 %v2028, %v433
    %v2082 = vmul.f32 %v2032, %v433
    %v2083 = vmul.f32 %v2036, %v433
    %v2084 = vmul.f32 %v2040, %v433
    %v2085 = vmul.f32 %v2044, %v433
    %v2086 = vmul.f32 %v2048, %v433
    %v2087 = vmul.f32 %v2052, %v433
    %v2088 = vmul.f32 %v2056, %v433
    %v2089 = vmul.f32 %v2060, %v433
    %v2090 = vmul.f32 %v2064, %v433
    %v2091 = vmul.f32 %v2068, %v433
    %v2092 = vmul.f32 %v2072, %v433
    %v2093 = vmul.f32 %v2076, %v433
    %v2094 = vadd.f32 %v1831, %v2078
    %v2095 = vadd.f32 %v1832, %v2079
    %v2096 = vadd.f32 %v1833, %v2080
    %v2097 = vadd.f32 %v1834, %v2081
    %v2098 = vadd.f32 %v1835, %v2082
    %v2099 = vadd.f32 %v1836, %v2083
    %v2100 = vadd.f32 %v1837, %v2084
    %v2101 = vadd.f32 %v1838, %v2085
    %v2102 = vadd.f32 %v1839, %v2086
    %v2103 = vadd.f32 %v1840, %v2087
    %v2104 = vadd.f32 %v1841, %v2088
    %v2105 = vadd.f32 %v1842, %v2089
    %v2106 = vadd.f32 %v1843, %v2090
    %v2107 = vadd.f32 %v1844, %v2091
    %v2108 = vadd.f32 %v1845, %v2092
    %v2109 = vadd.f32 %v1846, %v2093
    %s2110 = scalar_lea.vmem %s4, 32
    %v2111 = vld [vmem:[%s2110] sm:$0xff]
    %v2112 = vld [vmem:[%s2110 + $0x8] sm:$0xff]
    %v2115 = vcombine.high %v2111, %v2111
    %v2117 = vunpack.c.l.s4 1966171168
    %v2118 = vunpack.c.0.s8 %v2117
    %v2119 = vlaneseq
    %v2120 = vshrl.u32 %v2119, 7
    %v2121 = vsub.s32 %v2118, %v2120
    %v2122 = vrot.slane %v2111, %v2121
    %v2124 = vunpack.c.l.s4 1966171168
    %v2125 = vunpack.c.0.s8 %v2124
    %v2126 = vlaneseq
    %v2127 = vshrl.u32 %v2126, 7
    %v2128 = vsub.s32 %v2125, %v2127
    %v2129 = vrot.slane %v2115, %v2128
    %v2130 = vcombine.high %v2122, %v2122
    %v2131 = vcombine.high %v2129, %v2129
    %v2133 = vunpack.c.l.s4 1966171168
    %v2134 = vunpack.c.0.s8 %v2133
    %v2135 = vlaneseq
    %v2136 = vshrl.u32 %v2135, 7
    %v2137 = vsub.s32 %v2134, %v2136
    %v2138 = vrot.slane %v2122, %v2137
    %v2140 = vunpack.c.l.s4 1966171168
    %v2141 = vunpack.c.0.s8 %v2140
    %v2142 = vlaneseq
    %v2143 = vshrl.u32 %v2142, 7
    %v2144 = vsub.s32 %v2141, %v2143
    %v2145 = vrot.slane %v2129, %v2144
    %v2147 = vunpack.c.l.s4 1966171168
    %v2148 = vunpack.c.0.s8 %v2147
    %v2149 = vlaneseq
    %v2150 = vshrl.u32 %v2149, 7
    %v2151 = vsub.s32 %v2148, %v2150
    %v2152 = vrot.slane %v2130, %v2151
    %v2154 = vunpack.c.l.s4 1966171168
    %v2155 = vunpack.c.0.s8 %v2154
    %v2156 = vlaneseq
    %v2157 = vshrl.u32 %v2156, 7
    %v2158 = vsub.s32 %v2155, %v2157
    %v2159 = vrot.slane %v2131, %v2158
    %v2160 = vcombine.high %v2138, %v2138
    %v2161 = vcombine.high %v2145, %v2145
    %v2162 = vcombine.high %v2152, %v2152
    %v2163 = vcombine.high %v2159, %v2159
    %v2164 = vcombine.high %v2112, %v2112
    %v2166 = vunpack.c.l.s4 1966171168
    %v2167 = vunpack.c.0.s8 %v2166
    %v2168 = vlaneseq
    %v2169 = vshrl.u32 %v2168, 7
    %v2170 = vsub.s32 %v2167, %v2169
    %v2171 = vrot.slane %v2112, %v2170
    %v2173 = vunpack.c.l.s4 1966171168
    %v2174 = vunpack.c.0.s8 %v2173
    %v2175 = vlaneseq
    %v2176 = vshrl.u32 %v2175, 7
    %v2177 = vsub.s32 %v2174, %v2176
    %v2178 = vrot.slane %v2164, %v2177
    %v2179 = vcombine.high %v2171, %v2171
    %v2180 = vcombine.high %v2178, %v2178
    %v2182 = vunpack.c.l.s4 1966171168
    %v2183 = vunpack.c.0.s8 %v2182
    %v2184 = vlaneseq
    %v2185 = vshrl.u32 %v2184, 7
    %v2186 = vsub.s32 %v2183, %v2185
    %v2187 = vrot.slane %v2171, %v2186
    %v2189 = vunpack.c.l.s4 1966171168
    %v2190 = vunpack.c.0.s8 %v2189
    %v2191 = vlaneseq
    %v2192 = vshrl.u32 %v2191, 7
    %v2193 = vsub.s32 %v2190, %v2192
    %v2194 = vrot.slane %v2178, %v2193
    %v2196 = vunpack.c.l.s4 1966171168
    %v2197 = vunpack.c.0.s8 %v2196
    %v2198 = vlaneseq
    %v2199 = vshrl.u32 %v2198, 7
    %v2200 = vsub.s32 %v2197, %v2199
    %v2201 = vrot.slane %v2179, %v2200
    %v2203 = vunpack.c.l.s4 1966171168
    %v2204 = vunpack.c.0.s8 %v2203
    %v2205 = vlaneseq
    %v2206 = vshrl.u32 %v2205, 7
    %v2207 = vsub.s32 %v2204, %v2206
    %v2208 = vrot.slane %v2180, %v2207
    %v2209 = vcombine.high %v2187, %v2187
    %v2210 = vcombine.high %v2194, %v2194
    %v2211 = vcombine.high %v2201, %v2201
    %v2212 = vcombine.high %v2208, %v2208
    %v2213 = vlaneseq
    %v2214 = vshrl.u32 %v2213, 7
    %v2215 = vsub.s32 0, %v2214
    %v2216 = vrot.slane %v2138, %v2215
    %v2217 = vlaneseq
    %v2218 = vshrl.u32 %v2217, 7
    %v2219 = vsub.s32 0, %v2218
    %v2220 = vrot.slane %v2152, %v2219
    %v2221 = vlaneseq
    %v2222 = vshrl.u32 %v2221, 7
    %v2223 = vsub.s32 0, %v2222
    %v2224 = vrot.slane %v2160, %v2223
    %v2225 = vlaneseq
    %v2226 = vshrl.u32 %v2225, 7
    %v2227 = vsub.s32 0, %v2226
    %v2228 = vrot.slane %v2162, %v2227
    %v2229 = vlaneseq
    %v2230 = vshrl.u32 %v2229, 7
    %v2231 = vsub.s32 0, %v2230
    %v2232 = vrot.slane %v2145, %v2231
    %v2233 = vlaneseq
    %v2234 = vshrl.u32 %v2233, 7
    %v2235 = vsub.s32 0, %v2234
    %v2236 = vrot.slane %v2159, %v2235
    %v2237 = vlaneseq
    %v2238 = vshrl.u32 %v2237, 7
    %v2239 = vsub.s32 0, %v2238
    %v2240 = vrot.slane %v2161, %v2239
    %v2241 = vlaneseq
    %v2242 = vshrl.u32 %v2241, 7
    %v2243 = vsub.s32 0, %v2242
    %v2244 = vrot.slane %v2163, %v2243
    %v2245 = vlaneseq
    %v2246 = vshrl.u32 %v2245, 7
    %v2247 = vsub.s32 0, %v2246
    %v2248 = vrot.slane %v2187, %v2247
    %v2249 = vlaneseq
    %v2250 = vshrl.u32 %v2249, 7
    %v2251 = vsub.s32 0, %v2250
    %v2252 = vrot.slane %v2201, %v2251
    %v2253 = vlaneseq
    %v2254 = vshrl.u32 %v2253, 7
    %v2255 = vsub.s32 0, %v2254
    %v2256 = vrot.slane %v2209, %v2255
    %v2257 = vlaneseq
    %v2258 = vshrl.u32 %v2257, 7
    %v2259 = vsub.s32 0, %v2258
    %v2260 = vrot.slane %v2211, %v2259
    %v2261 = vlaneseq
    %v2262 = vshrl.u32 %v2261, 7
    %v2263 = vsub.s32 0, %v2262
    %v2264 = vrot.slane %v2194, %v2263
    %v2265 = vlaneseq
    %v2266 = vshrl.u32 %v2265, 7
    %v2267 = vsub.s32 0, %v2266
    %v2268 = vrot.slane %v2208, %v2267
    %v2269 = vlaneseq
    %v2270 = vshrl.u32 %v2269, 7
    %v2271 = vsub.s32 0, %v2270
    %v2272 = vrot.slane %v2210, %v2271
    %v2273 = vlaneseq
    %v2274 = vshrl.u32 %v2273, 7
    %v2275 = vsub.s32 0, %v2274
    %v2276 = vrot.slane %v2212, %v2275
    %2277 = vset.pattern.permute.xlu0 0
    %2278 = vperm.xlu0 %2277, %v2216
    %v2279 = vpop.permute.xlu0 %2278
    %2281 = vset.pattern.permute.xlu0 0
    %2282 = vperm.xlu0 %2281, %v2220
    %v2283 = vpop.permute.xlu0 %2282
    %2285 = vset.pattern.permute.xlu0 0
    %2286 = vperm.xlu0 %2285, %v2224
    %v2287 = vpop.permute.xlu0 %2286
    %2289 = vset.pattern.permute.xlu0 0
    %2290 = vperm.xlu0 %2289, %v2228
    %v2291 = vpop.permute.xlu0 %2290
    %2293 = vset.pattern.permute.xlu0 0
    %2294 = vperm.xlu0 %2293, %v2232
    %v2295 = vpop.permute.xlu0 %2294
    %2297 = vset.pattern.permute.xlu0 0
    %2298 = vperm.xlu0 %2297, %v2236
    %v2299 = vpop.permute.xlu0 %2298
    %2301 = vset.pattern.permute.xlu0 0
    %2302 = vperm.xlu0 %2301, %v2240
    %v2303 = vpop.permute.xlu0 %2302
    %2305 = vset.pattern.permute.xlu0 0
    %2306 = vperm.xlu0 %2305, %v2244
    %v2307 = vpop.permute.xlu0 %2306
    %2309 = vset.pattern.permute.xlu0 0
    %2310 = vperm.xlu0 %2309, %v2248
    %v2311 = vpop.permute.xlu0 %2310
    %2313 = vset.pattern.permute.xlu0 0
    %2314 = vperm.xlu0 %2313, %v2252
    %v2315 = vpop.permute.xlu0 %2314
    %2317 = vset.pattern.permute.xlu0 0
    %2318 = vperm.xlu0 %2317, %v2256
    %v2319 = vpop.permute.xlu0 %2318
    %2321 = vset.pattern.permute.xlu0 0
    %2322 = vperm.xlu0 %2321, %v2260
    %v2323 = vpop.permute.xlu0 %2322
    %2325 = vset.pattern.permute.xlu0 0
    %2326 = vperm.xlu0 %2325, %v2264
    %v2327 = vpop.permute.xlu0 %2326
    %2329 = vset.pattern.permute.xlu0 0
    %2330 = vperm.xlu0 %2329, %v2268
    %v2331 = vpop.permute.xlu0 %2330
    %2333 = vset.pattern.permute.xlu0 0
    %2334 = vperm.xlu0 %2333, %v2272
    %v2335 = vpop.permute.xlu0 %2334
    %2337 = vset.pattern.permute.xlu0 0
    %2338 = vperm.xlu0 %2337, %v2276
    %v2339 = vpop.permute.xlu0 %2338
    %v2341 = vmul.f32 %v2279, %v433
    %v2342 = vmul.f32 %v2283, %v433
    %v2343 = vmul.f32 %v2287, %v433
    %v2344 = vmul.f32 %v2291, %v433
    %v2345 = vmul.f32 %v2295, %v433
    %v2346 = vmul.f32 %v2299, %v433
    %v2347 = vmul.f32 %v2303, %v433
    %v2348 = vmul.f32 %v2307, %v433
    %v2349 = vmul.f32 %v2311, %v433
    %v2350 = vmul.f32 %v2315, %v433
    %v2351 = vmul.f32 %v2319, %v433
    %v2352 = vmul.f32 %v2323, %v433
    %v2353 = vmul.f32 %v2327, %v433
    %v2354 = vmul.f32 %v2331, %v433
    %v2355 = vmul.f32 %v2335, %v433
    %v2356 = vmul.f32 %v2339, %v433
    %2373 = vrot.lane.b32.xlu0 %v2341, 127
    %v2374 = vpop.permute.xlu0 %2373
    %2375 = vrot.lane.b32.xlu0 %v2342, 127
    %v2376 = vpop.permute.xlu0 %2375
    %2377 = vrot.lane.b32.xlu0 %v2343, 127
    %v2378 = vpop.permute.xlu0 %2377
    %2379 = vrot.lane.b32.xlu0 %v2344, 127
    %v2380 = vpop.permute.xlu0 %2379
    %2381 = vrot.lane.b32.xlu0 %v2345, 127
    %v2382 = vpop.permute.xlu0 %2381
    %2383 = vrot.lane.b32.xlu0 %v2346, 127
    %v2384 = vpop.permute.xlu0 %2383
    %2385 = vrot.lane.b32.xlu0 %v2347, 127
    %v2386 = vpop.permute.xlu0 %2385
    %2387 = vrot.lane.b32.xlu0 %v2348, 127
    %v2388 = vpop.permute.xlu0 %2387
    %2389 = vrot.lane.b32.xlu0 %v2349, 127
    %v2390 = vpop.permute.xlu0 %2389
    %2391 = vrot.lane.b32.xlu0 %v2350, 127
    %v2392 = vpop.permute.xlu0 %2391
    %2393 = vrot.lane.b32.xlu0 %v2351, 127
    %v2394 = vpop.permute.xlu0 %2393
    %2395 = vrot.lane.b32.xlu0 %v2352, 127
    %v2396 = vpop.permute.xlu0 %2395
    %2397 = vrot.lane.b32.xlu0 %v2353, 127
    %v2398 = vpop.permute.xlu0 %2397
    %2399 = vrot.lane.b32.xlu0 %v2354, 127
    %v2400 = vpop.permute.xlu0 %2399
    %2401 = vrot.lane.b32.xlu0 %v2355, 127
    %v2402 = vpop.permute.xlu0 %2401
    %2403 = vrot.lane.b32.xlu0 %v2356, 127
    %v2404 = vpop.permute.xlu0 %2403
    %v2421 = vadd.f32 %v2094, %v2374
    %v2422 = vadd.f32 %v2095, %v2376
    %v2423 = vadd.f32 %v2096, %v2378
    %v2424 = vadd.f32 %v2097, %v2380
    %v2425 = vadd.f32 %v2098, %v2382
    %v2426 = vadd.f32 %v2099, %v2384
    %v2427 = vadd.f32 %v2100, %v2386
    %v2428 = vadd.f32 %v2101, %v2388
    %v2429 = vadd.f32 %v2102, %v2390
    %v2430 = vadd.f32 %v2103, %v2392
    %v2431 = vadd.f32 %v2104, %v2394
    %v2432 = vadd.f32 %v2105, %v2396
    %v2433 = vadd.f32 %v2106, %v2398
    %v2434 = vadd.f32 %v2107, %v2400
    %v2435 = vadd.f32 %v2108, %v2402
    %v2436 = vadd.f32 %v2109, %v2404
    %s2437 = scalar_lea.vmem %s3, 48
    %v2438 = vld [vmem:[%s2437] sm:$0xff]
    %v2439 = vld [vmem:[%s2437 + $0x8] sm:$0xff]
    %v2442 = vcombine.high %v2438, %v2438
    %v2444 = vunpack.c.l.s4 1966171168
    %v2445 = vunpack.c.0.s8 %v2444
    %v2446 = vlaneseq
    %v2447 = vshrl.u32 %v2446, 7
    %v2448 = vsub.s32 %v2445, %v2447
    %v2449 = vrot.slane %v2438, %v2448
    %v2451 = vunpack.c.l.s4 1966171168
    %v2452 = vunpack.c.0.s8 %v2451
    %v2453 = vlaneseq
    %v2454 = vshrl.u32 %v2453, 7
    %v2455 = vsub.s32 %v2452, %v2454
    %v2456 = vrot.slane %v2442, %v2455
    %v2457 = vcombine.high %v2449, %v2449
    %v2458 = vcombine.high %v2456, %v2456
    %v2460 = vunpack.c.l.s4 1966171168
    %v2461 = vunpack.c.0.s8 %v2460
    %v2462 = vlaneseq
    %v2463 = vshrl.u32 %v2462, 7
    %v2464 = vsub.s32 %v2461, %v2463
    %v2465 = vrot.slane %v2449, %v2464
    %v2467 = vunpack.c.l.s4 1966171168
    %v2468 = vunpack.c.0.s8 %v2467
    %v2469 = vlaneseq
    %v2470 = vshrl.u32 %v2469, 7
    %v2471 = vsub.s32 %v2468, %v2470
    %v2472 = vrot.slane %v2456, %v2471
    %v2474 = vunpack.c.l.s4 1966171168
    %v2475 = vunpack.c.0.s8 %v2474
    %v2476 = vlaneseq
    %v2477 = vshrl.u32 %v2476, 7
    %v2478 = vsub.s32 %v2475, %v2477
    %v2479 = vrot.slane %v2457, %v2478
    %v2481 = vunpack.c.l.s4 1966171168
    %v2482 = vunpack.c.0.s8 %v2481
    %v2483 = vlaneseq
    %v2484 = vshrl.u32 %v2483, 7
    %v2485 = vsub.s32 %v2482, %v2484
    %v2486 = vrot.slane %v2458, %v2485
    %v2487 = vcombine.high %v2465, %v2465
    %v2488 = vcombine.high %v2472, %v2472
    %v2489 = vcombine.high %v2479, %v2479
    %v2490 = vcombine.high %v2486, %v2486
    %v2491 = vcombine.high %v2439, %v2439
    %v2493 = vunpack.c.l.s4 1966171168
    %v2494 = vunpack.c.0.s8 %v2493
    %v2495 = vlaneseq
    %v2496 = vshrl.u32 %v2495, 7
    %v2497 = vsub.s32 %v2494, %v2496
    %v2498 = vrot.slane %v2439, %v2497
    %v2500 = vunpack.c.l.s4 1966171168
    %v2501 = vunpack.c.0.s8 %v2500
    %v2502 = vlaneseq
    %v2503 = vshrl.u32 %v2502, 7
    %v2504 = vsub.s32 %v2501, %v2503
    %v2505 = vrot.slane %v2491, %v2504
    %v2506 = vcombine.high %v2498, %v2498
    %v2507 = vcombine.high %v2505, %v2505
    %v2509 = vunpack.c.l.s4 1966171168
    %v2510 = vunpack.c.0.s8 %v2509
    %v2511 = vlaneseq
    %v2512 = vshrl.u32 %v2511, 7
    %v2513 = vsub.s32 %v2510, %v2512
    %v2514 = vrot.slane %v2498, %v2513
    %v2516 = vunpack.c.l.s4 1966171168
    %v2517 = vunpack.c.0.s8 %v2516
    %v2518 = vlaneseq
    %v2519 = vshrl.u32 %v2518, 7
    %v2520 = vsub.s32 %v2517, %v2519
    %v2521 = vrot.slane %v2505, %v2520
    %v2523 = vunpack.c.l.s4 1966171168
    %v2524 = vunpack.c.0.s8 %v2523
    %v2525 = vlaneseq
    %v2526 = vshrl.u32 %v2525, 7
    %v2527 = vsub.s32 %v2524, %v2526
    %v2528 = vrot.slane %v2506, %v2527
    %v2530 = vunpack.c.l.s4 1966171168
    %v2531 = vunpack.c.0.s8 %v2530
    %v2532 = vlaneseq
    %v2533 = vshrl.u32 %v2532, 7
    %v2534 = vsub.s32 %v2531, %v2533
    %v2535 = vrot.slane %v2507, %v2534
    %v2536 = vcombine.high %v2514, %v2514
    %v2537 = vcombine.high %v2521, %v2521
    %v2538 = vcombine.high %v2528, %v2528
    %v2539 = vcombine.high %v2535, %v2535
    %v2540 = vlaneseq
    %v2541 = vshrl.u32 %v2540, 7
    %v2542 = vsub.s32 0, %v2541
    %v2543 = vrot.slane %v2465, %v2542
    %v2544 = vlaneseq
    %v2545 = vshrl.u32 %v2544, 7
    %v2546 = vsub.s32 0, %v2545
    %v2547 = vrot.slane %v2479, %v2546
    %v2548 = vlaneseq
    %v2549 = vshrl.u32 %v2548, 7
    %v2550 = vsub.s32 0, %v2549
    %v2551 = vrot.slane %v2487, %v2550
    %v2552 = vlaneseq
    %v2553 = vshrl.u32 %v2552, 7
    %v2554 = vsub.s32 0, %v2553
    %v2555 = vrot.slane %v2489, %v2554
    %v2556 = vlaneseq
    %v2557 = vshrl.u32 %v2556, 7
    %v2558 = vsub.s32 0, %v2557
    %v2559 = vrot.slane %v2472, %v2558
    %v2560 = vlaneseq
    %v2561 = vshrl.u32 %v2560, 7
    %v2562 = vsub.s32 0, %v2561
    %v2563 = vrot.slane %v2486, %v2562
    %v2564 = vlaneseq
    %v2565 = vshrl.u32 %v2564, 7
    %v2566 = vsub.s32 0, %v2565
    %v2567 = vrot.slane %v2488, %v2566
    %v2568 = vlaneseq
    %v2569 = vshrl.u32 %v2568, 7
    %v2570 = vsub.s32 0, %v2569
    %v2571 = vrot.slane %v2490, %v2570
    %v2572 = vlaneseq
    %v2573 = vshrl.u32 %v2572, 7
    %v2574 = vsub.s32 0, %v2573
    %v2575 = vrot.slane %v2514, %v2574
    %v2576 = vlaneseq
    %v2577 = vshrl.u32 %v2576, 7
    %v2578 = vsub.s32 0, %v2577
    %v2579 = vrot.slane %v2528, %v2578
    %v2580 = vlaneseq
    %v2581 = vshrl.u32 %v2580, 7
    %v2582 = vsub.s32 0, %v2581
    %v2583 = vrot.slane %v2536, %v2582
    %v2584 = vlaneseq
    %v2585 = vshrl.u32 %v2584, 7
    %v2586 = vsub.s32 0, %v2585
    %v2587 = vrot.slane %v2538, %v2586
    %v2588 = vlaneseq
    %v2589 = vshrl.u32 %v2588, 7
    %v2590 = vsub.s32 0, %v2589
    %v2591 = vrot.slane %v2521, %v2590
    %v2592 = vlaneseq
    %v2593 = vshrl.u32 %v2592, 7
    %v2594 = vsub.s32 0, %v2593
    %v2595 = vrot.slane %v2535, %v2594
    %v2596 = vlaneseq
    %v2597 = vshrl.u32 %v2596, 7
    %v2598 = vsub.s32 0, %v2597
    %v2599 = vrot.slane %v2537, %v2598
    %v2600 = vlaneseq
    %v2601 = vshrl.u32 %v2600, 7
    %v2602 = vsub.s32 0, %v2601
    %v2603 = vrot.slane %v2539, %v2602
    %2604 = vset.pattern.permute.xlu0 0
    %2605 = vperm.xlu0 %2604, %v2543
    %v2606 = vpop.permute.xlu0 %2605
    %2608 = vset.pattern.permute.xlu0 0
    %2609 = vperm.xlu0 %2608, %v2547
    %v2610 = vpop.permute.xlu0 %2609
    %2612 = vset.pattern.permute.xlu0 0
    %2613 = vperm.xlu0 %2612, %v2551
    %v2614 = vpop.permute.xlu0 %2613
    %2616 = vset.pattern.permute.xlu0 0
    %2617 = vperm.xlu0 %2616, %v2555
    %v2618 = vpop.permute.xlu0 %2617
    %2620 = vset.pattern.permute.xlu0 0
    %2621 = vperm.xlu0 %2620, %v2559
    %v2622 = vpop.permute.xlu0 %2621
    %2624 = vset.pattern.permute.xlu0 0
    %2625 = vperm.xlu0 %2624, %v2563
    %v2626 = vpop.permute.xlu0 %2625
    %2628 = vset.pattern.permute.xlu0 0
    %2629 = vperm.xlu0 %2628, %v2567
    %v2630 = vpop.permute.xlu0 %2629
    %2632 = vset.pattern.permute.xlu0 0
    %2633 = vperm.xlu0 %2632, %v2571
    %v2634 = vpop.permute.xlu0 %2633
    %2636 = vset.pattern.permute.xlu0 0
    %2637 = vperm.xlu0 %2636, %v2575
    %v2638 = vpop.permute.xlu0 %2637
    %2640 = vset.pattern.permute.xlu0 0
    %2641 = vperm.xlu0 %2640, %v2579
    %v2642 = vpop.permute.xlu0 %2641
    %2644 = vset.pattern.permute.xlu0 0
    %2645 = vperm.xlu0 %2644, %v2583
    %v2646 = vpop.permute.xlu0 %2645
    %2648 = vset.pattern.permute.xlu0 0
    %2649 = vperm.xlu0 %2648, %v2587
    %v2650 = vpop.permute.xlu0 %2649
    %2652 = vset.pattern.permute.xlu0 0
    %2653 = vperm.xlu0 %2652, %v2591
    %v2654 = vpop.permute.xlu0 %2653
    %2656 = vset.pattern.permute.xlu0 0
    %2657 = vperm.xlu0 %2656, %v2595
    %v2658 = vpop.permute.xlu0 %2657
    %2660 = vset.pattern.permute.xlu0 0
    %2661 = vperm.xlu0 %2660, %v2599
    %v2662 = vpop.permute.xlu0 %2661
    %2664 = vset.pattern.permute.xlu0 0
    %2665 = vperm.xlu0 %2664, %v2603
    %v2666 = vpop.permute.xlu0 %2665
    %v2668 = vmul.f32 %v2606, %v434
    %v2669 = vmul.f32 %v2610, %v434
    %v2670 = vmul.f32 %v2614, %v434
    %v2671 = vmul.f32 %v2618, %v434
    %v2672 = vmul.f32 %v2622, %v434
    %v2673 = vmul.f32 %v2626, %v434
    %v2674 = vmul.f32 %v2630, %v434
    %v2675 = vmul.f32 %v2634, %v434
    %v2676 = vmul.f32 %v2638, %v434
    %v2677 = vmul.f32 %v2642, %v434
    %v2678 = vmul.f32 %v2646, %v434
    %v2679 = vmul.f32 %v2650, %v434
    %v2680 = vmul.f32 %v2654, %v434
    %v2681 = vmul.f32 %v2658, %v434
    %v2682 = vmul.f32 %v2662, %v434
    %v2683 = vmul.f32 %v2666, %v434
    %v2684 = vadd.f32 %v2421, %v2668
    %v2685 = vadd.f32 %v2422, %v2669
    %v2686 = vadd.f32 %v2423, %v2670
    %v2687 = vadd.f32 %v2424, %v2671
    %v2688 = vadd.f32 %v2425, %v2672
    %v2689 = vadd.f32 %v2426, %v2673
    %v2690 = vadd.f32 %v2427, %v2674
    %v2691 = vadd.f32 %v2428, %v2675
    %v2692 = vadd.f32 %v2429, %v2676
    %v2693 = vadd.f32 %v2430, %v2677
    %v2694 = vadd.f32 %v2431, %v2678
    %v2695 = vadd.f32 %v2432, %v2679
    %v2696 = vadd.f32 %v2433, %v2680
    %v2697 = vadd.f32 %v2434, %v2681
    %v2698 = vadd.f32 %v2435, %v2682
    %v2699 = vadd.f32 %v2436, %v2683
    %s2700 = scalar_lea.vmem %s4, 48
    %v2701 = vld [vmem:[%s2700] sm:$0xff]
    %v2702 = vld [vmem:[%s2700 + $0x8] sm:$0xff]
    %v2705 = vcombine.high %v2701, %v2701
    %v2707 = vunpack.c.l.s4 1966171168
    %v2708 = vunpack.c.0.s8 %v2707
    %v2709 = vlaneseq
    %v2710 = vshrl.u32 %v2709, 7
    %v2711 = vsub.s32 %v2708, %v2710
    %v2712 = vrot.slane %v2701, %v2711
    %v2714 = vunpack.c.l.s4 1966171168
    %v2715 = vunpack.c.0.s8 %v2714
    %v2716 = vlaneseq
    %v2717 = vshrl.u32 %v2716, 7
    %v2718 = vsub.s32 %v2715, %v2717
    %v2719 = vrot.slane %v2705, %v2718
    %v2720 = vcombine.high %v2712, %v2712
    %v2721 = vcombine.high %v2719, %v2719
    %v2723 = vunpack.c.l.s4 1966171168
    %v2724 = vunpack.c.0.s8 %v2723
    %v2725 = vlaneseq
    %v2726 = vshrl.u32 %v2725, 7
    %v2727 = vsub.s32 %v2724, %v2726
    %v2728 = vrot.slane %v2712, %v2727
    %v2730 = vunpack.c.l.s4 1966171168
    %v2731 = vunpack.c.0.s8 %v2730
    %v2732 = vlaneseq
    %v2733 = vshrl.u32 %v2732, 7
    %v2734 = vsub.s32 %v2731, %v2733
    %v2735 = vrot.slane %v2719, %v2734
    %v2737 = vunpack.c.l.s4 1966171168
    %v2738 = vunpack.c.0.s8 %v2737
    %v2739 = vlaneseq
    %v2740 = vshrl.u32 %v2739, 7
    %v2741 = vsub.s32 %v2738, %v2740
    %v2742 = vrot.slane %v2720, %v2741
    %v2744 = vunpack.c.l.s4 1966171168
    %v2745 = vunpack.c.0.s8 %v2744
    %v2746 = vlaneseq
    %v2747 = vshrl.u32 %v2746, 7
    %v2748 = vsub.s32 %v2745, %v2747
    %v2749 = vrot.slane %v2721, %v2748
    %v2750 = vcombine.high %v2728, %v2728
    %v2751 = vcombine.high %v2735, %v2735
    %v2752 = vcombine.high %v2742, %v2742
    %v2753 = vcombine.high %v2749, %v2749
    %v2754 = vcombine.high %v2702, %v2702
    %v2756 = vunpack.c.l.s4 1966171168
    %v2757 = vunpack.c.0.s8 %v2756
    %v2758 = vlaneseq
    %v2759 = vshrl.u32 %v2758, 7
    %v2760 = vsub.s32 %v2757, %v2759
    %v2761 = vrot.slane %v2702, %v2760
    %v2763 = vunpack.c.l.s4 1966171168
    %v2764 = vunpack.c.0.s8 %v2763
    %v2765 = vlaneseq
    %v2766 = vshrl.u32 %v2765, 7
    %v2767 = vsub.s32 %v2764, %v2766
    %v2768 = vrot.slane %v2754, %v2767
    %v2769 = vcombine.high %v2761, %v2761
    %v2770 = vcombine.high %v2768, %v2768
    %v2772 = vunpack.c.l.s4 1966171168
    %v2773 = vunpack.c.0.s8 %v2772
    %v2774 = vlaneseq
    %v2775 = vshrl.u32 %v2774, 7
    %v2776 = vsub.s32 %v2773, %v2775
    %v2777 = vrot.slane %v2761, %v2776
    %v2779 = vunpack.c.l.s4 1966171168
    %v2780 = vunpack.c.0.s8 %v2779
    %v2781 = vlaneseq
    %v2782 = vshrl.u32 %v2781, 7
    %v2783 = vsub.s32 %v2780, %v2782
    %v2784 = vrot.slane %v2768, %v2783
    %v2786 = vunpack.c.l.s4 1966171168
    %v2787 = vunpack.c.0.s8 %v2786
    %v2788 = vlaneseq
    %v2789 = vshrl.u32 %v2788, 7
    %v2790 = vsub.s32 %v2787, %v2789
    %v2791 = vrot.slane %v2769, %v2790
    %v2793 = vunpack.c.l.s4 1966171168
    %v2794 = vunpack.c.0.s8 %v2793
    %v2795 = vlaneseq
    %v2796 = vshrl.u32 %v2795, 7
    %v2797 = vsub.s32 %v2794, %v2796
    %v2798 = vrot.slane %v2770, %v2797
    %v2799 = vcombine.high %v2777, %v2777
    %v2800 = vcombine.high %v2784, %v2784
    %v2801 = vcombine.high %v2791, %v2791
    %v2802 = vcombine.high %v2798, %v2798
    %v2803 = vlaneseq
    %v2804 = vshrl.u32 %v2803, 7
    %v2805 = vsub.s32 0, %v2804
    %v2806 = vrot.slane %v2728, %v2805
    %v2807 = vlaneseq
    %v2808 = vshrl.u32 %v2807, 7
    %v2809 = vsub.s32 0, %v2808
    %v2810 = vrot.slane %v2742, %v2809
    %v2811 = vlaneseq
    %v2812 = vshrl.u32 %v2811, 7
    %v2813 = vsub.s32 0, %v2812
    %v2814 = vrot.slane %v2750, %v2813
    %v2815 = vlaneseq
    %v2816 = vshrl.u32 %v2815, 7
    %v2817 = vsub.s32 0, %v2816
    %v2818 = vrot.slane %v2752, %v2817
    %v2819 = vlaneseq
    %v2820 = vshrl.u32 %v2819, 7
    %v2821 = vsub.s32 0, %v2820
    %v2822 = vrot.slane %v2735, %v2821
    %v2823 = vlaneseq
    %v2824 = vshrl.u32 %v2823, 7
    %v2825 = vsub.s32 0, %v2824
    %v2826 = vrot.slane %v2749, %v2825
    %v2827 = vlaneseq
    %v2828 = vshrl.u32 %v2827, 7
    %v2829 = vsub.s32 0, %v2828
    %v2830 = vrot.slane %v2751, %v2829
    %v2831 = vlaneseq
    %v2832 = vshrl.u32 %v2831, 7
    %v2833 = vsub.s32 0, %v2832
    %v2834 = vrot.slane %v2753, %v2833
    %v2835 = vlaneseq
    %v2836 = vshrl.u32 %v2835, 7
    %v2837 = vsub.s32 0, %v2836
    %v2838 = vrot.slane %v2777, %v2837
    %v2839 = vlaneseq
    %v2840 = vshrl.u32 %v2839, 7
    %v2841 = vsub.s32 0, %v2840
    %v2842 = vrot.slane %v2791, %v2841
    %v2843 = vlaneseq
    %v2844 = vshrl.u32 %v2843, 7
    %v2845 = vsub.s32 0, %v2844
    %v2846 = vrot.slane %v2799, %v2845
    %v2847 = vlaneseq
    %v2848 = vshrl.u32 %v2847, 7
    %v2849 = vsub.s32 0, %v2848
    %v2850 = vrot.slane %v2801, %v2849
    %v2851 = vlaneseq
    %v2852 = vshrl.u32 %v2851, 7
    %v2853 = vsub.s32 0, %v2852
    %v2854 = vrot.slane %v2784, %v2853
    %v2855 = vlaneseq
    %v2856 = vshrl.u32 %v2855, 7
    %v2857 = vsub.s32 0, %v2856
    %v2858 = vrot.slane %v2798, %v2857
    %v2859 = vlaneseq
    %v2860 = vshrl.u32 %v2859, 7
    %v2861 = vsub.s32 0, %v2860
    %v2862 = vrot.slane %v2800, %v2861
    %v2863 = vlaneseq
    %v2864 = vshrl.u32 %v2863, 7
    %v2865 = vsub.s32 0, %v2864
    %v2866 = vrot.slane %v2802, %v2865
    %2867 = vset.pattern.permute.xlu0 0
    %2868 = vperm.xlu0 %2867, %v2806
    %v2869 = vpop.permute.xlu0 %2868
    %2871 = vset.pattern.permute.xlu0 0
    %2872 = vperm.xlu0 %2871, %v2810
    %v2873 = vpop.permute.xlu0 %2872
    %2875 = vset.pattern.permute.xlu0 0
    %2876 = vperm.xlu0 %2875, %v2814
    %v2877 = vpop.permute.xlu0 %2876
    %2879 = vset.pattern.permute.xlu0 0
    %2880 = vperm.xlu0 %2879, %v2818
    %v2881 = vpop.permute.xlu0 %2880
    %2883 = vset.pattern.permute.xlu0 0
    %2884 = vperm.xlu0 %2883, %v2822
    %v2885 = vpop.permute.xlu0 %2884
    %2887 = vset.pattern.permute.xlu0 0
    %2888 = vperm.xlu0 %2887, %v2826
    %v2889 = vpop.permute.xlu0 %2888
    %2891 = vset.pattern.permute.xlu0 0
    %2892 = vperm.xlu0 %2891, %v2830
    %v2893 = vpop.permute.xlu0 %2892
    %2895 = vset.pattern.permute.xlu0 0
    %2896 = vperm.xlu0 %2895, %v2834
    %v2897 = vpop.permute.xlu0 %2896
    %2899 = vset.pattern.permute.xlu0 0
    %2900 = vperm.xlu0 %2899, %v2838
    %v2901 = vpop.permute.xlu0 %2900
    %2903 = vset.pattern.permute.xlu0 0
    %2904 = vperm.xlu0 %2903, %v2842
    %v2905 = vpop.permute.xlu0 %2904
    %2907 = vset.pattern.permute.xlu0 0
    %2908 = vperm.xlu0 %2907, %v2846
    %v2909 = vpop.permute.xlu0 %2908
    %2911 = vset.pattern.permute.xlu0 0
    %2912 = vperm.xlu0 %2911, %v2850
    %v2913 = vpop.permute.xlu0 %2912
    %2915 = vset.pattern.permute.xlu0 0
    %2916 = vperm.xlu0 %2915, %v2854
    %v2917 = vpop.permute.xlu0 %2916
    %2919 = vset.pattern.permute.xlu0 0
    %2920 = vperm.xlu0 %2919, %v2858
    %v2921 = vpop.permute.xlu0 %2920
    %2923 = vset.pattern.permute.xlu0 0
    %2924 = vperm.xlu0 %2923, %v2862
    %v2925 = vpop.permute.xlu0 %2924
    %2927 = vset.pattern.permute.xlu0 0
    %2928 = vperm.xlu0 %2927, %v2866
    %v2929 = vpop.permute.xlu0 %2928
    %v2931 = vmul.f32 %v2869, %v434
    %v2932 = vmul.f32 %v2873, %v434
    %v2933 = vmul.f32 %v2877, %v434
    %v2934 = vmul.f32 %v2881, %v434
    %v2935 = vmul.f32 %v2885, %v434
    %v2936 = vmul.f32 %v2889, %v434
    %v2937 = vmul.f32 %v2893, %v434
    %v2938 = vmul.f32 %v2897, %v434
    %v2939 = vmul.f32 %v2901, %v434
    %v2940 = vmul.f32 %v2905, %v434
    %v2941 = vmul.f32 %v2909, %v434
    %v2942 = vmul.f32 %v2913, %v434
    %v2943 = vmul.f32 %v2917, %v434
    %v2944 = vmul.f32 %v2921, %v434
    %v2945 = vmul.f32 %v2925, %v434
    %v2946 = vmul.f32 %v2929, %v434
    %2963 = vrot.lane.b32.xlu0 %v2931, 127
    %v2964 = vpop.permute.xlu0 %2963
    %2965 = vrot.lane.b32.xlu0 %v2932, 127
    %v2966 = vpop.permute.xlu0 %2965
    %2967 = vrot.lane.b32.xlu0 %v2933, 127
    %v2968 = vpop.permute.xlu0 %2967
    %2969 = vrot.lane.b32.xlu0 %v2934, 127
    %v2970 = vpop.permute.xlu0 %2969
    %2971 = vrot.lane.b32.xlu0 %v2935, 127
    %v2972 = vpop.permute.xlu0 %2971
    %2973 = vrot.lane.b32.xlu0 %v2936, 127
    %v2974 = vpop.permute.xlu0 %2973
    %2975 = vrot.lane.b32.xlu0 %v2937, 127
    %v2976 = vpop.permute.xlu0 %2975
    %2977 = vrot.lane.b32.xlu0 %v2938, 127
    %v2978 = vpop.permute.xlu0 %2977
    %2979 = vrot.lane.b32.xlu0 %v2939, 127
    %v2980 = vpop.permute.xlu0 %2979
    %2981 = vrot.lane.b32.xlu0 %v2940, 127
    %v2982 = vpop.permute.xlu0 %2981
    %2983 = vrot.lane.b32.xlu0 %v2941, 127
    %v2984 = vpop.permute.xlu0 %2983
    %2985 = vrot.lane.b32.xlu0 %v2942, 127
    %v2986 = vpop.permute.xlu0 %2985
    %2987 = vrot.lane.b32.xlu0 %v2943, 127
    %v2988 = vpop.permute.xlu0 %2987
    %2989 = vrot.lane.b32.xlu0 %v2944, 127
    %v2990 = vpop.permute.xlu0 %2989
    %2991 = vrot.lane.b32.xlu0 %v2945, 127
    %v2992 = vpop.permute.xlu0 %2991
    %2993 = vrot.lane.b32.xlu0 %v2946, 127
    %v2994 = vpop.permute.xlu0 %2993
    %v3011 = vadd.f32 %v2684, %v2964
    %v3012 = vadd.f32 %v2685, %v2966
    %v3013 = vadd.f32 %v2686, %v2968
    %v3014 = vadd.f32 %v2687, %v2970
    %v3015 = vadd.f32 %v2688, %v2972
    %v3016 = vadd.f32 %v2689, %v2974
    %v3017 = vadd.f32 %v2690, %v2976
    %v3018 = vadd.f32 %v2691, %v2978
    %v3019 = vadd.f32 %v2692, %v2980
    %v3020 = vadd.f32 %v2693, %v2982
    %v3021 = vadd.f32 %v2694, %v2984
    %v3022 = vadd.f32 %v2695, %v2986
    %v3023 = vadd.f32 %v2696, %v2988
    %v3024 = vadd.f32 %v2697, %v2990
    %v3025 = vadd.f32 %v2698, %v2992
    %v3026 = vadd.f32 %v2699, %v2994
    %s3027 = scalar_lea.vmem %s3, 64
    %v3028 = vld [vmem:[%s3027] sm:$0xff]
    %v3029 = vld [vmem:[%s3027 + $0x8] sm:$0xff]
    %v3032 = vcombine.high %v3028, %v3028
    %v3034 = vunpack.c.l.s4 1966171168
    %v3035 = vunpack.c.0.s8 %v3034
    %v3036 = vlaneseq
    %v3037 = vshrl.u32 %v3036, 7
    %v3038 = vsub.s32 %v3035, %v3037
    %v3039 = vrot.slane %v3028, %v3038
    %v3041 = vunpack.c.l.s4 1966171168
    %v3042 = vunpack.c.0.s8 %v3041
    %v3043 = vlaneseq
    %v3044 = vshrl.u32 %v3043, 7
    %v3045 = vsub.s32 %v3042, %v3044
    %v3046 = vrot.slane %v3032, %v3045
    %v3047 = vcombine.high %v3039, %v3039
    %v3048 = vcombine.high %v3046, %v3046
    %v3050 = vunpack.c.l.s4 1966171168
    %v3051 = vunpack.c.0.s8 %v3050
    %v3052 = vlaneseq
    %v3053 = vshrl.u32 %v3052, 7
    %v3054 = vsub.s32 %v3051, %v3053
    %v3055 = vrot.slane %v3039, %v3054
    %v3057 = vunpack.c.l.s4 1966171168
    %v3058 = vunpack.c.0.s8 %v3057
    %v3059 = vlaneseq
    %v3060 = vshrl.u32 %v3059, 7
    %v3061 = vsub.s32 %v3058, %v3060
    %v3062 = vrot.slane %v3046, %v3061
    %v3064 = vunpack.c.l.s4 1966171168
    %v3065 = vunpack.c.0.s8 %v3064
    %v3066 = vlaneseq
    %v3067 = vshrl.u32 %v3066, 7
    %v3068 = vsub.s32 %v3065, %v3067
    %v3069 = vrot.slane %v3047, %v3068
    %v3071 = vunpack.c.l.s4 1966171168
    %v3072 = vunpack.c.0.s8 %v3071
    %v3073 = vlaneseq
    %v3074 = vshrl.u32 %v3073, 7
    %v3075 = vsub.s32 %v3072, %v3074
    %v3076 = vrot.slane %v3048, %v3075
    %v3077 = vcombine.high %v3055, %v3055
    %v3078 = vcombine.high %v3062, %v3062
    %v3079 = vcombine.high %v3069, %v3069
    %v3080 = vcombine.high %v3076, %v3076
    %v3081 = vcombine.high %v3029, %v3029
    %v3083 = vunpack.c.l.s4 1966171168
    %v3084 = vunpack.c.0.s8 %v3083
    %v3085 = vlaneseq
    %v3086 = vshrl.u32 %v3085, 7
    %v3087 = vsub.s32 %v3084, %v3086
    %v3088 = vrot.slane %v3029, %v3087
    %v3090 = vunpack.c.l.s4 1966171168
    %v3091 = vunpack.c.0.s8 %v3090
    %v3092 = vlaneseq
    %v3093 = vshrl.u32 %v3092, 7
    %v3094 = vsub.s32 %v3091, %v3093
    %v3095 = vrot.slane %v3081, %v3094
    %v3096 = vcombine.high %v3088, %v3088
    %v3097 = vcombine.high %v3095, %v3095
    %v3099 = vunpack.c.l.s4 1966171168
    %v3100 = vunpack.c.0.s8 %v3099
    %v3101 = vlaneseq
    %v3102 = vshrl.u32 %v3101, 7
    %v3103 = vsub.s32 %v3100, %v3102
    %v3104 = vrot.slane %v3088, %v3103
    %v3106 = vunpack.c.l.s4 1966171168
    %v3107 = vunpack.c.0.s8 %v3106
    %v3108 = vlaneseq
    %v3109 = vshrl.u32 %v3108, 7
    %v3110 = vsub.s32 %v3107, %v3109
    %v3111 = vrot.slane %v3095, %v3110
    %v3113 = vunpack.c.l.s4 1966171168
    %v3114 = vunpack.c.0.s8 %v3113
    %v3115 = vlaneseq
    %v3116 = vshrl.u32 %v3115, 7
    %v3117 = vsub.s32 %v3114, %v3116
    %v3118 = vrot.slane %v3096, %v3117
    %v3120 = vunpack.c.l.s4 1966171168
    %v3121 = vunpack.c.0.s8 %v3120
    %v3122 = vlaneseq
    %v3123 = vshrl.u32 %v3122, 7
    %v3124 = vsub.s32 %v3121, %v3123
    %v3125 = vrot.slane %v3097, %v3124
    %v3126 = vcombine.high %v3104, %v3104
    %v3127 = vcombine.high %v3111, %v3111
    %v3128 = vcombine.high %v3118, %v3118
    %v3129 = vcombine.high %v3125, %v3125
    %v3130 = vlaneseq
    %v3131 = vshrl.u32 %v3130, 7
    %v3132 = vsub.s32 0, %v3131
    %v3133 = vrot.slane %v3055, %v3132
    %v3134 = vlaneseq
    %v3135 = vshrl.u32 %v3134, 7
    %v3136 = vsub.s32 0, %v3135
    %v3137 = vrot.slane %v3069, %v3136
    %v3138 = vlaneseq
    %v3139 = vshrl.u32 %v3138, 7
    %v3140 = vsub.s32 0, %v3139
    %v3141 = vrot.slane %v3077, %v3140
    %v3142 = vlaneseq
    %v3143 = vshrl.u32 %v3142, 7
    %v3144 = vsub.s32 0, %v3143
    %v3145 = vrot.slane %v3079, %v3144
    %v3146 = vlaneseq
    %v3147 = vshrl.u32 %v3146, 7
    %v3148 = vsub.s32 0, %v3147
    %v3149 = vrot.slane %v3062, %v3148
    %v3150 = vlaneseq
    %v3151 = vshrl.u32 %v3150, 7
    %v3152 = vsub.s32 0, %v3151
    %v3153 = vrot.slane %v3076, %v3152
    %v3154 = vlaneseq
    %v3155 = vshrl.u32 %v3154, 7
    %v3156 = vsub.s32 0, %v3155
    %v3157 = vrot.slane %v3078, %v3156
    %v3158 = vlaneseq
    %v3159 = vshrl.u32 %v3158, 7
    %v3160 = vsub.s32 0, %v3159
    %v3161 = vrot.slane %v3080, %v3160
    %v3162 = vlaneseq
    %v3163 = vshrl.u32 %v3162, 7
    %v3164 = vsub.s32 0, %v3163
    %v3165 = vrot.slane %v3104, %v3164
    %v3166 = vlaneseq
    %v3167 = vshrl.u32 %v3166, 7
    %v3168 = vsub.s32 0, %v3167
    %v3169 = vrot.slane %v3118, %v3168
    %v3170 = vlaneseq
    %v3171 = vshrl.u32 %v3170, 7
    %v3172 = vsub.s32 0, %v3171
    %v3173 = vrot.slane %v3126, %v3172
    %v3174 = vlaneseq
    %v3175 = vshrl.u32 %v3174, 7
    %v3176 = vsub.s32 0, %v3175
    %v3177 = vrot.slane %v3128, %v3176
    %v3178 = vlaneseq
    %v3179 = vshrl.u32 %v3178, 7
    %v3180 = vsub.s32 0, %v3179
    %v3181 = vrot.slane %v3111, %v3180
    %v3182 = vlaneseq
    %v3183 = vshrl.u32 %v3182, 7
    %v3184 = vsub.s32 0, %v3183
    %v3185 = vrot.slane %v3125, %v3184
    %v3186 = vlaneseq
    %v3187 = vshrl.u32 %v3186, 7
    %v3188 = vsub.s32 0, %v3187
    %v3189 = vrot.slane %v3127, %v3188
    %v3190 = vlaneseq
    %v3191 = vshrl.u32 %v3190, 7
    %v3192 = vsub.s32 0, %v3191
    %v3193 = vrot.slane %v3129, %v3192
    %3194 = vset.pattern.permute.xlu0 0
    %3195 = vperm.xlu0 %3194, %v3133
    %v3196 = vpop.permute.xlu0 %3195
    %3198 = vset.pattern.permute.xlu0 0
    %3199 = vperm.xlu0 %3198, %v3137
    %v3200 = vpop.permute.xlu0 %3199
    %3202 = vset.pattern.permute.xlu0 0
    %3203 = vperm.xlu0 %3202, %v3141
    %v3204 = vpop.permute.xlu0 %3203
    %3206 = vset.pattern.permute.xlu0 0
    %3207 = vperm.xlu0 %3206, %v3145
    %v3208 = vpop.permute.xlu0 %3207
    %3210 = vset.pattern.permute.xlu0 0
    %3211 = vperm.xlu0 %3210, %v3149
    %v3212 = vpop.permute.xlu0 %3211
    %3214 = vset.pattern.permute.xlu0 0
    %3215 = vperm.xlu0 %3214, %v3153
    %v3216 = vpop.permute.xlu0 %3215
    %3218 = vset.pattern.permute.xlu0 0
    %3219 = vperm.xlu0 %3218, %v3157
    %v3220 = vpop.permute.xlu0 %3219
    %3222 = vset.pattern.permute.xlu0 0
    %3223 = vperm.xlu0 %3222, %v3161
    %v3224 = vpop.permute.xlu0 %3223
    %3226 = vset.pattern.permute.xlu0 0
    %3227 = vperm.xlu0 %3226, %v3165
    %v3228 = vpop.permute.xlu0 %3227
    %3230 = vset.pattern.permute.xlu0 0
    %3231 = vperm.xlu0 %3230, %v3169
    %v3232 = vpop.permute.xlu0 %3231
    %3234 = vset.pattern.permute.xlu0 0
    %3235 = vperm.xlu0 %3234, %v3173
    %v3236 = vpop.permute.xlu0 %3235
    %3238 = vset.pattern.permute.xlu0 0
    %3239 = vperm.xlu0 %3238, %v3177
    %v3240 = vpop.permute.xlu0 %3239
    %3242 = vset.pattern.permute.xlu0 0
    %3243 = vperm.xlu0 %3242, %v3181
    %v3244 = vpop.permute.xlu0 %3243
    %3246 = vset.pattern.permute.xlu0 0
    %3247 = vperm.xlu0 %3246, %v3185
    %v3248 = vpop.permute.xlu0 %3247
    %3250 = vset.pattern.permute.xlu0 0
    %3251 = vperm.xlu0 %3250, %v3189
    %v3252 = vpop.permute.xlu0 %3251
    %3254 = vset.pattern.permute.xlu0 0
    %3255 = vperm.xlu0 %3254, %v3193
    %v3256 = vpop.permute.xlu0 %3255
    %v3258 = vmul.f32 %v3196, %v435
    %v3259 = vmul.f32 %v3200, %v435
    %v3260 = vmul.f32 %v3204, %v435
    %v3261 = vmul.f32 %v3208, %v435
    %v3262 = vmul.f32 %v3212, %v435
    %v3263 = vmul.f32 %v3216, %v435
    %v3264 = vmul.f32 %v3220, %v435
    %v3265 = vmul.f32 %v3224, %v435
    %v3266 = vmul.f32 %v3228, %v435
    %v3267 = vmul.f32 %v3232, %v435
    %v3268 = vmul.f32 %v3236, %v435
    %v3269 = vmul.f32 %v3240, %v435
    %v3270 = vmul.f32 %v3244, %v435
    %v3271 = vmul.f32 %v3248, %v435
    %v3272 = vmul.f32 %v3252, %v435
    %v3273 = vmul.f32 %v3256, %v435
    %v3274 = vadd.f32 %v3011, %v3258
    %v3275 = vadd.f32 %v3012, %v3259
    %v3276 = vadd.f32 %v3013, %v3260
    %v3277 = vadd.f32 %v3014, %v3261
    %v3278 = vadd.f32 %v3015, %v3262
    %v3279 = vadd.f32 %v3016, %v3263
    %v3280 = vadd.f32 %v3017, %v3264
    %v3281 = vadd.f32 %v3018, %v3265
    %v3282 = vadd.f32 %v3019, %v3266
    %v3283 = vadd.f32 %v3020, %v3267
    %v3284 = vadd.f32 %v3021, %v3268
    %v3285 = vadd.f32 %v3022, %v3269
    %v3286 = vadd.f32 %v3023, %v3270
    %v3287 = vadd.f32 %v3024, %v3271
    %v3288 = vadd.f32 %v3025, %v3272
    %v3289 = vadd.f32 %v3026, %v3273
    %s3290 = scalar_lea.vmem %s4, 64
    %v3291 = vld [vmem:[%s3290] sm:$0xff]
    %v3292 = vld [vmem:[%s3290 + $0x8] sm:$0xff]
    %v3295 = vcombine.high %v3291, %v3291
    %v3297 = vunpack.c.l.s4 1966171168
    %v3298 = vunpack.c.0.s8 %v3297
    %v3299 = vlaneseq
    %v3300 = vshrl.u32 %v3299, 7
    %v3301 = vsub.s32 %v3298, %v3300
    %v3302 = vrot.slane %v3291, %v3301
    %v3304 = vunpack.c.l.s4 1966171168
    %v3305 = vunpack.c.0.s8 %v3304
    %v3306 = vlaneseq
    %v3307 = vshrl.u32 %v3306, 7
    %v3308 = vsub.s32 %v3305, %v3307
    %v3309 = vrot.slane %v3295, %v3308
    %v3310 = vcombine.high %v3302, %v3302
    %v3311 = vcombine.high %v3309, %v3309
    %v3313 = vunpack.c.l.s4 1966171168
    %v3314 = vunpack.c.0.s8 %v3313
    %v3315 = vlaneseq
    %v3316 = vshrl.u32 %v3315, 7
    %v3317 = vsub.s32 %v3314, %v3316
    %v3318 = vrot.slane %v3302, %v3317
    %v3320 = vunpack.c.l.s4 1966171168
    %v3321 = vunpack.c.0.s8 %v3320
    %v3322 = vlaneseq
    %v3323 = vshrl.u32 %v3322, 7
    %v3324 = vsub.s32 %v3321, %v3323
    %v3325 = vrot.slane %v3309, %v3324
    %v3327 = vunpack.c.l.s4 1966171168
    %v3328 = vunpack.c.0.s8 %v3327
    %v3329 = vlaneseq
    %v3330 = vshrl.u32 %v3329, 7
    %v3331 = vsub.s32 %v3328, %v3330
    %v3332 = vrot.slane %v3310, %v3331
    %v3334 = vunpack.c.l.s4 1966171168
    %v3335 = vunpack.c.0.s8 %v3334
    %v3336 = vlaneseq
    %v3337 = vshrl.u32 %v3336, 7
    %v3338 = vsub.s32 %v3335, %v3337
    %v3339 = vrot.slane %v3311, %v3338
    %v3340 = vcombine.high %v3318, %v3318
    %v3341 = vcombine.high %v3325, %v3325
    %v3342 = vcombine.high %v3332, %v3332
    %v3343 = vcombine.high %v3339, %v3339
    %v3344 = vcombine.high %v3292, %v3292
    %v3346 = vunpack.c.l.s4 1966171168
    %v3347 = vunpack.c.0.s8 %v3346
    %v3348 = vlaneseq
    %v3349 = vshrl.u32 %v3348, 7
    %v3350 = vsub.s32 %v3347, %v3349
    %v3351 = vrot.slane %v3292, %v3350
    %v3353 = vunpack.c.l.s4 1966171168
    %v3354 = vunpack.c.0.s8 %v3353
    %v3355 = vlaneseq
    %v3356 = vshrl.u32 %v3355, 7
    %v3357 = vsub.s32 %v3354, %v3356
    %v3358 = vrot.slane %v3344, %v3357
    %v3359 = vcombine.high %v3351, %v3351
    %v3360 = vcombine.high %v3358, %v3358
    %v3362 = vunpack.c.l.s4 1966171168
    %v3363 = vunpack.c.0.s8 %v3362
    %v3364 = vlaneseq
    %v3365 = vshrl.u32 %v3364, 7
    %v3366 = vsub.s32 %v3363, %v3365
    %v3367 = vrot.slane %v3351, %v3366
    %v3369 = vunpack.c.l.s4 1966171168
    %v3370 = vunpack.c.0.s8 %v3369
    %v3371 = vlaneseq
    %v3372 = vshrl.u32 %v3371, 7
    %v3373 = vsub.s32 %v3370, %v3372
    %v3374 = vrot.slane %v3358, %v3373
    %v3376 = vunpack.c.l.s4 1966171168
    %v3377 = vunpack.c.0.s8 %v3376
    %v3378 = vlaneseq
    %v3379 = vshrl.u32 %v3378, 7
    %v3380 = vsub.s32 %v3377, %v3379
    %v3381 = vrot.slane %v3359, %v3380
    %v3383 = vunpack.c.l.s4 1966171168
    %v3384 = vunpack.c.0.s8 %v3383
    %v3385 = vlaneseq
    %v3386 = vshrl.u32 %v3385, 7
    %v3387 = vsub.s32 %v3384, %v3386
    %v3388 = vrot.slane %v3360, %v3387
    %v3389 = vcombine.high %v3367, %v3367
    %v3390 = vcombine.high %v3374, %v3374
    %v3391 = vcombine.high %v3381, %v3381
    %v3392 = vcombine.high %v3388, %v3388
    %v3393 = vlaneseq
    %v3394 = vshrl.u32 %v3393, 7
    %v3395 = vsub.s32 0, %v3394
    %v3396 = vrot.slane %v3318, %v3395
    %v3397 = vlaneseq
    %v3398 = vshrl.u32 %v3397, 7
    %v3399 = vsub.s32 0, %v3398
    %v3400 = vrot.slane %v3332, %v3399
    %v3401 = vlaneseq
    %v3402 = vshrl.u32 %v3401, 7
    %v3403 = vsub.s32 0, %v3402
    %v3404 = vrot.slane %v3340, %v3403
    %v3405 = vlaneseq
    %v3406 = vshrl.u32 %v3405, 7
    %v3407 = vsub.s32 0, %v3406
    %v3408 = vrot.slane %v3342, %v3407
    %v3409 = vlaneseq
    %v3410 = vshrl.u32 %v3409, 7
    %v3411 = vsub.s32 0, %v3410
    %v3412 = vrot.slane %v3325, %v3411
    %v3413 = vlaneseq
    %v3414 = vshrl.u32 %v3413, 7
    %v3415 = vsub.s32 0, %v3414
    %v3416 = vrot.slane %v3339, %v3415
    %v3417 = vlaneseq
    %v3418 = vshrl.u32 %v3417, 7
    %v3419 = vsub.s32 0, %v3418
    %v3420 = vrot.slane %v3341, %v3419
    %v3421 = vlaneseq
    %v3422 = vshrl.u32 %v3421, 7
    %v3423 = vsub.s32 0, %v3422
    %v3424 = vrot.slane %v3343, %v3423
    %v3425 = vlaneseq
    %v3426 = vshrl.u32 %v3425, 7
    %v3427 = vsub.s32 0, %v3426
    %v3428 = vrot.slane %v3367, %v3427
    %v3429 = vlaneseq
    %v3430 = vshrl.u32 %v3429, 7
    %v3431 = vsub.s32 0, %v3430
    %v3432 = vrot.slane %v3381, %v3431
    %v3433 = vlaneseq
    %v3434 = vshrl.u32 %v3433, 7
    %v3435 = vsub.s32 0, %v3434
    %v3436 = vrot.slane %v3389, %v3435
    %v3437 = vlaneseq
    %v3438 = vshrl.u32 %v3437, 7
    %v3439 = vsub.s32 0, %v3438
    %v3440 = vrot.slane %v3391, %v3439
    %v3441 = vlaneseq
    %v3442 = vshrl.u32 %v3441, 7
    %v3443 = vsub.s32 0, %v3442
    %v3444 = vrot.slane %v3374, %v3443
    %v3445 = vlaneseq
    %v3446 = vshrl.u32 %v3445, 7
    %v3447 = vsub.s32 0, %v3446
    %v3448 = vrot.slane %v3388, %v3447
    %v3449 = vlaneseq
    %v3450 = vshrl.u32 %v3449, 7
    %v3451 = vsub.s32 0, %v3450
    %v3452 = vrot.slane %v3390, %v3451
    %v3453 = vlaneseq
    %v3454 = vshrl.u32 %v3453, 7
    %v3455 = vsub.s32 0, %v3454
    %v3456 = vrot.slane %v3392, %v3455
    %3457 = vset.pattern.permute.xlu0 0
    %3458 = vperm.xlu0 %3457, %v3396
    %v3459 = vpop.permute.xlu0 %3458
    %3461 = vset.pattern.permute.xlu0 0
    %3462 = vperm.xlu0 %3461, %v3400
    %v3463 = vpop.permute.xlu0 %3462
    %3465 = vset.pattern.permute.xlu0 0
    %3466 = vperm.xlu0 %3465, %v3404
    %v3467 = vpop.permute.xlu0 %3466
    %3469 = vset.pattern.permute.xlu0 0
    %3470 = vperm.xlu0 %3469, %v3408
    %v3471 = vpop.permute.xlu0 %3470
    %3473 = vset.pattern.permute.xlu0 0
    %3474 = vperm.xlu0 %3473, %v3412
    %v3475 = vpop.permute.xlu0 %3474
    %3477 = vset.pattern.permute.xlu0 0
    %3478 = vperm.xlu0 %3477, %v3416
    %v3479 = vpop.permute.xlu0 %3478
    %3481 = vset.pattern.permute.xlu0 0
    %3482 = vperm.xlu0 %3481, %v3420
    %v3483 = vpop.permute.xlu0 %3482
    %3485 = vset.pattern.permute.xlu0 0
    %3486 = vperm.xlu0 %3485, %v3424
    %v3487 = vpop.permute.xlu0 %3486
    %3489 = vset.pattern.permute.xlu0 0
    %3490 = vperm.xlu0 %3489, %v3428
    %v3491 = vpop.permute.xlu0 %3490
    %3493 = vset.pattern.permute.xlu0 0
    %3494 = vperm.xlu0 %3493, %v3432
    %v3495 = vpop.permute.xlu0 %3494
    %3497 = vset.pattern.permute.xlu0 0
    %3498 = vperm.xlu0 %3497, %v3436
    %v3499 = vpop.permute.xlu0 %3498
    %3501 = vset.pattern.permute.xlu0 0
    %3502 = vperm.xlu0 %3501, %v3440
    %v3503 = vpop.permute.xlu0 %3502
    %3505 = vset.pattern.permute.xlu0 0
    %3506 = vperm.xlu0 %3505, %v3444
    %v3507 = vpop.permute.xlu0 %3506
    %3509 = vset.pattern.permute.xlu0 0
    %3510 = vperm.xlu0 %3509, %v3448
    %v3511 = vpop.permute.xlu0 %3510
    %3513 = vset.pattern.permute.xlu0 0
    %3514 = vperm.xlu0 %3513, %v3452
    %v3515 = vpop.permute.xlu0 %3514
    %3517 = vset.pattern.permute.xlu0 0
    %3518 = vperm.xlu0 %3517, %v3456
    %v3519 = vpop.permute.xlu0 %3518
    %v3521 = vmul.f32 %v3459, %v435
    %v3522 = vmul.f32 %v3463, %v435
    %v3523 = vmul.f32 %v3467, %v435
    %v3524 = vmul.f32 %v3471, %v435
    %v3525 = vmul.f32 %v3475, %v435
    %v3526 = vmul.f32 %v3479, %v435
    %v3527 = vmul.f32 %v3483, %v435
    %v3528 = vmul.f32 %v3487, %v435
    %v3529 = vmul.f32 %v3491, %v435
    %v3530 = vmul.f32 %v3495, %v435
    %v3531 = vmul.f32 %v3499, %v435
    %v3532 = vmul.f32 %v3503, %v435
    %v3533 = vmul.f32 %v3507, %v435
    %v3534 = vmul.f32 %v3511, %v435
    %v3535 = vmul.f32 %v3515, %v435
    %v3536 = vmul.f32 %v3519, %v435
    %3553 = vrot.lane.b32.xlu0 %v3521, 127
    %v3554 = vpop.permute.xlu0 %3553
    %3555 = vrot.lane.b32.xlu0 %v3522, 127
    %v3556 = vpop.permute.xlu0 %3555
    %3557 = vrot.lane.b32.xlu0 %v3523, 127
    %v3558 = vpop.permute.xlu0 %3557
    %3559 = vrot.lane.b32.xlu0 %v3524, 127
    %v3560 = vpop.permute.xlu0 %3559
    %3561 = vrot.lane.b32.xlu0 %v3525, 127
    %v3562 = vpop.permute.xlu0 %3561
    %3563 = vrot.lane.b32.xlu0 %v3526, 127
    %v3564 = vpop.permute.xlu0 %3563
    %3565 = vrot.lane.b32.xlu0 %v3527, 127
    %v3566 = vpop.permute.xlu0 %3565
    %3567 = vrot.lane.b32.xlu0 %v3528, 127
    %v3568 = vpop.permute.xlu0 %3567
    %3569 = vrot.lane.b32.xlu0 %v3529, 127
    %v3570 = vpop.permute.xlu0 %3569
    %3571 = vrot.lane.b32.xlu0 %v3530, 127
    %v3572 = vpop.permute.xlu0 %3571
    %3573 = vrot.lane.b32.xlu0 %v3531, 127
    %v3574 = vpop.permute.xlu0 %3573
    %3575 = vrot.lane.b32.xlu0 %v3532, 127
    %v3576 = vpop.permute.xlu0 %3575
    %3577 = vrot.lane.b32.xlu0 %v3533, 127
    %v3578 = vpop.permute.xlu0 %3577
    %3579 = vrot.lane.b32.xlu0 %v3534, 127
    %v3580 = vpop.permute.xlu0 %3579
    %3581 = vrot.lane.b32.xlu0 %v3535, 127
    %v3582 = vpop.permute.xlu0 %3581
    %3583 = vrot.lane.b32.xlu0 %v3536, 127
    %v3584 = vpop.permute.xlu0 %3583
    %v3601 = vadd.f32 %v3274, %v3554
    %v3602 = vadd.f32 %v3275, %v3556
    %v3603 = vadd.f32 %v3276, %v3558
    %v3604 = vadd.f32 %v3277, %v3560
    %v3605 = vadd.f32 %v3278, %v3562
    %v3606 = vadd.f32 %v3279, %v3564
    %v3607 = vadd.f32 %v3280, %v3566
    %v3608 = vadd.f32 %v3281, %v3568
    %v3609 = vadd.f32 %v3282, %v3570
    %v3610 = vadd.f32 %v3283, %v3572
    %v3611 = vadd.f32 %v3284, %v3574
    %v3612 = vadd.f32 %v3285, %v3576
    %v3613 = vadd.f32 %v3286, %v3578
    %v3614 = vadd.f32 %v3287, %v3580
    %v3615 = vadd.f32 %v3288, %v3582
    %v3616 = vadd.f32 %v3289, %v3584
    %s3617 = scalar_lea.vmem %s3, 80
    %v3618 = vld [vmem:[%s3617] sm:$0xff]
    %v3619 = vld [vmem:[%s3617 + $0x8] sm:$0xff]
    %v3622 = vcombine.high %v3618, %v3618
    %v3624 = vunpack.c.l.s4 1966171168
    %v3625 = vunpack.c.0.s8 %v3624
    %v3626 = vlaneseq
    %v3627 = vshrl.u32 %v3626, 7
    %v3628 = vsub.s32 %v3625, %v3627
    %v3629 = vrot.slane %v3618, %v3628
    %v3631 = vunpack.c.l.s4 1966171168
    %v3632 = vunpack.c.0.s8 %v3631
    %v3633 = vlaneseq
    %v3634 = vshrl.u32 %v3633, 7
    %v3635 = vsub.s32 %v3632, %v3634
    %v3636 = vrot.slane %v3622, %v3635
    %v3637 = vcombine.high %v3629, %v3629
    %v3638 = vcombine.high %v3636, %v3636
    %v3640 = vunpack.c.l.s4 1966171168
    %v3641 = vunpack.c.0.s8 %v3640
    %v3642 = vlaneseq
    %v3643 = vshrl.u32 %v3642, 7
    %v3644 = vsub.s32 %v3641, %v3643
    %v3645 = vrot.slane %v3629, %v3644
    %v3647 = vunpack.c.l.s4 1966171168
    %v3648 = vunpack.c.0.s8 %v3647
    %v3649 = vlaneseq
    %v3650 = vshrl.u32 %v3649, 7
    %v3651 = vsub.s32 %v3648, %v3650
    %v3652 = vrot.slane %v3636, %v3651
    %v3654 = vunpack.c.l.s4 1966171168
    %v3655 = vunpack.c.0.s8 %v3654
    %v3656 = vlaneseq
    %v3657 = vshrl.u32 %v3656, 7
    %v3658 = vsub.s32 %v3655, %v3657
    %v3659 = vrot.slane %v3637, %v3658
    %v3661 = vunpack.c.l.s4 1966171168
    %v3662 = vunpack.c.0.s8 %v3661
    %v3663 = vlaneseq
    %v3664 = vshrl.u32 %v3663, 7
    %v3665 = vsub.s32 %v3662, %v3664
    %v3666 = vrot.slane %v3638, %v3665
    %v3667 = vcombine.high %v3645, %v3645
    %v3668 = vcombine.high %v3652, %v3652
    %v3669 = vcombine.high %v3659, %v3659
    %v3670 = vcombine.high %v3666, %v3666
    %v3671 = vcombine.high %v3619, %v3619
    %v3673 = vunpack.c.l.s4 1966171168
    %v3674 = vunpack.c.0.s8 %v3673
    %v3675 = vlaneseq
    %v3676 = vshrl.u32 %v3675, 7
    %v3677 = vsub.s32 %v3674, %v3676
    %v3678 = vrot.slane %v3619, %v3677
    %v3680 = vunpack.c.l.s4 1966171168
    %v3681 = vunpack.c.0.s8 %v3680
    %v3682 = vlaneseq
    %v3683 = vshrl.u32 %v3682, 7
    %v3684 = vsub.s32 %v3681, %v3683
    %v3685 = vrot.slane %v3671, %v3684
    %v3686 = vcombine.high %v3678, %v3678
    %v3687 = vcombine.high %v3685, %v3685
    %v3689 = vunpack.c.l.s4 1966171168
    %v3690 = vunpack.c.0.s8 %v3689
    %v3691 = vlaneseq
    %v3692 = vshrl.u32 %v3691, 7
    %v3693 = vsub.s32 %v3690, %v3692
    %v3694 = vrot.slane %v3678, %v3693
    %v3696 = vunpack.c.l.s4 1966171168
    %v3697 = vunpack.c.0.s8 %v3696
    %v3698 = vlaneseq
    %v3699 = vshrl.u32 %v3698, 7
    %v3700 = vsub.s32 %v3697, %v3699
    %v3701 = vrot.slane %v3685, %v3700
    %v3703 = vunpack.c.l.s4 1966171168
    %v3704 = vunpack.c.0.s8 %v3703
    %v3705 = vlaneseq
    %v3706 = vshrl.u32 %v3705, 7
    %v3707 = vsub.s32 %v3704, %v3706
    %v3708 = vrot.slane %v3686, %v3707
    %v3710 = vunpack.c.l.s4 1966171168
    %v3711 = vunpack.c.0.s8 %v3710
    %v3712 = vlaneseq
    %v3713 = vshrl.u32 %v3712, 7
    %v3714 = vsub.s32 %v3711, %v3713
    %v3715 = vrot.slane %v3687, %v3714
    %v3716 = vcombine.high %v3694, %v3694
    %v3717 = vcombine.high %v3701, %v3701
    %v3718 = vcombine.high %v3708, %v3708
    %v3719 = vcombine.high %v3715, %v3715
    %v3720 = vlaneseq
    %v3721 = vshrl.u32 %v3720, 7
    %v3722 = vsub.s32 0, %v3721
    %v3723 = vrot.slane %v3645, %v3722
    %v3724 = vlaneseq
    %v3725 = vshrl.u32 %v3724, 7
    %v3726 = vsub.s32 0, %v3725
    %v3727 = vrot.slane %v3659, %v3726
    %v3728 = vlaneseq
    %v3729 = vshrl.u32 %v3728, 7
    %v3730 = vsub.s32 0, %v3729
    %v3731 = vrot.slane %v3667, %v3730
    %v3732 = vlaneseq
    %v3733 = vshrl.u32 %v3732, 7
    %v3734 = vsub.s32 0, %v3733
    %v3735 = vrot.slane %v3669, %v3734
    %v3736 = vlaneseq
    %v3737 = vshrl.u32 %v3736, 7
    %v3738 = vsub.s32 0, %v3737
    %v3739 = vrot.slane %v3652, %v3738
    %v3740 = vlaneseq
    %v3741 = vshrl.u32 %v3740, 7
    %v3742 = vsub.s32 0, %v3741
    %v3743 = vrot.slane %v3666, %v3742
    %v3744 = vlaneseq
    %v3745 = vshrl.u32 %v3744, 7
    %v3746 = vsub.s32 0, %v3745
    %v3747 = vrot.slane %v3668, %v3746
    %v3748 = vlaneseq
    %v3749 = vshrl.u32 %v3748, 7
    %v3750 = vsub.s32 0, %v3749
    %v3751 = vrot.slane %v3670, %v3750
    %v3752 = vlaneseq
    %v3753 = vshrl.u32 %v3752, 7
    %v3754 = vsub.s32 0, %v3753
    %v3755 = vrot.slane %v3694, %v3754
    %v3756 = vlaneseq
    %v3757 = vshrl.u32 %v3756, 7
    %v3758 = vsub.s32 0, %v3757
    %v3759 = vrot.slane %v3708, %v3758
    %v3760 = vlaneseq
    %v3761 = vshrl.u32 %v3760, 7
    %v3762 = vsub.s32 0, %v3761
    %v3763 = vrot.slane %v3716, %v3762
    %v3764 = vlaneseq
    %v3765 = vshrl.u32 %v3764, 7
    %v3766 = vsub.s32 0, %v3765
    %v3767 = vrot.slane %v3718, %v3766
    %v3768 = vlaneseq
    %v3769 = vshrl.u32 %v3768, 7
    %v3770 = vsub.s32 0, %v3769
    %v3771 = vrot.slane %v3701, %v3770
    %v3772 = vlaneseq
    %v3773 = vshrl.u32 %v3772, 7
    %v3774 = vsub.s32 0, %v3773
    %v3775 = vrot.slane %v3715, %v3774
    %v3776 = vlaneseq
    %v3777 = vshrl.u32 %v3776, 7
    %v3778 = vsub.s32 0, %v3777
    %v3779 = vrot.slane %v3717, %v3778
    %v3780 = vlaneseq
    %v3781 = vshrl.u32 %v3780, 7
    %v3782 = vsub.s32 0, %v3781
    %v3783 = vrot.slane %v3719, %v3782
    %3784 = vset.pattern.permute.xlu0 0
    %3785 = vperm.xlu0 %3784, %v3723
    %v3786 = vpop.permute.xlu0 %3785
    %3788 = vset.pattern.permute.xlu0 0
    %3789 = vperm.xlu0 %3788, %v3727
    %v3790 = vpop.permute.xlu0 %3789
    %3792 = vset.pattern.permute.xlu0 0
    %3793 = vperm.xlu0 %3792, %v3731
    %v3794 = vpop.permute.xlu0 %3793
    %3796 = vset.pattern.permute.xlu0 0
    %3797 = vperm.xlu0 %3796, %v3735
    %v3798 = vpop.permute.xlu0 %3797
    %3800 = vset.pattern.permute.xlu0 0
    %3801 = vperm.xlu0 %3800, %v3739
    %v3802 = vpop.permute.xlu0 %3801
    %3804 = vset.pattern.permute.xlu0 0
    %3805 = vperm.xlu0 %3804, %v3743
    %v3806 = vpop.permute.xlu0 %3805
    %3808 = vset.pattern.permute.xlu0 0
    %3809 = vperm.xlu0 %3808, %v3747
    %v3810 = vpop.permute.xlu0 %3809
    %3812 = vset.pattern.permute.xlu0 0
    %3813 = vperm.xlu0 %3812, %v3751
    %v3814 = vpop.permute.xlu0 %3813
    %3816 = vset.pattern.permute.xlu0 0
    %3817 = vperm.xlu0 %3816, %v3755
    %v3818 = vpop.permute.xlu0 %3817
    %3820 = vset.pattern.permute.xlu0 0
    %3821 = vperm.xlu0 %3820, %v3759
    %v3822 = vpop.permute.xlu0 %3821
    %3824 = vset.pattern.permute.xlu0 0
    %3825 = vperm.xlu0 %3824, %v3763
    %v3826 = vpop.permute.xlu0 %3825
    %3828 = vset.pattern.permute.xlu0 0
    %3829 = vperm.xlu0 %3828, %v3767
    %v3830 = vpop.permute.xlu0 %3829
    %3832 = vset.pattern.permute.xlu0 0
    %3833 = vperm.xlu0 %3832, %v3771
    %v3834 = vpop.permute.xlu0 %3833
    %3836 = vset.pattern.permute.xlu0 0
    %3837 = vperm.xlu0 %3836, %v3775
    %v3838 = vpop.permute.xlu0 %3837
    %3840 = vset.pattern.permute.xlu0 0
    %3841 = vperm.xlu0 %3840, %v3779
    %v3842 = vpop.permute.xlu0 %3841
    %3844 = vset.pattern.permute.xlu0 0
    %3845 = vperm.xlu0 %3844, %v3783
    %v3846 = vpop.permute.xlu0 %3845
    %v3848 = vmul.f32 %v3786, %v436
    %v3849 = vmul.f32 %v3790, %v436
    %v3850 = vmul.f32 %v3794, %v436
    %v3851 = vmul.f32 %v3798, %v436
    %v3852 = vmul.f32 %v3802, %v436
    %v3853 = vmul.f32 %v3806, %v436
    %v3854 = vmul.f32 %v3810, %v436
    %v3855 = vmul.f32 %v3814, %v436
    %v3856 = vmul.f32 %v3818, %v436
    %v3857 = vmul.f32 %v3822, %v436
    %v3858 = vmul.f32 %v3826, %v436
    %v3859 = vmul.f32 %v3830, %v436
    %v3860 = vmul.f32 %v3834, %v436
    %v3861 = vmul.f32 %v3838, %v436
    %v3862 = vmul.f32 %v3842, %v436
    %v3863 = vmul.f32 %v3846, %v436
    %v3864 = vadd.f32 %v3601, %v3848
    %v3865 = vadd.f32 %v3602, %v3849
    %v3866 = vadd.f32 %v3603, %v3850
    %v3867 = vadd.f32 %v3604, %v3851
    %v3868 = vadd.f32 %v3605, %v3852
    %v3869 = vadd.f32 %v3606, %v3853
    %v3870 = vadd.f32 %v3607, %v3854
    %v3871 = vadd.f32 %v3608, %v3855
    %v3872 = vadd.f32 %v3609, %v3856
    %v3873 = vadd.f32 %v3610, %v3857
    %v3874 = vadd.f32 %v3611, %v3858
    %v3875 = vadd.f32 %v3612, %v3859
    %v3876 = vadd.f32 %v3613, %v3860
    %v3877 = vadd.f32 %v3614, %v3861
    %v3878 = vadd.f32 %v3615, %v3862
    %v3879 = vadd.f32 %v3616, %v3863
    %s3880 = scalar_lea.vmem %s4, 80
    %v3881 = vld [vmem:[%s3880] sm:$0xff]
    %v3882 = vld [vmem:[%s3880 + $0x8] sm:$0xff]
    %v3885 = vcombine.high %v3881, %v3881
    %v3887 = vunpack.c.l.s4 1966171168
    %v3888 = vunpack.c.0.s8 %v3887
    %v3889 = vlaneseq
    %v3890 = vshrl.u32 %v3889, 7
    %v3891 = vsub.s32 %v3888, %v3890
    %v3892 = vrot.slane %v3881, %v3891
    %v3894 = vunpack.c.l.s4 1966171168
    %v3895 = vunpack.c.0.s8 %v3894
    %v3896 = vlaneseq
    %v3897 = vshrl.u32 %v3896, 7
    %v3898 = vsub.s32 %v3895, %v3897
    %v3899 = vrot.slane %v3885, %v3898
    %v3900 = vcombine.high %v3892, %v3892
    %v3901 = vcombine.high %v3899, %v3899
    %v3903 = vunpack.c.l.s4 1966171168
    %v3904 = vunpack.c.0.s8 %v3903
    %v3905 = vlaneseq
    %v3906 = vshrl.u32 %v3905, 7
    %v3907 = vsub.s32 %v3904, %v3906
    %v3908 = vrot.slane %v3892, %v3907
    %v3910 = vunpack.c.l.s4 1966171168
    %v3911 = vunpack.c.0.s8 %v3910
    %v3912 = vlaneseq
    %v3913 = vshrl.u32 %v3912, 7
    %v3914 = vsub.s32 %v3911, %v3913
    %v3915 = vrot.slane %v3899, %v3914
    %v3917 = vunpack.c.l.s4 1966171168
    %v3918 = vunpack.c.0.s8 %v3917
    %v3919 = vlaneseq
    %v3920 = vshrl.u32 %v3919, 7
    %v3921 = vsub.s32 %v3918, %v3920
    %v3922 = vrot.slane %v3900, %v3921
    %v3924 = vunpack.c.l.s4 1966171168
    %v3925 = vunpack.c.0.s8 %v3924
    %v3926 = vlaneseq
    %v3927 = vshrl.u32 %v3926, 7
    %v3928 = vsub.s32 %v3925, %v3927
    %v3929 = vrot.slane %v3901, %v3928
    %v3930 = vcombine.high %v3908, %v3908
    %v3931 = vcombine.high %v3915, %v3915
    %v3932 = vcombine.high %v3922, %v3922
    %v3933 = vcombine.high %v3929, %v3929
    %v3934 = vcombine.high %v3882, %v3882
    %v3936 = vunpack.c.l.s4 1966171168
    %v3937 = vunpack.c.0.s8 %v3936
    %v3938 = vlaneseq
    %v3939 = vshrl.u32 %v3938, 7
    %v3940 = vsub.s32 %v3937, %v3939
    %v3941 = vrot.slane %v3882, %v3940
    %v3943 = vunpack.c.l.s4 1966171168
    %v3944 = vunpack.c.0.s8 %v3943
    %v3945 = vlaneseq
    %v3946 = vshrl.u32 %v3945, 7
    %v3947 = vsub.s32 %v3944, %v3946
    %v3948 = vrot.slane %v3934, %v3947
    %v3949 = vcombine.high %v3941, %v3941
    %v3950 = vcombine.high %v3948, %v3948
    %v3952 = vunpack.c.l.s4 1966171168
    %v3953 = vunpack.c.0.s8 %v3952
    %v3954 = vlaneseq
    %v3955 = vshrl.u32 %v3954, 7
    %v3956 = vsub.s32 %v3953, %v3955
    %v3957 = vrot.slane %v3941, %v3956
    %v3959 = vunpack.c.l.s4 1966171168
    %v3960 = vunpack.c.0.s8 %v3959
    %v3961 = vlaneseq
    %v3962 = vshrl.u32 %v3961, 7
    %v3963 = vsub.s32 %v3960, %v3962
    %v3964 = vrot.slane %v3948, %v3963
    %v3966 = vunpack.c.l.s4 1966171168
    %v3967 = vunpack.c.0.s8 %v3966
    %v3968 = vlaneseq
    %v3969 = vshrl.u32 %v3968, 7
    %v3970 = vsub.s32 %v3967, %v3969
    %v3971 = vrot.slane %v3949, %v3970
    %v3973 = vunpack.c.l.s4 1966171168
    %v3974 = vunpack.c.0.s8 %v3973
    %v3975 = vlaneseq
    %v3976 = vshrl.u32 %v3975, 7
    %v3977 = vsub.s32 %v3974, %v3976
    %v3978 = vrot.slane %v3950, %v3977
    %v3979 = vcombine.high %v3957, %v3957
    %v3980 = vcombine.high %v3964, %v3964
    %v3981 = vcombine.high %v3971, %v3971
    %v3982 = vcombine.high %v3978, %v3978
    %v3983 = vlaneseq
    %v3984 = vshrl.u32 %v3983, 7
    %v3985 = vsub.s32 0, %v3984
    %v3986 = vrot.slane %v3908, %v3985
    %v3987 = vlaneseq
    %v3988 = vshrl.u32 %v3987, 7
    %v3989 = vsub.s32 0, %v3988
    %v3990 = vrot.slane %v3922, %v3989
    %v3991 = vlaneseq
    %v3992 = vshrl.u32 %v3991, 7
    %v3993 = vsub.s32 0, %v3992
    %v3994 = vrot.slane %v3930, %v3993
    %v3995 = vlaneseq
    %v3996 = vshrl.u32 %v3995, 7
    %v3997 = vsub.s32 0, %v3996
    %v3998 = vrot.slane %v3932, %v3997
    %v3999 = vlaneseq
    %v4000 = vshrl.u32 %v3999, 7
    %v4001 = vsub.s32 0, %v4000
    %v4002 = vrot.slane %v3915, %v4001
    %v4003 = vlaneseq
    %v4004 = vshrl.u32 %v4003, 7
    %v4005 = vsub.s32 0, %v4004
    %v4006 = vrot.slane %v3929, %v4005
    %v4007 = vlaneseq
    %v4008 = vshrl.u32 %v4007, 7
    %v4009 = vsub.s32 0, %v4008
    %v4010 = vrot.slane %v3931, %v4009
    %v4011 = vlaneseq
    %v4012 = vshrl.u32 %v4011, 7
    %v4013 = vsub.s32 0, %v4012
    %v4014 = vrot.slane %v3933, %v4013
    %v4015 = vlaneseq
    %v4016 = vshrl.u32 %v4015, 7
    %v4017 = vsub.s32 0, %v4016
    %v4018 = vrot.slane %v3957, %v4017
    %v4019 = vlaneseq
    %v4020 = vshrl.u32 %v4019, 7
    %v4021 = vsub.s32 0, %v4020
    %v4022 = vrot.slane %v3971, %v4021
    %v4023 = vlaneseq
    %v4024 = vshrl.u32 %v4023, 7
    %v4025 = vsub.s32 0, %v4024
    %v4026 = vrot.slane %v3979, %v4025
    %v4027 = vlaneseq
    %v4028 = vshrl.u32 %v4027, 7
    %v4029 = vsub.s32 0, %v4028
    %v4030 = vrot.slane %v3981, %v4029
    %v4031 = vlaneseq
    %v4032 = vshrl.u32 %v4031, 7
    %v4033 = vsub.s32 0, %v4032
    %v4034 = vrot.slane %v3964, %v4033
    %v4035 = vlaneseq
    %v4036 = vshrl.u32 %v4035, 7
    %v4037 = vsub.s32 0, %v4036
    %v4038 = vrot.slane %v3978, %v4037
    %v4039 = vlaneseq
    %v4040 = vshrl.u32 %v4039, 7
    %v4041 = vsub.s32 0, %v4040
    %v4042 = vrot.slane %v3980, %v4041
    %v4043 = vlaneseq
    %v4044 = vshrl.u32 %v4043, 7
    %v4045 = vsub.s32 0, %v4044
    %v4046 = vrot.slane %v3982, %v4045
    %4047 = vset.pattern.permute.xlu0 0
    %4048 = vperm.xlu0 %4047, %v3986
    %v4049 = vpop.permute.xlu0 %4048
    %4051 = vset.pattern.permute.xlu0 0
    %4052 = vperm.xlu0 %4051, %v3990
    %v4053 = vpop.permute.xlu0 %4052
    %4055 = vset.pattern.permute.xlu0 0
    %4056 = vperm.xlu0 %4055, %v3994
    %v4057 = vpop.permute.xlu0 %4056
    %4059 = vset.pattern.permute.xlu0 0
    %4060 = vperm.xlu0 %4059, %v3998
    %v4061 = vpop.permute.xlu0 %4060
    %4063 = vset.pattern.permute.xlu0 0
    %4064 = vperm.xlu0 %4063, %v4002
    %v4065 = vpop.permute.xlu0 %4064
    %4067 = vset.pattern.permute.xlu0 0
    %4068 = vperm.xlu0 %4067, %v4006
    %v4069 = vpop.permute.xlu0 %4068
    %4071 = vset.pattern.permute.xlu0 0
    %4072 = vperm.xlu0 %4071, %v4010
    %v4073 = vpop.permute.xlu0 %4072
    %4075 = vset.pattern.permute.xlu0 0
    %4076 = vperm.xlu0 %4075, %v4014
    %v4077 = vpop.permute.xlu0 %4076
    %4079 = vset.pattern.permute.xlu0 0
    %4080 = vperm.xlu0 %4079, %v4018
    %v4081 = vpop.permute.xlu0 %4080
    %4083 = vset.pattern.permute.xlu0 0
    %4084 = vperm.xlu0 %4083, %v4022
    %v4085 = vpop.permute.xlu0 %4084
    %4087 = vset.pattern.permute.xlu0 0
    %4088 = vperm.xlu0 %4087, %v4026
    %v4089 = vpop.permute.xlu0 %4088
    %4091 = vset.pattern.permute.xlu0 0
    %4092 = vperm.xlu0 %4091, %v4030
    %v4093 = vpop.permute.xlu0 %4092
    %4095 = vset.pattern.permute.xlu0 0
    %4096 = vperm.xlu0 %4095, %v4034
    %v4097 = vpop.permute.xlu0 %4096
    %4099 = vset.pattern.permute.xlu0 0
    %4100 = vperm.xlu0 %4099, %v4038
    %v4101 = vpop.permute.xlu0 %4100
    %4103 = vset.pattern.permute.xlu0 0
    %4104 = vperm.xlu0 %4103, %v4042
    %v4105 = vpop.permute.xlu0 %4104
    %4107 = vset.pattern.permute.xlu0 0
    %4108 = vperm.xlu0 %4107, %v4046
    %v4109 = vpop.permute.xlu0 %4108
    %v4111 = vmul.f32 %v4049, %v436
    %v4112 = vmul.f32 %v4053, %v436
    %v4113 = vmul.f32 %v4057, %v436
    %v4114 = vmul.f32 %v4061, %v436
    %v4115 = vmul.f32 %v4065, %v436
    %v4116 = vmul.f32 %v4069, %v436
    %v4117 = vmul.f32 %v4073, %v436
    %v4118 = vmul.f32 %v4077, %v436
    %v4119 = vmul.f32 %v4081, %v436
    %v4120 = vmul.f32 %v4085, %v436
    %v4121 = vmul.f32 %v4089, %v436
    %v4122 = vmul.f32 %v4093, %v436
    %v4123 = vmul.f32 %v4097, %v436
    %v4124 = vmul.f32 %v4101, %v436
    %v4125 = vmul.f32 %v4105, %v436
    %v4126 = vmul.f32 %v4109, %v436
    %4143 = vrot.lane.b32.xlu0 %v4111, 127
    %v4144 = vpop.permute.xlu0 %4143
    %4145 = vrot.lane.b32.xlu0 %v4112, 127
    %v4146 = vpop.permute.xlu0 %4145
    %4147 = vrot.lane.b32.xlu0 %v4113, 127
    %v4148 = vpop.permute.xlu0 %4147
    %4149 = vrot.lane.b32.xlu0 %v4114, 127
    %v4150 = vpop.permute.xlu0 %4149
    %4151 = vrot.lane.b32.xlu0 %v4115, 127
    %v4152 = vpop.permute.xlu0 %4151
    %4153 = vrot.lane.b32.xlu0 %v4116, 127
    %v4154 = vpop.permute.xlu0 %4153
    %4155 = vrot.lane.b32.xlu0 %v4117, 127
    %v4156 = vpop.permute.xlu0 %4155
    %4157 = vrot.lane.b32.xlu0 %v4118, 127
    %v4158 = vpop.permute.xlu0 %4157
    %4159 = vrot.lane.b32.xlu0 %v4119, 127
    %v4160 = vpop.permute.xlu0 %4159
    %4161 = vrot.lane.b32.xlu0 %v4120, 127
    %v4162 = vpop.permute.xlu0 %4161
    %4163 = vrot.lane.b32.xlu0 %v4121, 127
    %v4164 = vpop.permute.xlu0 %4163
    %4165 = vrot.lane.b32.xlu0 %v4122, 127
    %v4166 = vpop.permute.xlu0 %4165
    %4167 = vrot.lane.b32.xlu0 %v4123, 127
    %v4168 = vpop.permute.xlu0 %4167
    %4169 = vrot.lane.b32.xlu0 %v4124, 127
    %v4170 = vpop.permute.xlu0 %4169
    %4171 = vrot.lane.b32.xlu0 %v4125, 127
    %v4172 = vpop.permute.xlu0 %4171
    %4173 = vrot.lane.b32.xlu0 %v4126, 127
    %v4174 = vpop.permute.xlu0 %4173
    %v4191 = vadd.f32 %v3864, %v4144
    %v4192 = vadd.f32 %v3865, %v4146
    %v4193 = vadd.f32 %v3866, %v4148
    %v4194 = vadd.f32 %v3867, %v4150
    %v4195 = vadd.f32 %v3868, %v4152
    %v4196 = vadd.f32 %v3869, %v4154
    %v4197 = vadd.f32 %v3870, %v4156
    %v4198 = vadd.f32 %v3871, %v4158
    %v4199 = vadd.f32 %v3872, %v4160
    %v4200 = vadd.f32 %v3873, %v4162
    %v4201 = vadd.f32 %v3874, %v4164
    %v4202 = vadd.f32 %v3875, %v4166
    %v4203 = vadd.f32 %v3876, %v4168
    %v4204 = vadd.f32 %v3877, %v4170
    %v4205 = vadd.f32 %v3878, %v4172
    %v4206 = vadd.f32 %v3879, %v4174
    %s4207 = scalar_lea.vmem %s3, 96
    %v4208 = vld [vmem:[%s4207] sm:$0xff]
    %v4209 = vld [vmem:[%s4207 + $0x8] sm:$0xff]
    %v4212 = vcombine.high %v4208, %v4208
    %v4214 = vunpack.c.l.s4 1966171168
    %v4215 = vunpack.c.0.s8 %v4214
    %v4216 = vlaneseq
    %v4217 = vshrl.u32 %v4216, 7
    %v4218 = vsub.s32 %v4215, %v4217
    %v4219 = vrot.slane %v4208, %v4218
    %v4221 = vunpack.c.l.s4 1966171168
    %v4222 = vunpack.c.0.s8 %v4221
    %v4223 = vlaneseq
    %v4224 = vshrl.u32 %v4223, 7
    %v4225 = vsub.s32 %v4222, %v4224
    %v4226 = vrot.slane %v4212, %v4225
    %v4227 = vcombine.high %v4219, %v4219
    %v4228 = vcombine.high %v4226, %v4226
    %v4230 = vunpack.c.l.s4 1966171168
    %v4231 = vunpack.c.0.s8 %v4230
    %v4232 = vlaneseq
    %v4233 = vshrl.u32 %v4232, 7
    %v4234 = vsub.s32 %v4231, %v4233
    %v4235 = vrot.slane %v4219, %v4234
    %v4237 = vunpack.c.l.s4 1966171168
    %v4238 = vunpack.c.0.s8 %v4237
    %v4239 = vlaneseq
    %v4240 = vshrl.u32 %v4239, 7
    %v4241 = vsub.s32 %v4238, %v4240
    %v4242 = vrot.slane %v4226, %v4241
    %v4244 = vunpack.c.l.s4 1966171168
    %v4245 = vunpack.c.0.s8 %v4244
    %v4246 = vlaneseq
    %v4247 = vshrl.u32 %v4246, 7
    %v4248 = vsub.s32 %v4245, %v4247
    %v4249 = vrot.slane %v4227, %v4248
    %v4251 = vunpack.c.l.s4 1966171168
    %v4252 = vunpack.c.0.s8 %v4251
    %v4253 = vlaneseq
    %v4254 = vshrl.u32 %v4253, 7
    %v4255 = vsub.s32 %v4252, %v4254
    %v4256 = vrot.slane %v4228, %v4255
    %v4257 = vcombine.high %v4235, %v4235
    %v4258 = vcombine.high %v4242, %v4242
    %v4259 = vcombine.high %v4249, %v4249
    %v4260 = vcombine.high %v4256, %v4256
    %v4261 = vcombine.high %v4209, %v4209
    %v4263 = vunpack.c.l.s4 1966171168
    %v4264 = vunpack.c.0.s8 %v4263
    %v4265 = vlaneseq
    %v4266 = vshrl.u32 %v4265, 7
    %v4267 = vsub.s32 %v4264, %v4266
    %v4268 = vrot.slane %v4209, %v4267
    %v4270 = vunpack.c.l.s4 1966171168
    %v4271 = vunpack.c.0.s8 %v4270
    %v4272 = vlaneseq
    %v4273 = vshrl.u32 %v4272, 7
    %v4274 = vsub.s32 %v4271, %v4273
    %v4275 = vrot.slane %v4261, %v4274
    %v4276 = vcombine.high %v4268, %v4268
    %v4277 = vcombine.high %v4275, %v4275
    %v4279 = vunpack.c.l.s4 1966171168
    %v4280 = vunpack.c.0.s8 %v4279
    %v4281 = vlaneseq
    %v4282 = vshrl.u32 %v4281, 7
    %v4283 = vsub.s32 %v4280, %v4282
    %v4284 = vrot.slane %v4268, %v4283
    %v4286 = vunpack.c.l.s4 1966171168
    %v4287 = vunpack.c.0.s8 %v4286
    %v4288 = vlaneseq
    %v4289 = vshrl.u32 %v4288, 7
    %v4290 = vsub.s32 %v4287, %v4289
    %v4291 = vrot.slane %v4275, %v4290
    %v4293 = vunpack.c.l.s4 1966171168
    %v4294 = vunpack.c.0.s8 %v4293
    %v4295 = vlaneseq
    %v4296 = vshrl.u32 %v4295, 7
    %v4297 = vsub.s32 %v4294, %v4296
    %v4298 = vrot.slane %v4276, %v4297
    %v4300 = vunpack.c.l.s4 1966171168
    %v4301 = vunpack.c.0.s8 %v4300
    %v4302 = vlaneseq
    %v4303 = vshrl.u32 %v4302, 7
    %v4304 = vsub.s32 %v4301, %v4303
    %v4305 = vrot.slane %v4277, %v4304
    %v4306 = vcombine.high %v4284, %v4284
    %v4307 = vcombine.high %v4291, %v4291
    %v4308 = vcombine.high %v4298, %v4298
    %v4309 = vcombine.high %v4305, %v4305
    %v4310 = vlaneseq
    %v4311 = vshrl.u32 %v4310, 7
    %v4312 = vsub.s32 0, %v4311
    %v4313 = vrot.slane %v4235, %v4312
    %v4314 = vlaneseq
    %v4315 = vshrl.u32 %v4314, 7
    %v4316 = vsub.s32 0, %v4315
    %v4317 = vrot.slane %v4249, %v4316
    %v4318 = vlaneseq
    %v4319 = vshrl.u32 %v4318, 7
    %v4320 = vsub.s32 0, %v4319
    %v4321 = vrot.slane %v4257, %v4320
    %v4322 = vlaneseq
    %v4323 = vshrl.u32 %v4322, 7
    %v4324 = vsub.s32 0, %v4323
    %v4325 = vrot.slane %v4259, %v4324
    %v4326 = vlaneseq
    %v4327 = vshrl.u32 %v4326, 7
    %v4328 = vsub.s32 0, %v4327
    %v4329 = vrot.slane %v4242, %v4328
    %v4330 = vlaneseq
    %v4331 = vshrl.u32 %v4330, 7
    %v4332 = vsub.s32 0, %v4331
    %v4333 = vrot.slane %v4256, %v4332
    %v4334 = vlaneseq
    %v4335 = vshrl.u32 %v4334, 7
    %v4336 = vsub.s32 0, %v4335
    %v4337 = vrot.slane %v4258, %v4336
    %v4338 = vlaneseq
    %v4339 = vshrl.u32 %v4338, 7
    %v4340 = vsub.s32 0, %v4339
    %v4341 = vrot.slane %v4260, %v4340
    %v4342 = vlaneseq
    %v4343 = vshrl.u32 %v4342, 7
    %v4344 = vsub.s32 0, %v4343
    %v4345 = vrot.slane %v4284, %v4344
    %v4346 = vlaneseq
    %v4347 = vshrl.u32 %v4346, 7
    %v4348 = vsub.s32 0, %v4347
    %v4349 = vrot.slane %v4298, %v4348
    %v4350 = vlaneseq
    %v4351 = vshrl.u32 %v4350, 7
    %v4352 = vsub.s32 0, %v4351
    %v4353 = vrot.slane %v4306, %v4352
    %v4354 = vlaneseq
    %v4355 = vshrl.u32 %v4354, 7
    %v4356 = vsub.s32 0, %v4355
    %v4357 = vrot.slane %v4308, %v4356
    %v4358 = vlaneseq
    %v4359 = vshrl.u32 %v4358, 7
    %v4360 = vsub.s32 0, %v4359
    %v4361 = vrot.slane %v4291, %v4360
    %v4362 = vlaneseq
    %v4363 = vshrl.u32 %v4362, 7
    %v4364 = vsub.s32 0, %v4363
    %v4365 = vrot.slane %v4305, %v4364
    %v4366 = vlaneseq
    %v4367 = vshrl.u32 %v4366, 7
    %v4368 = vsub.s32 0, %v4367
    %v4369 = vrot.slane %v4307, %v4368
    %v4370 = vlaneseq
    %v4371 = vshrl.u32 %v4370, 7
    %v4372 = vsub.s32 0, %v4371
    %v4373 = vrot.slane %v4309, %v4372
    %4374 = vset.pattern.permute.xlu0 0
    %4375 = vperm.xlu0 %4374, %v4313
    %v4376 = vpop.permute.xlu0 %4375
    %4378 = vset.pattern.permute.xlu0 0
    %4379 = vperm.xlu0 %4378, %v4317
    %v4380 = vpop.permute.xlu0 %4379
    %4382 = vset.pattern.permute.xlu0 0
    %4383 = vperm.xlu0 %4382, %v4321
    %v4384 = vpop.permute.xlu0 %4383
    %4386 = vset.pattern.permute.xlu0 0
    %4387 = vperm.xlu0 %4386, %v4325
    %v4388 = vpop.permute.xlu0 %4387
    %4390 = vset.pattern.permute.xlu0 0
    %4391 = vperm.xlu0 %4390, %v4329
    %v4392 = vpop.permute.xlu0 %4391
    %4394 = vset.pattern.permute.xlu0 0
    %4395 = vperm.xlu0 %4394, %v4333
    %v4396 = vpop.permute.xlu0 %4395
    %4398 = vset.pattern.permute.xlu0 0
    %4399 = vperm.xlu0 %4398, %v4337
    %v4400 = vpop.permute.xlu0 %4399
    %4402 = vset.pattern.permute.xlu0 0
    %4403 = vperm.xlu0 %4402, %v4341
    %v4404 = vpop.permute.xlu0 %4403
    %4406 = vset.pattern.permute.xlu0 0
    %4407 = vperm.xlu0 %4406, %v4345
    %v4408 = vpop.permute.xlu0 %4407
    %4410 = vset.pattern.permute.xlu0 0
    %4411 = vperm.xlu0 %4410, %v4349
    %v4412 = vpop.permute.xlu0 %4411
    %4414 = vset.pattern.permute.xlu0 0
    %4415 = vperm.xlu0 %4414, %v4353
    %v4416 = vpop.permute.xlu0 %4415
    %4418 = vset.pattern.permute.xlu0 0
    %4419 = vperm.xlu0 %4418, %v4357
    %v4420 = vpop.permute.xlu0 %4419
    %4422 = vset.pattern.permute.xlu0 0
    %4423 = vperm.xlu0 %4422, %v4361
    %v4424 = vpop.permute.xlu0 %4423
    %4426 = vset.pattern.permute.xlu0 0
    %4427 = vperm.xlu0 %4426, %v4365
    %v4428 = vpop.permute.xlu0 %4427
    %4430 = vset.pattern.permute.xlu0 0
    %4431 = vperm.xlu0 %4430, %v4369
    %v4432 = vpop.permute.xlu0 %4431
    %4434 = vset.pattern.permute.xlu0 0
    %4435 = vperm.xlu0 %4434, %v4373
    %v4436 = vpop.permute.xlu0 %4435
    %v4438 = vmul.f32 %v4376, %v437
    %v4439 = vmul.f32 %v4380, %v437
    %v4440 = vmul.f32 %v4384, %v437
    %v4441 = vmul.f32 %v4388, %v437
    %v4442 = vmul.f32 %v4392, %v437
    %v4443 = vmul.f32 %v4396, %v437
    %v4444 = vmul.f32 %v4400, %v437
    %v4445 = vmul.f32 %v4404, %v437
    %v4446 = vmul.f32 %v4408, %v437
    %v4447 = vmul.f32 %v4412, %v437
    %v4448 = vmul.f32 %v4416, %v437
    %v4449 = vmul.f32 %v4420, %v437
    %v4450 = vmul.f32 %v4424, %v437
    %v4451 = vmul.f32 %v4428, %v437
    %v4452 = vmul.f32 %v4432, %v437
    %v4453 = vmul.f32 %v4436, %v437
    %v4454 = vadd.f32 %v4191, %v4438
    %v4455 = vadd.f32 %v4192, %v4439
    %v4456 = vadd.f32 %v4193, %v4440
    %v4457 = vadd.f32 %v4194, %v4441
    %v4458 = vadd.f32 %v4195, %v4442
    %v4459 = vadd.f32 %v4196, %v4443
    %v4460 = vadd.f32 %v4197, %v4444
    %v4461 = vadd.f32 %v4198, %v4445
    %v4462 = vadd.f32 %v4199, %v4446
    %v4463 = vadd.f32 %v4200, %v4447
    %v4464 = vadd.f32 %v4201, %v4448
    %v4465 = vadd.f32 %v4202, %v4449
    %v4466 = vadd.f32 %v4203, %v4450
    %v4467 = vadd.f32 %v4204, %v4451
    %v4468 = vadd.f32 %v4205, %v4452
    %v4469 = vadd.f32 %v4206, %v4453
    %s4470 = scalar_lea.vmem %s4, 96
    %v4471 = vld [vmem:[%s4470] sm:$0xff]
    %v4472 = vld [vmem:[%s4470 + $0x8] sm:$0xff]
    %v4475 = vcombine.high %v4471, %v4471
    %v4477 = vunpack.c.l.s4 1966171168
    %v4478 = vunpack.c.0.s8 %v4477
    %v4479 = vlaneseq
    %v4480 = vshrl.u32 %v4479, 7
    %v4481 = vsub.s32 %v4478, %v4480
    %v4482 = vrot.slane %v4471, %v4481
    %v4484 = vunpack.c.l.s4 1966171168
    %v4485 = vunpack.c.0.s8 %v4484
    %v4486 = vlaneseq
    %v4487 = vshrl.u32 %v4486, 7
    %v4488 = vsub.s32 %v4485, %v4487
    %v4489 = vrot.slane %v4475, %v4488
    %v4490 = vcombine.high %v4482, %v4482
    %v4491 = vcombine.high %v4489, %v4489
    %v4493 = vunpack.c.l.s4 1966171168
    %v4494 = vunpack.c.0.s8 %v4493
    %v4495 = vlaneseq
    %v4496 = vshrl.u32 %v4495, 7
    %v4497 = vsub.s32 %v4494, %v4496
    %v4498 = vrot.slane %v4482, %v4497
    %v4500 = vunpack.c.l.s4 1966171168
    %v4501 = vunpack.c.0.s8 %v4500
    %v4502 = vlaneseq
    %v4503 = vshrl.u32 %v4502, 7
    %v4504 = vsub.s32 %v4501, %v4503
    %v4505 = vrot.slane %v4489, %v4504
    %v4507 = vunpack.c.l.s4 1966171168
    %v4508 = vunpack.c.0.s8 %v4507
    %v4509 = vlaneseq
    %v4510 = vshrl.u32 %v4509, 7
    %v4511 = vsub.s32 %v4508, %v4510
    %v4512 = vrot.slane %v4490, %v4511
    %v4514 = vunpack.c.l.s4 1966171168
    %v4515 = vunpack.c.0.s8 %v4514
    %v4516 = vlaneseq
    %v4517 = vshrl.u32 %v4516, 7
    %v4518 = vsub.s32 %v4515, %v4517
    %v4519 = vrot.slane %v4491, %v4518
    %v4520 = vcombine.high %v4498, %v4498
    %v4521 = vcombine.high %v4505, %v4505
    %v4522 = vcombine.high %v4512, %v4512
    %v4523 = vcombine.high %v4519, %v4519
    %v4524 = vcombine.high %v4472, %v4472
    %v4526 = vunpack.c.l.s4 1966171168
    %v4527 = vunpack.c.0.s8 %v4526
    %v4528 = vlaneseq
    %v4529 = vshrl.u32 %v4528, 7
    %v4530 = vsub.s32 %v4527, %v4529
    %v4531 = vrot.slane %v4472, %v4530
    %v4533 = vunpack.c.l.s4 1966171168
    %v4534 = vunpack.c.0.s8 %v4533
    %v4535 = vlaneseq
    %v4536 = vshrl.u32 %v4535, 7
    %v4537 = vsub.s32 %v4534, %v4536
    %v4538 = vrot.slane %v4524, %v4537
    %v4539 = vcombine.high %v4531, %v4531
    %v4540 = vcombine.high %v4538, %v4538
    %v4542 = vunpack.c.l.s4 1966171168
    %v4543 = vunpack.c.0.s8 %v4542
    %v4544 = vlaneseq
    %v4545 = vshrl.u32 %v4544, 7
    %v4546 = vsub.s32 %v4543, %v4545
    %v4547 = vrot.slane %v4531, %v4546
    %v4549 = vunpack.c.l.s4 1966171168
    %v4550 = vunpack.c.0.s8 %v4549
    %v4551 = vlaneseq
    %v4552 = vshrl.u32 %v4551, 7
    %v4553 = vsub.s32 %v4550, %v4552
    %v4554 = vrot.slane %v4538, %v4553
    %v4556 = vunpack.c.l.s4 1966171168
    %v4557 = vunpack.c.0.s8 %v4556
    %v4558 = vlaneseq
    %v4559 = vshrl.u32 %v4558, 7
    %v4560 = vsub.s32 %v4557, %v4559
    %v4561 = vrot.slane %v4539, %v4560
    %v4563 = vunpack.c.l.s4 1966171168
    %v4564 = vunpack.c.0.s8 %v4563
    %v4565 = vlaneseq
    %v4566 = vshrl.u32 %v4565, 7
    %v4567 = vsub.s32 %v4564, %v4566
    %v4568 = vrot.slane %v4540, %v4567
    %v4569 = vcombine.high %v4547, %v4547
    %v4570 = vcombine.high %v4554, %v4554
    %v4571 = vcombine.high %v4561, %v4561
    %v4572 = vcombine.high %v4568, %v4568
    %v4573 = vlaneseq
    %v4574 = vshrl.u32 %v4573, 7
    %v4575 = vsub.s32 0, %v4574
    %v4576 = vrot.slane %v4498, %v4575
    %v4577 = vlaneseq
    %v4578 = vshrl.u32 %v4577, 7
    %v4579 = vsub.s32 0, %v4578
    %v4580 = vrot.slane %v4512, %v4579
    %v4581 = vlaneseq
    %v4582 = vshrl.u32 %v4581, 7
    %v4583 = vsub.s32 0, %v4582
    %v4584 = vrot.slane %v4520, %v4583
    %v4585 = vlaneseq
    %v4586 = vshrl.u32 %v4585, 7
    %v4587 = vsub.s32 0, %v4586
    %v4588 = vrot.slane %v4522, %v4587
    %v4589 = vlaneseq
    %v4590 = vshrl.u32 %v4589, 7
    %v4591 = vsub.s32 0, %v4590
    %v4592 = vrot.slane %v4505, %v4591
    %v4593 = vlaneseq
    %v4594 = vshrl.u32 %v4593, 7
    %v4595 = vsub.s32 0, %v4594
    %v4596 = vrot.slane %v4519, %v4595
    %v4597 = vlaneseq
    %v4598 = vshrl.u32 %v4597, 7
    %v4599 = vsub.s32 0, %v4598
    %v4600 = vrot.slane %v4521, %v4599
    %v4601 = vlaneseq
    %v4602 = vshrl.u32 %v4601, 7
    %v4603 = vsub.s32 0, %v4602
    %v4604 = vrot.slane %v4523, %v4603
    %v4605 = vlaneseq
    %v4606 = vshrl.u32 %v4605, 7
    %v4607 = vsub.s32 0, %v4606
    %v4608 = vrot.slane %v4547, %v4607
    %v4609 = vlaneseq
    %v4610 = vshrl.u32 %v4609, 7
    %v4611 = vsub.s32 0, %v4610
    %v4612 = vrot.slane %v4561, %v4611
    %v4613 = vlaneseq
    %v4614 = vshrl.u32 %v4613, 7
    %v4615 = vsub.s32 0, %v4614
    %v4616 = vrot.slane %v4569, %v4615
    %v4617 = vlaneseq
    %v4618 = vshrl.u32 %v4617, 7
    %v4619 = vsub.s32 0, %v4618
    %v4620 = vrot.slane %v4571, %v4619
    %v4621 = vlaneseq
    %v4622 = vshrl.u32 %v4621, 7
    %v4623 = vsub.s32 0, %v4622
    %v4624 = vrot.slane %v4554, %v4623
    %v4625 = vlaneseq
    %v4626 = vshrl.u32 %v4625, 7
    %v4627 = vsub.s32 0, %v4626
    %v4628 = vrot.slane %v4568, %v4627
    %v4629 = vlaneseq
    %v4630 = vshrl.u32 %v4629, 7
    %v4631 = vsub.s32 0, %v4630
    %v4632 = vrot.slane %v4570, %v4631
    %v4633 = vlaneseq
    %v4634 = vshrl.u32 %v4633, 7
    %v4635 = vsub.s32 0, %v4634
    %v4636 = vrot.slane %v4572, %v4635
    %4637 = vset.pattern.permute.xlu0 0
    %4638 = vperm.xlu0 %4637, %v4576
    %v4639 = vpop.permute.xlu0 %4638
    %4641 = vset.pattern.permute.xlu0 0
    %4642 = vperm.xlu0 %4641, %v4580
    %v4643 = vpop.permute.xlu0 %4642
    %4645 = vset.pattern.permute.xlu0 0
    %4646 = vperm.xlu0 %4645, %v4584
    %v4647 = vpop.permute.xlu0 %4646
    %4649 = vset.pattern.permute.xlu0 0
    %4650 = vperm.xlu0 %4649, %v4588
    %v4651 = vpop.permute.xlu0 %4650
    %4653 = vset.pattern.permute.xlu0 0
    %4654 = vperm.xlu0 %4653, %v4592
    %v4655 = vpop.permute.xlu0 %4654
    %4657 = vset.pattern.permute.xlu0 0
    %4658 = vperm.xlu0 %4657, %v4596
    %v4659 = vpop.permute.xlu0 %4658
    %4661 = vset.pattern.permute.xlu0 0
    %4662 = vperm.xlu0 %4661, %v4600
    %v4663 = vpop.permute.xlu0 %4662
    %4665 = vset.pattern.permute.xlu0 0
    %4666 = vperm.xlu0 %4665, %v4604
    %v4667 = vpop.permute.xlu0 %4666
    %4669 = vset.pattern.permute.xlu0 0
    %4670 = vperm.xlu0 %4669, %v4608
    %v4671 = vpop.permute.xlu0 %4670
    %4673 = vset.pattern.permute.xlu0 0
    %4674 = vperm.xlu0 %4673, %v4612
    %v4675 = vpop.permute.xlu0 %4674
    %4677 = vset.pattern.permute.xlu0 0
    %4678 = vperm.xlu0 %4677, %v4616
    %v4679 = vpop.permute.xlu0 %4678
    %4681 = vset.pattern.permute.xlu0 0
    %4682 = vperm.xlu0 %4681, %v4620
    %v4683 = vpop.permute.xlu0 %4682
    %4685 = vset.pattern.permute.xlu0 0
    %4686 = vperm.xlu0 %4685, %v4624
    %v4687 = vpop.permute.xlu0 %4686
    %4689 = vset.pattern.permute.xlu0 0
    %4690 = vperm.xlu0 %4689, %v4628
    %v4691 = vpop.permute.xlu0 %4690
    %4693 = vset.pattern.permute.xlu0 0
    %4694 = vperm.xlu0 %4693, %v4632
    %v4695 = vpop.permute.xlu0 %4694
    %4697 = vset.pattern.permute.xlu0 0
    %4698 = vperm.xlu0 %4697, %v4636
    %v4699 = vpop.permute.xlu0 %4698
    %v4701 = vmul.f32 %v4639, %v437
    %v4702 = vmul.f32 %v4643, %v437
    %v4703 = vmul.f32 %v4647, %v437
    %v4704 = vmul.f32 %v4651, %v437
    %v4705 = vmul.f32 %v4655, %v437
    %v4706 = vmul.f32 %v4659, %v437
    %v4707 = vmul.f32 %v4663, %v437
    %v4708 = vmul.f32 %v4667, %v437
    %v4709 = vmul.f32 %v4671, %v437
    %v4710 = vmul.f32 %v4675, %v437
    %v4711 = vmul.f32 %v4679, %v437
    %v4712 = vmul.f32 %v4683, %v437
    %v4713 = vmul.f32 %v4687, %v437
    %v4714 = vmul.f32 %v4691, %v437
    %v4715 = vmul.f32 %v4695, %v437
    %v4716 = vmul.f32 %v4699, %v437
    %4733 = vrot.lane.b32.xlu0 %v4701, 127
    %v4734 = vpop.permute.xlu0 %4733
    %4735 = vrot.lane.b32.xlu0 %v4702, 127
    %v4736 = vpop.permute.xlu0 %4735
    %4737 = vrot.lane.b32.xlu0 %v4703, 127
    %v4738 = vpop.permute.xlu0 %4737
    %4739 = vrot.lane.b32.xlu0 %v4704, 127
    %v4740 = vpop.permute.xlu0 %4739
    %4741 = vrot.lane.b32.xlu0 %v4705, 127
    %v4742 = vpop.permute.xlu0 %4741
    %4743 = vrot.lane.b32.xlu0 %v4706, 127
    %v4744 = vpop.permute.xlu0 %4743
    %4745 = vrot.lane.b32.xlu0 %v4707, 127
    %v4746 = vpop.permute.xlu0 %4745
    %4747 = vrot.lane.b32.xlu0 %v4708, 127
    %v4748 = vpop.permute.xlu0 %4747
    %4749 = vrot.lane.b32.xlu0 %v4709, 127
    %v4750 = vpop.permute.xlu0 %4749
    %4751 = vrot.lane.b32.xlu0 %v4710, 127
    %v4752 = vpop.permute.xlu0 %4751
    %4753 = vrot.lane.b32.xlu0 %v4711, 127
    %v4754 = vpop.permute.xlu0 %4753
    %4755 = vrot.lane.b32.xlu0 %v4712, 127
    %v4756 = vpop.permute.xlu0 %4755
    %4757 = vrot.lane.b32.xlu0 %v4713, 127
    %v4758 = vpop.permute.xlu0 %4757
    %4759 = vrot.lane.b32.xlu0 %v4714, 127
    %v4760 = vpop.permute.xlu0 %4759
    %4761 = vrot.lane.b32.xlu0 %v4715, 127
    %v4762 = vpop.permute.xlu0 %4761
    %4763 = vrot.lane.b32.xlu0 %v4716, 127
    %v4764 = vpop.permute.xlu0 %4763
    %v4781 = vadd.f32 %v4454, %v4734
    %v4782 = vadd.f32 %v4455, %v4736
    %v4783 = vadd.f32 %v4456, %v4738
    %v4784 = vadd.f32 %v4457, %v4740
    %v4785 = vadd.f32 %v4458, %v4742
    %v4786 = vadd.f32 %v4459, %v4744
    %v4787 = vadd.f32 %v4460, %v4746
    %v4788 = vadd.f32 %v4461, %v4748
    %v4789 = vadd.f32 %v4462, %v4750
    %v4790 = vadd.f32 %v4463, %v4752
    %v4791 = vadd.f32 %v4464, %v4754
    %v4792 = vadd.f32 %v4465, %v4756
    %v4793 = vadd.f32 %v4466, %v4758
    %v4794 = vadd.f32 %v4467, %v4760
    %v4795 = vadd.f32 %v4468, %v4762
    %v4796 = vadd.f32 %v4469, %v4764
    %s4797 = scalar_lea.vmem %s3, 112
    %v4798 = vld [vmem:[%s4797] sm:$0xff]
    %v4799 = vld [vmem:[%s4797 + $0x8] sm:$0xff]
    %v4802 = vcombine.high %v4798, %v4798
    %v4804 = vunpack.c.l.s4 1966171168
    %v4805 = vunpack.c.0.s8 %v4804
    %v4806 = vlaneseq
    %v4807 = vshrl.u32 %v4806, 7
    %v4808 = vsub.s32 %v4805, %v4807
    %v4809 = vrot.slane %v4798, %v4808
    %v4811 = vunpack.c.l.s4 1966171168
    %v4812 = vunpack.c.0.s8 %v4811
    %v4813 = vlaneseq
    %v4814 = vshrl.u32 %v4813, 7
    %v4815 = vsub.s32 %v4812, %v4814
    %v4816 = vrot.slane %v4802, %v4815
    %v4817 = vcombine.high %v4809, %v4809
    %v4818 = vcombine.high %v4816, %v4816
    %v4820 = vunpack.c.l.s4 1966171168
    %v4821 = vunpack.c.0.s8 %v4820
    %v4822 = vlaneseq
    %v4823 = vshrl.u32 %v4822, 7
    %v4824 = vsub.s32 %v4821, %v4823
    %v4825 = vrot.slane %v4809, %v4824
    %v4827 = vunpack.c.l.s4 1966171168
    %v4828 = vunpack.c.0.s8 %v4827
    %v4829 = vlaneseq
    %v4830 = vshrl.u32 %v4829, 7
    %v4831 = vsub.s32 %v4828, %v4830
    %v4832 = vrot.slane %v4816, %v4831
    %v4834 = vunpack.c.l.s4 1966171168
    %v4835 = vunpack.c.0.s8 %v4834
    %v4836 = vlaneseq
    %v4837 = vshrl.u32 %v4836, 7
    %v4838 = vsub.s32 %v4835, %v4837
    %v4839 = vrot.slane %v4817, %v4838
    %v4841 = vunpack.c.l.s4 1966171168
    %v4842 = vunpack.c.0.s8 %v4841
    %v4843 = vlaneseq
    %v4844 = vshrl.u32 %v4843, 7
    %v4845 = vsub.s32 %v4842, %v4844
    %v4846 = vrot.slane %v4818, %v4845
    %v4847 = vcombine.high %v4825, %v4825
    %v4848 = vcombine.high %v4832, %v4832
    %v4849 = vcombine.high %v4839, %v4839
    %v4850 = vcombine.high %v4846, %v4846
    %v4851 = vcombine.high %v4799, %v4799
    %v4853 = vunpack.c.l.s4 1966171168
    %v4854 = vunpack.c.0.s8 %v4853
    %v4855 = vlaneseq
    %v4856 = vshrl.u32 %v4855, 7
    %v4857 = vsub.s32 %v4854, %v4856
    %v4858 = vrot.slane %v4799, %v4857
    %v4860 = vunpack.c.l.s4 1966171168
    %v4861 = vunpack.c.0.s8 %v4860
    %v4862 = vlaneseq
    %v4863 = vshrl.u32 %v4862, 7
    %v4864 = vsub.s32 %v4861, %v4863
    %v4865 = vrot.slane %v4851, %v4864
    %v4866 = vcombine.high %v4858, %v4858
    %v4867 = vcombine.high %v4865, %v4865
    %v4869 = vunpack.c.l.s4 1966171168
    %v4870 = vunpack.c.0.s8 %v4869
    %v4871 = vlaneseq
    %v4872 = vshrl.u32 %v4871, 7
    %v4873 = vsub.s32 %v4870, %v4872
    %v4874 = vrot.slane %v4858, %v4873
    %v4876 = vunpack.c.l.s4 1966171168
    %v4877 = vunpack.c.0.s8 %v4876
    %v4878 = vlaneseq
    %v4879 = vshrl.u32 %v4878, 7
    %v4880 = vsub.s32 %v4877, %v4879
    %v4881 = vrot.slane %v4865, %v4880
    %v4883 = vunpack.c.l.s4 1966171168
    %v4884 = vunpack.c.0.s8 %v4883
    %v4885 = vlaneseq
    %v4886 = vshrl.u32 %v4885, 7
    %v4887 = vsub.s32 %v4884, %v4886
    %v4888 = vrot.slane %v4866, %v4887
    %v4890 = vunpack.c.l.s4 1966171168
    %v4891 = vunpack.c.0.s8 %v4890
    %v4892 = vlaneseq
    %v4893 = vshrl.u32 %v4892, 7
    %v4894 = vsub.s32 %v4891, %v4893
    %v4895 = vrot.slane %v4867, %v4894
    %v4896 = vcombine.high %v4874, %v4874
    %v4897 = vcombine.high %v4881, %v4881
    %v4898 = vcombine.high %v4888, %v4888
    %v4899 = vcombine.high %v4895, %v4895
    %v4900 = vlaneseq
    %v4901 = vshrl.u32 %v4900, 7
    %v4902 = vsub.s32 0, %v4901
    %v4903 = vrot.slane %v4825, %v4902
    %v4904 = vlaneseq
    %v4905 = vshrl.u32 %v4904, 7
    %v4906 = vsub.s32 0, %v4905
    %v4907 = vrot.slane %v4839, %v4906
    %v4908 = vlaneseq
    %v4909 = vshrl.u32 %v4908, 7
    %v4910 = vsub.s32 0, %v4909
    %v4911 = vrot.slane %v4847, %v4910
    %v4912 = vlaneseq
    %v4913 = vshrl.u32 %v4912, 7
    %v4914 = vsub.s32 0, %v4913
    %v4915 = vrot.slane %v4849, %v4914
    %v4916 = vlaneseq
    %v4917 = vshrl.u32 %v4916, 7
    %v4918 = vsub.s32 0, %v4917
    %v4919 = vrot.slane %v4832, %v4918
    %v4920 = vlaneseq
    %v4921 = vshrl.u32 %v4920, 7
    %v4922 = vsub.s32 0, %v4921
    %v4923 = vrot.slane %v4846, %v4922
    %v4924 = vlaneseq
    %v4925 = vshrl.u32 %v4924, 7
    %v4926 = vsub.s32 0, %v4925
    %v4927 = vrot.slane %v4848, %v4926
    %v4928 = vlaneseq
    %v4929 = vshrl.u32 %v4928, 7
    %v4930 = vsub.s32 0, %v4929
    %v4931 = vrot.slane %v4850, %v4930
    %v4932 = vlaneseq
    %v4933 = vshrl.u32 %v4932, 7
    %v4934 = vsub.s32 0, %v4933
    %v4935 = vrot.slane %v4874, %v4934
    %v4936 = vlaneseq
    %v4937 = vshrl.u32 %v4936, 7
    %v4938 = vsub.s32 0, %v4937
    %v4939 = vrot.slane %v4888, %v4938
    %v4940 = vlaneseq
    %v4941 = vshrl.u32 %v4940, 7
    %v4942 = vsub.s32 0, %v4941
    %v4943 = vrot.slane %v4896, %v4942
    %v4944 = vlaneseq
    %v4945 = vshrl.u32 %v4944, 7
    %v4946 = vsub.s32 0, %v4945
    %v4947 = vrot.slane %v4898, %v4946
    %v4948 = vlaneseq
    %v4949 = vshrl.u32 %v4948, 7
    %v4950 = vsub.s32 0, %v4949
    %v4951 = vrot.slane %v4881, %v4950
    %v4952 = vlaneseq
    %v4953 = vshrl.u32 %v4952, 7
    %v4954 = vsub.s32 0, %v4953
    %v4955 = vrot.slane %v4895, %v4954
    %v4956 = vlaneseq
    %v4957 = vshrl.u32 %v4956, 7
    %v4958 = vsub.s32 0, %v4957
    %v4959 = vrot.slane %v4897, %v4958
    %v4960 = vlaneseq
    %v4961 = vshrl.u32 %v4960, 7
    %v4962 = vsub.s32 0, %v4961
    %v4963 = vrot.slane %v4899, %v4962
    %4964 = vset.pattern.permute.xlu0 0
    %4965 = vperm.xlu0 %4964, %v4903
    %v4966 = vpop.permute.xlu0 %4965
    %4968 = vset.pattern.permute.xlu0 0
    %4969 = vperm.xlu0 %4968, %v4907
    %v4970 = vpop.permute.xlu0 %4969
    %4972 = vset.pattern.permute.xlu0 0
    %4973 = vperm.xlu0 %4972, %v4911
    %v4974 = vpop.permute.xlu0 %4973
    %4976 = vset.pattern.permute.xlu0 0
    %4977 = vperm.xlu0 %4976, %v4915
    %v4978 = vpop.permute.xlu0 %4977
    %4980 = vset.pattern.permute.xlu0 0
    %4981 = vperm.xlu0 %4980, %v4919
    %v4982 = vpop.permute.xlu0 %4981
    %4984 = vset.pattern.permute.xlu0 0
    %4985 = vperm.xlu0 %4984, %v4923
    %v4986 = vpop.permute.xlu0 %4985
    %4988 = vset.pattern.permute.xlu0 0
    %4989 = vperm.xlu0 %4988, %v4927
    %v4990 = vpop.permute.xlu0 %4989
    %4992 = vset.pattern.permute.xlu0 0
    %4993 = vperm.xlu0 %4992, %v4931
    %v4994 = vpop.permute.xlu0 %4993
    %4996 = vset.pattern.permute.xlu0 0
    %4997 = vperm.xlu0 %4996, %v4935
    %v4998 = vpop.permute.xlu0 %4997
    %5000 = vset.pattern.permute.xlu0 0
    %5001 = vperm.xlu0 %5000, %v4939
    %v5002 = vpop.permute.xlu0 %5001
    %5004 = vset.pattern.permute.xlu0 0
    %5005 = vperm.xlu0 %5004, %v4943
    %v5006 = vpop.permute.xlu0 %5005
    %5008 = vset.pattern.permute.xlu0 0
    %5009 = vperm.xlu0 %5008, %v4947
    %v5010 = vpop.permute.xlu0 %5009
    %5012 = vset.pattern.permute.xlu0 0
    %5013 = vperm.xlu0 %5012, %v4951
    %v5014 = vpop.permute.xlu0 %5013
    %5016 = vset.pattern.permute.xlu0 0
    %5017 = vperm.xlu0 %5016, %v4955
    %v5018 = vpop.permute.xlu0 %5017
    %5020 = vset.pattern.permute.xlu0 0
    %5021 = vperm.xlu0 %5020, %v4959
    %v5022 = vpop.permute.xlu0 %5021
    %5024 = vset.pattern.permute.xlu0 0
    %5025 = vperm.xlu0 %5024, %v4963
    %v5026 = vpop.permute.xlu0 %5025
    %v5028 = vmul.f32 %v4966, %v438
    %v5029 = vmul.f32 %v4970, %v438
    %v5030 = vmul.f32 %v4974, %v438
    %v5031 = vmul.f32 %v4978, %v438
    %v5032 = vmul.f32 %v4982, %v438
    %v5033 = vmul.f32 %v4986, %v438
    %v5034 = vmul.f32 %v4990, %v438
    %v5035 = vmul.f32 %v4994, %v438
    %v5036 = vmul.f32 %v4998, %v438
    %v5037 = vmul.f32 %v5002, %v438
    %v5038 = vmul.f32 %v5006, %v438
    %v5039 = vmul.f32 %v5010, %v438
    %v5040 = vmul.f32 %v5014, %v438
    %v5041 = vmul.f32 %v5018, %v438
    %v5042 = vmul.f32 %v5022, %v438
    %v5043 = vmul.f32 %v5026, %v438
    %v5044 = vadd.f32 %v4781, %v5028
    %v5045 = vadd.f32 %v4782, %v5029
    %v5046 = vadd.f32 %v4783, %v5030
    %v5047 = vadd.f32 %v4784, %v5031
    %v5048 = vadd.f32 %v4785, %v5032
    %v5049 = vadd.f32 %v4786, %v5033
    %v5050 = vadd.f32 %v4787, %v5034
    %v5051 = vadd.f32 %v4788, %v5035
    %v5052 = vadd.f32 %v4789, %v5036
    %v5053 = vadd.f32 %v4790, %v5037
    %v5054 = vadd.f32 %v4791, %v5038
    %v5055 = vadd.f32 %v4792, %v5039
    %v5056 = vadd.f32 %v4793, %v5040
    %v5057 = vadd.f32 %v4794, %v5041
    %v5058 = vadd.f32 %v4795, %v5042
    %v5059 = vadd.f32 %v4796, %v5043
    %s5060 = scalar_lea.vmem %s4, 112
    %v5061 = vld [vmem:[%s5060] sm:$0xff]
    %v5062 = vld [vmem:[%s5060 + $0x8] sm:$0xff]
    %v5065 = vcombine.high %v5061, %v5061
    %v5067 = vunpack.c.l.s4 1966171168
    %v5068 = vunpack.c.0.s8 %v5067
    %v5069 = vlaneseq
    %v5070 = vshrl.u32 %v5069, 7
    %v5071 = vsub.s32 %v5068, %v5070
    %v5072 = vrot.slane %v5061, %v5071
    %v5074 = vunpack.c.l.s4 1966171168
    %v5075 = vunpack.c.0.s8 %v5074
    %v5076 = vlaneseq
    %v5077 = vshrl.u32 %v5076, 7
    %v5078 = vsub.s32 %v5075, %v5077
    %v5079 = vrot.slane %v5065, %v5078
    %v5080 = vcombine.high %v5072, %v5072
    %v5081 = vcombine.high %v5079, %v5079
    %v5083 = vunpack.c.l.s4 1966171168
    %v5084 = vunpack.c.0.s8 %v5083
    %v5085 = vlaneseq
    %v5086 = vshrl.u32 %v5085, 7
    %v5087 = vsub.s32 %v5084, %v5086
    %v5088 = vrot.slane %v5072, %v5087
    %v5090 = vunpack.c.l.s4 1966171168
    %v5091 = vunpack.c.0.s8 %v5090
    %v5092 = vlaneseq
    %v5093 = vshrl.u32 %v5092, 7
    %v5094 = vsub.s32 %v5091, %v5093
    %v5095 = vrot.slane %v5079, %v5094
    %v5097 = vunpack.c.l.s4 1966171168
    %v5098 = vunpack.c.0.s8 %v5097
    %v5099 = vlaneseq
    %v5100 = vshrl.u32 %v5099, 7
    %v5101 = vsub.s32 %v5098, %v5100
    %v5102 = vrot.slane %v5080, %v5101
    %v5104 = vunpack.c.l.s4 1966171168
    %v5105 = vunpack.c.0.s8 %v5104
    %v5106 = vlaneseq
    %v5107 = vshrl.u32 %v5106, 7
    %v5108 = vsub.s32 %v5105, %v5107
    %v5109 = vrot.slane %v5081, %v5108
    %v5110 = vcombine.high %v5088, %v5088
    %v5111 = vcombine.high %v5095, %v5095
    %v5112 = vcombine.high %v5102, %v5102
    %v5113 = vcombine.high %v5109, %v5109
    %v5114 = vcombine.high %v5062, %v5062
    %v5116 = vunpack.c.l.s4 1966171168
    %v5117 = vunpack.c.0.s8 %v5116
    %v5118 = vlaneseq
    %v5119 = vshrl.u32 %v5118, 7
    %v5120 = vsub.s32 %v5117, %v5119
    %v5121 = vrot.slane %v5062, %v5120
    %v5123 = vunpack.c.l.s4 1966171168
    %v5124 = vunpack.c.0.s8 %v5123
    %v5125 = vlaneseq
    %v5126 = vshrl.u32 %v5125, 7
    %v5127 = vsub.s32 %v5124, %v5126
    %v5128 = vrot.slane %v5114, %v5127
    %v5129 = vcombine.high %v5121, %v5121
    %v5130 = vcombine.high %v5128, %v5128
    %v5132 = vunpack.c.l.s4 1966171168
    %v5133 = vunpack.c.0.s8 %v5132
    %v5134 = vlaneseq
    %v5135 = vshrl.u32 %v5134, 7
    %v5136 = vsub.s32 %v5133, %v5135
    %v5137 = vrot.slane %v5121, %v5136
    %v5139 = vunpack.c.l.s4 1966171168
    %v5140 = vunpack.c.0.s8 %v5139
    %v5141 = vlaneseq
    %v5142 = vshrl.u32 %v5141, 7
    %v5143 = vsub.s32 %v5140, %v5142
    %v5144 = vrot.slane %v5128, %v5143
    %v5146 = vunpack.c.l.s4 1966171168
    %v5147 = vunpack.c.0.s8 %v5146
    %v5148 = vlaneseq
    %v5149 = vshrl.u32 %v5148, 7
    %v5150 = vsub.s32 %v5147, %v5149
    %v5151 = vrot.slane %v5129, %v5150
    %v5153 = vunpack.c.l.s4 1966171168
    %v5154 = vunpack.c.0.s8 %v5153
    %v5155 = vlaneseq
    %v5156 = vshrl.u32 %v5155, 7
    %v5157 = vsub.s32 %v5154, %v5156
    %v5158 = vrot.slane %v5130, %v5157
    %v5159 = vcombine.high %v5137, %v5137
    %v5160 = vcombine.high %v5144, %v5144
    %v5161 = vcombine.high %v5151, %v5151
    %v5162 = vcombine.high %v5158, %v5158
    %v5163 = vlaneseq
    %v5164 = vshrl.u32 %v5163, 7
    %v5165 = vsub.s32 0, %v5164
    %v5166 = vrot.slane %v5088, %v5165
    %v5167 = vlaneseq
    %v5168 = vshrl.u32 %v5167, 7
    %v5169 = vsub.s32 0, %v5168
    %v5170 = vrot.slane %v5102, %v5169
    %v5171 = vlaneseq
    %v5172 = vshrl.u32 %v5171, 7
    %v5173 = vsub.s32 0, %v5172
    %v5174 = vrot.slane %v5110, %v5173
    %v5175 = vlaneseq
    %v5176 = vshrl.u32 %v5175, 7
    %v5177 = vsub.s32 0, %v5176
    %v5178 = vrot.slane %v5112, %v5177
    %v5179 = vlaneseq
    %v5180 = vshrl.u32 %v5179, 7
    %v5181 = vsub.s32 0, %v5180
    %v5182 = vrot.slane %v5095, %v5181
    %v5183 = vlaneseq
    %v5184 = vshrl.u32 %v5183, 7
    %v5185 = vsub.s32 0, %v5184
    %v5186 = vrot.slane %v5109, %v5185
    %v5187 = vlaneseq
    %v5188 = vshrl.u32 %v5187, 7
    %v5189 = vsub.s32 0, %v5188
    %v5190 = vrot.slane %v5111, %v5189
    %v5191 = vlaneseq
    %v5192 = vshrl.u32 %v5191, 7
    %v5193 = vsub.s32 0, %v5192
    %v5194 = vrot.slane %v5113, %v5193
    %v5195 = vlaneseq
    %v5196 = vshrl.u32 %v5195, 7
    %v5197 = vsub.s32 0, %v5196
    %v5198 = vrot.slane %v5137, %v5197
    %v5199 = vlaneseq
    %v5200 = vshrl.u32 %v5199, 7
    %v5201 = vsub.s32 0, %v5200
    %v5202 = vrot.slane %v5151, %v5201
    %v5203 = vlaneseq
    %v5204 = vshrl.u32 %v5203, 7
    %v5205 = vsub.s32 0, %v5204
    %v5206 = vrot.slane %v5159, %v5205
    %v5207 = vlaneseq
    %v5208 = vshrl.u32 %v5207, 7
    %v5209 = vsub.s32 0, %v5208
    %v5210 = vrot.slane %v5161, %v5209
    %v5211 = vlaneseq
    %v5212 = vshrl.u32 %v5211, 7
    %v5213 = vsub.s32 0, %v5212
    %v5214 = vrot.slane %v5144, %v5213
    %v5215 = vlaneseq
    %v5216 = vshrl.u32 %v5215, 7
    %v5217 = vsub.s32 0, %v5216
    %v5218 = vrot.slane %v5158, %v5217
    %v5219 = vlaneseq
    %v5220 = vshrl.u32 %v5219, 7
    %v5221 = vsub.s32 0, %v5220
    %v5222 = vrot.slane %v5160, %v5221
    %v5223 = vlaneseq
    %v5224 = vshrl.u32 %v5223, 7
    %v5225 = vsub.s32 0, %v5224
    %v5226 = vrot.slane %v5162, %v5225
    %5227 = vset.pattern.permute.xlu0 0
    %5228 = vperm.xlu0 %5227, %v5166
    %v5229 = vpop.permute.xlu0 %5228
    %5231 = vset.pattern.permute.xlu0 0
    %5232 = vperm.xlu0 %5231, %v5170
    %v5233 = vpop.permute.xlu0 %5232
    %5235 = vset.pattern.permute.xlu0 0
    %5236 = vperm.xlu0 %5235, %v5174
    %v5237 = vpop.permute.xlu0 %5236
    %5239 = vset.pattern.permute.xlu0 0
    %5240 = vperm.xlu0 %5239, %v5178
    %v5241 = vpop.permute.xlu0 %5240
    %5243 = vset.pattern.permute.xlu0 0
    %5244 = vperm.xlu0 %5243, %v5182
    %v5245 = vpop.permute.xlu0 %5244
    %5247 = vset.pattern.permute.xlu0 0
    %5248 = vperm.xlu0 %5247, %v5186
    %v5249 = vpop.permute.xlu0 %5248
    %5251 = vset.pattern.permute.xlu0 0
    %5252 = vperm.xlu0 %5251, %v5190
    %v5253 = vpop.permute.xlu0 %5252
    %5255 = vset.pattern.permute.xlu0 0
    %5256 = vperm.xlu0 %5255, %v5194
    %v5257 = vpop.permute.xlu0 %5256
    %5259 = vset.pattern.permute.xlu0 0
    %5260 = vperm.xlu0 %5259, %v5198
    %v5261 = vpop.permute.xlu0 %5260
    %5263 = vset.pattern.permute.xlu0 0
    %5264 = vperm.xlu0 %5263, %v5202
    %v5265 = vpop.permute.xlu0 %5264
    %5267 = vset.pattern.permute.xlu0 0
    %5268 = vperm.xlu0 %5267, %v5206
    %v5269 = vpop.permute.xlu0 %5268
    %5271 = vset.pattern.permute.xlu0 0
    %5272 = vperm.xlu0 %5271, %v5210
    %v5273 = vpop.permute.xlu0 %5272
    %5275 = vset.pattern.permute.xlu0 0
    %5276 = vperm.xlu0 %5275, %v5214
    %v5277 = vpop.permute.xlu0 %5276
    %5279 = vset.pattern.permute.xlu0 0
    %5280 = vperm.xlu0 %5279, %v5218
    %v5281 = vpop.permute.xlu0 %5280
    %5283 = vset.pattern.permute.xlu0 0
    %5284 = vperm.xlu0 %5283, %v5222
    %v5285 = vpop.permute.xlu0 %5284
    %5287 = vset.pattern.permute.xlu0 0
    %5288 = vperm.xlu0 %5287, %v5226
    %v5289 = vpop.permute.xlu0 %5288
    %v5291 = vmul.f32 %v5229, %v438
    %v5292 = vmul.f32 %v5233, %v438
    %v5293 = vmul.f32 %v5237, %v438
    %v5294 = vmul.f32 %v5241, %v438
    %v5295 = vmul.f32 %v5245, %v438
    %v5296 = vmul.f32 %v5249, %v438
    %v5297 = vmul.f32 %v5253, %v438
    %v5298 = vmul.f32 %v5257, %v438
    %v5299 = vmul.f32 %v5261, %v438
    %v5300 = vmul.f32 %v5265, %v438
    %v5301 = vmul.f32 %v5269, %v438
    %v5302 = vmul.f32 %v5273, %v438
    %v5303 = vmul.f32 %v5277, %v438
    %v5304 = vmul.f32 %v5281, %v438
    %v5305 = vmul.f32 %v5285, %v438
    %v5306 = vmul.f32 %v5289, %v438
    %5323 = vrot.lane.b32.xlu0 %v5291, 127
    %v5324 = vpop.permute.xlu0 %5323
    %5325 = vrot.lane.b32.xlu0 %v5292, 127
    %v5326 = vpop.permute.xlu0 %5325
    %5327 = vrot.lane.b32.xlu0 %v5293, 127
    %v5328 = vpop.permute.xlu0 %5327
    %5329 = vrot.lane.b32.xlu0 %v5294, 127
    %v5330 = vpop.permute.xlu0 %5329
    %5331 = vrot.lane.b32.xlu0 %v5295, 127
    %v5332 = vpop.permute.xlu0 %5331
    %5333 = vrot.lane.b32.xlu0 %v5296, 127
    %v5334 = vpop.permute.xlu0 %5333
    %5335 = vrot.lane.b32.xlu0 %v5297, 127
    %v5336 = vpop.permute.xlu0 %5335
    %5337 = vrot.lane.b32.xlu0 %v5298, 127
    %v5338 = vpop.permute.xlu0 %5337
    %5339 = vrot.lane.b32.xlu0 %v5299, 127
    %v5340 = vpop.permute.xlu0 %5339
    %5341 = vrot.lane.b32.xlu0 %v5300, 127
    %v5342 = vpop.permute.xlu0 %5341
    %5343 = vrot.lane.b32.xlu0 %v5301, 127
    %v5344 = vpop.permute.xlu0 %5343
    %5345 = vrot.lane.b32.xlu0 %v5302, 127
    %v5346 = vpop.permute.xlu0 %5345
    %5347 = vrot.lane.b32.xlu0 %v5303, 127
    %v5348 = vpop.permute.xlu0 %5347
    %5349 = vrot.lane.b32.xlu0 %v5304, 127
    %v5350 = vpop.permute.xlu0 %5349
    %5351 = vrot.lane.b32.xlu0 %v5305, 127
    %v5352 = vpop.permute.xlu0 %5351
    %5353 = vrot.lane.b32.xlu0 %v5306, 127
    %v5354 = vpop.permute.xlu0 %5353
    %v5371 = vadd.f32 %v5044, %v5324
    %v5372 = vadd.f32 %v5045, %v5326
    %v5373 = vadd.f32 %v5046, %v5328
    %v5374 = vadd.f32 %v5047, %v5330
    %v5375 = vadd.f32 %v5048, %v5332
    %v5376 = vadd.f32 %v5049, %v5334
    %v5377 = vadd.f32 %v5050, %v5336
    %v5378 = vadd.f32 %v5051, %v5338
    %v5379 = vadd.f32 %v5052, %v5340
    %v5380 = vadd.f32 %v5053, %v5342
    %v5381 = vadd.f32 %v5054, %v5344
    %v5382 = vadd.f32 %v5055, %v5346
    %v5383 = vadd.f32 %v5056, %v5348
    %v5384 = vadd.f32 %v5057, %v5350
    %v5385 = vadd.f32 %v5058, %v5352
    %v5386 = vadd.f32 %v5059, %v5354
    %v5387 = vmax.f32 %v5371, 0.0
    %v5388 = vmax.f32 %v5372, 0.0
    %v5389 = vmax.f32 %v5373, 0.0
    %v5390 = vmax.f32 %v5374, 0.0
    %v5391 = vmax.f32 %v5375, 0.0
    %v5392 = vmax.f32 %v5376, 0.0
    %v5393 = vmax.f32 %v5377, 0.0
    %v5394 = vmax.f32 %v5378, 0.0
    %v5395 = vmax.f32 %v5379, 0.0
    %v5396 = vmax.f32 %v5380, 0.0
    %v5397 = vmax.f32 %v5381, 0.0
    %v5398 = vmax.f32 %v5382, 0.0
    %v5399 = vmax.f32 %v5383, 0.0
    %v5400 = vmax.f32 %v5384, 0.0
    %v5401 = vmax.f32 %v5385, 0.0
    %v5402 = vmax.f32 %v5386, 0.0
    %5419 = vrot.lane.b32.xlu0 %v5387, 127
    %v5420 = vpop.permute.xlu0 %5419
    %5421 = vrot.lane.b32.xlu0 %v5388, 127
    %v5422 = vpop.permute.xlu0 %5421
    %5423 = vrot.lane.b32.xlu0 %v5389, 127
    %v5424 = vpop.permute.xlu0 %5423
    %5425 = vrot.lane.b32.xlu0 %v5390, 127
    %v5426 = vpop.permute.xlu0 %5425
    %5427 = vrot.lane.b32.xlu0 %v5391, 127
    %v5428 = vpop.permute.xlu0 %5427
    %5429 = vrot.lane.b32.xlu0 %v5392, 127
    %v5430 = vpop.permute.xlu0 %5429
    %5431 = vrot.lane.b32.xlu0 %v5393, 127
    %v5432 = vpop.permute.xlu0 %5431
    %5433 = vrot.lane.b32.xlu0 %v5394, 127
    %v5434 = vpop.permute.xlu0 %5433
    %5435 = vrot.lane.b32.xlu0 %v5395, 127
    %v5436 = vpop.permute.xlu0 %5435
    %5437 = vrot.lane.b32.xlu0 %v5396, 127
    %v5438 = vpop.permute.xlu0 %5437
    %5439 = vrot.lane.b32.xlu0 %v5397, 127
    %v5440 = vpop.permute.xlu0 %5439
    %5441 = vrot.lane.b32.xlu0 %v5398, 127
    %v5442 = vpop.permute.xlu0 %5441
    %5443 = vrot.lane.b32.xlu0 %v5399, 127
    %v5444 = vpop.permute.xlu0 %5443
    %5445 = vrot.lane.b32.xlu0 %v5400, 127
    %v5446 = vpop.permute.xlu0 %5445
    %5447 = vrot.lane.b32.xlu0 %v5401, 127
    %v5448 = vpop.permute.xlu0 %5447
    %5449 = vrot.lane.b32.xlu0 %v5402, 127
    %v5450 = vpop.permute.xlu0 %5449
    %v5467 = vmax.f32 %v5387, %v5420
    %v5468 = vmax.f32 %v5388, %v5422
    %v5469 = vmax.f32 %v5389, %v5424
    %v5470 = vmax.f32 %v5390, %v5426
    %v5471 = vmax.f32 %v5391, %v5428
    %v5472 = vmax.f32 %v5392, %v5430
    %v5473 = vmax.f32 %v5393, %v5432
    %v5474 = vmax.f32 %v5394, %v5434
    %v5475 = vmax.f32 %v5395, %v5436
    %v5476 = vmax.f32 %v5396, %v5438
    %v5477 = vmax.f32 %v5397, %v5440
    %v5478 = vmax.f32 %v5398, %v5442
    %v5479 = vmax.f32 %v5399, %v5444
    %v5480 = vmax.f32 %v5400, %v5446
    %v5481 = vmax.f32 %v5401, %v5448
    %v5482 = vmax.f32 %v5402, %v5450
    %5483 = vst [vmem:[#allocation2] sm:$0xff] 0.0
    %5484 = vst [vmem:[#allocation2 + $0x8] sm:$0xff] 0.0
    %5485 = vst [vmem:[#allocation2 + $0x10] sm:$0xff] 0.0
    %vm5486 = vcmask 162816
    %5487 = vst.msk [vmem:[#allocation2] sm:$0xff] %vm5486, %v5467
    %5489 = vrot.lane.b32.xlu0 %v5468, 20
    %v5490 = vpop.permute.xlu0 %5489
    %vm5492 = vcmask 326816
    %5493 = vst.msk [vmem:[#allocation2] sm:$0xff] %vm5492, %v5490
    %5495 = vrot.lane.b32.xlu0 %v5469, 40
    %v5496 = vpop.permute.xlu0 %5495
    %vm5498 = vcmask 490816
    %5499 = vst.msk [vmem:[#allocation2] sm:$0xff] %vm5498, %v5496
    %5501 = vrot.lane.b32.xlu0 %v5470, 60
    %v5502 = vpop.permute.xlu0 %5501
    %vm5504 = vcmask 654816
    %5505 = vst.msk [vmem:[#allocation2] sm:$0xff] %vm5504, %v5502
    %5507 = vrot.lane.b32.xlu0 %v5471, 80
    %v5508 = vpop.permute.xlu0 %5507
    %vm5510 = vcmask 818816
    %5511 = vst.msk [vmem:[#allocation2] sm:$0xff] %vm5510, %v5508
    %5513 = vrot.lane.b32.xlu0 %v5472, 100
    %v5514 = vpop.permute.xlu0 %5513
    %vm5516 = vcmask 982816
    %5517 = vst.msk [vmem:[#allocation2] sm:$0xff] %vm5516, %v5514
    %5519 = vrot.lane.b32.xlu0 %v5473, 120
    %v5520 = vpop.permute.xlu0 %5519
    %vm5522 = vcmask 1048512
    %5523 = vst.msk [vmem:[#allocation2] sm:$0xff] %vm5522, %v5520
    %vm5524 = vcmask 97280
    %5525 = vst.msk [vmem:[#allocation2 + $0x8] sm:$0xff] %vm5524, %v5520
    %5527 = vrot.lane.b32.xlu0 %v5474, 12
    %v5528 = vpop.permute.xlu0 %5527
    %vm5530 = vcmask 261216
    %5531 = vst.msk [vmem:[#allocation2 + $0x8] sm:$0xff] %vm5530, %v5528
    %5533 = vrot.lane.b32.xlu0 %v5475, 32
    %v5534 = vpop.permute.xlu0 %5533
    %vm5536 = vcmask 425216
    %5537 = vst.msk [vmem:[#allocation2 + $0x8] sm:$0xff] %vm5536, %v5534
    %5539 = vrot.lane.b32.xlu0 %v5476, 52
    %v5540 = vpop.permute.xlu0 %5539
    %vm5542 = vcmask 589216
    %5543 = vst.msk [vmem:[#allocation2 + $0x8] sm:$0xff] %vm5542, %v5540
    %5545 = vrot.lane.b32.xlu0 %v5477, 72
    %v5546 = vpop.permute.xlu0 %5545
    %vm5548 = vcmask 753216
    %5549 = vst.msk [vmem:[#allocation2 + $0x8] sm:$0xff] %vm5548, %v5546
    %5551 = vrot.lane.b32.xlu0 %v5478, 92
    %v5552 = vpop.permute.xlu0 %5551
    %vm5554 = vcmask 917216
    %5555 = vst.msk [vmem:[#allocation2 + $0x8] sm:$0xff] %vm5554, %v5552
    %5557 = vrot.lane.b32.xlu0 %v5479, 112
    %v5558 = vpop.permute.xlu0 %5557
    %vm5560 = vcmask 1048448
    %5561 = vst.msk [vmem:[#allocation2 + $0x8] sm:$0xff] %vm5560, %v5558
    %vm5562 = vcmask 31744
    %5563 = vst.msk [vmem:[#allocation2 + $0x10] sm:$0xff] %vm5562, %v5558
    %5565 = vrot.lane.b32.xlu0 %v5480, 4
    %v5566 = vpop.permute.xlu0 %5565
    %vm5568 = vcmask 195616
    %5569 = vst.msk [vmem:[#allocation2 + $0x10] sm:$0xff] %vm5568, %v5566
    %5571 = vrot.lane.b32.xlu0 %v5481, 24
    %v5572 = vpop.permute.xlu0 %5571
    %vm5574 = vcmask 359616
    %5575 = vst.msk [vmem:[#allocation2 + $0x10] sm:$0xff] %vm5574, %v5572
    %5577 = vrot.lane.b32.xlu0 %v5482, 44
    %v5578 = vpop.permute.xlu0 %5577
    %vm5580 = vcmask 523616
    %5581 = vst.msk [vmem:[#allocation2 + $0x10] sm:$0xff] %vm5580, %v5578
    %v5582 = vld [vmem:[#allocation2] sm:$0xff]
    %v5583 = vld [vmem:[#allocation2 + $0x8] sm:$0xff]
    %v5584 = vld [vmem:[#allocation2 + $0x10] sm:$0xff]
    %v5585 = vld [vmem:[#allocation3] sm:$0xff]
    %v5586 = vld [vmem:[#allocation3 + $0x8] sm:$0xff]
    %v5587 = vld [vmem:[#allocation3 + $0x10] sm:$0xff]
    %v5588 = vld [vmem:[#allocation3 + $0x18] sm:$0xff]
    %v5589 = vld [vmem:[#allocation3 + $0x20] sm:$0xff]
    %v5590 = vld [vmem:[#allocation3 + $0x28] sm:$0xff]
    %v5591 = vld [vmem:[#allocation3 + $0x30] sm:$0xff]
    %v5592 = vld [vmem:[#allocation3 + $0x38] sm:$0xff]
    %v5593 = vld [vmem:[#allocation3 + $0x40] sm:$0xff]
    %v5594 = vld [vmem:[#allocation3 + $0x48] sm:$0xff]
    %v5595 = vld [vmem:[#allocation3 + $0x50] sm:$0xff]
    %v5596 = vld [vmem:[#allocation3 + $0x58] sm:$0xff]
    %v5597 = vld [vmem:[#allocation3 + $0x60] sm:$0xff]
    %v5598 = vld [vmem:[#allocation3 + $0x68] sm:$0xff]
    %v5599 = vld [vmem:[#allocation3 + $0x70] sm:$0xff]
    %v5600 = vld [vmem:[#allocation3 + $0x78] sm:$0xff]
    %v5601 = vld [vmem:[#allocation3 + $0x80] sm:$0xff]
    %v5602 = vld [vmem:[#allocation3 + $0x88] sm:$0xff]
    %v5603 = vld [vmem:[#allocation3 + $0x90] sm:$0xff]
    %v5604 = vld [vmem:[#allocation3 + $0x98] sm:$0xff]
    %v5605 = vld [vmem:[#allocation3 + $0xa0] sm:$0xff]
    %v5606 = vld [vmem:[#allocation3 + $0xa8] sm:$0xff]
    %v5607 = vld [vmem:[#allocation3 + $0xb0] sm:$0xff]
    %v5608 = vld [vmem:[#allocation3 + $0xb8] sm:$0xff]
    %v5609 = vld [vmem:[#allocation3 + $0xc0] sm:$0xff]
    %v5610 = vld [vmem:[#allocation3 + $0xc8] sm:$0xff]
    %v5611 = vld [vmem:[#allocation3 + $0xd0] sm:$0xff]
    %v5612 = vld [vmem:[#allocation3 + $0xd8] sm:$0xff]
    %v5613 = vld [vmem:[#allocation3 + $0xe0] sm:$0xff]
    %v5614 = vld [vmem:[#allocation3 + $0xe8] sm:$0xff]
    %v5615 = vld [vmem:[#allocation3 + $0xf0] sm:$0xff]
    %v5616 = vld [vmem:[#allocation3 + $0xf8] sm:$0xff]
    %v5617 = vld [vmem:[#allocation3 + $0x100] sm:$0xff]
    %v5618 = vld [vmem:[#allocation3 + $0x108] sm:$0xff]
    %v5619 = vld [vmem:[#allocation3 + $0x110] sm:$0xff]
    %v5620 = vld [vmem:[#allocation3 + $0x118] sm:$0xff]
    %v5621 = vld [vmem:[#allocation3 + $0x120] sm:$0xff]
    %v5622 = vld [vmem:[#allocation3 + $0x128] sm:$0xff]
    %v5623 = vld [vmem:[#allocation3 + $0x130] sm:$0xff]
    %v5624 = vld [vmem:[#allocation3 + $0x138] sm:$0xff]
    %v5625 = vld [vmem:[#allocation3 + $0x140] sm:$0xff]
    %v5626 = vld [vmem:[#allocation3 + $0x148] sm:$0xff]
    %v5627 = vld [vmem:[#allocation3 + $0x150] sm:$0xff]
    %v5628 = vld [vmem:[#allocation3 + $0x158] sm:$0xff]
    %v5629 = vld [vmem:[#allocation3 + $0x160] sm:$0xff]
    %v5630 = vld [vmem:[#allocation3 + $0x168] sm:$0xff]
    %v5631 = vld [vmem:[#allocation3 + $0x170] sm:$0xff]
    %v5632 = vld [vmem:[#allocation3 + $0x178] sm:$0xff]
    %v5633 = vld [vmem:[#allocation3 + $0x180] sm:$0xff]
    %v5634 = vld [vmem:[#allocation3 + $0x188] sm:$0xff]
    %v5635 = vld [vmem:[#allocation3 + $0x190] sm:$0xff]
    %v5636 = vld [vmem:[#allocation3 + $0x198] sm:$0xff]
    %v5637 = vld [vmem:[#allocation3 + $0x1a0] sm:$0xff]
    %v5638 = vld [vmem:[#allocation3 + $0x1a8] sm:$0xff]
    %v5639 = vld [vmem:[#allocation3 + $0x1b0] sm:$0xff]
    %v5640 = vld [vmem:[#allocation3 + $0x1b8] sm:$0xff]
    %v5641 = vld [vmem:[#allocation3 + $0x1c0] sm:$0xff]
    %v5642 = vld [vmem:[#allocation3 + $0x1c8] sm:$0xff]
    %v5643 = vld [vmem:[#allocation3 + $0x1d0] sm:$0xff]
    %v5644 = vld [vmem:[#allocation3 + $0x1d8] sm:$0xff]
    %v5645 = vld [vmem:[#allocation3 + $0x1e0] sm:$0xff]
    %v5646 = vld [vmem:[#allocation3 + $0x1e8] sm:$0xff]
    %v5647 = vld [vmem:[#allocation3 + $0x1f0] sm:$0xff]
    %v5648 = vld [vmem:[#allocation3 + $0x1f8] sm:$0xff]
    %v5649 = vld [vmem:[#allocation3 + $0x200] sm:$0xff]
    %v5650 = vld [vmem:[#allocation3 + $0x208] sm:$0xff]
    %v5651 = vld [vmem:[#allocation3 + $0x210] sm:$0xff]
    %v5652 = vld [vmem:[#allocation3 + $0x218] sm:$0xff]
    %v5653 = vld [vmem:[#allocation3 + $0x220] sm:$0xff]
    %v5654 = vld [vmem:[#allocation3 + $0x228] sm:$0xff]
    %v5655 = vld [vmem:[#allocation3 + $0x230] sm:$0xff]
    %v5656 = vld [vmem:[#allocation3 + $0x238] sm:$0xff]
    %v5657 = vld [vmem:[#allocation3 + $0x240] sm:$0xff]
    %v5658 = vld [vmem:[#allocation3 + $0x248] sm:$0xff]
    %v5659 = vld [vmem:[#allocation3 + $0x250] sm:$0xff]
    %v5660 = vld [vmem:[#allocation3 + $0x258] sm:$0xff]
    %v5661 = vld [vmem:[#allocation3 + $0x260] sm:$0xff]
    %v5662 = vld [vmem:[#allocation3 + $0x268] sm:$0xff]
    %v5663 = vld [vmem:[#allocation3 + $0x270] sm:$0xff]
    %v5664 = vld [vmem:[#allocation3 + $0x278] sm:$0xff]
    %v5665 = vld [vmem:[#allocation3 + $0x280] sm:$0xff]
    %v5666 = vld [vmem:[#allocation3 + $0x288] sm:$0xff]
    %v5667 = vld [vmem:[#allocation3 + $0x290] sm:$0xff]
    %v5668 = vld [vmem:[#allocation3 + $0x298] sm:$0xff]
    %v5669 = vld [vmem:[#allocation3 + $0x2a0] sm:$0xff]
    %v5670 = vld [vmem:[#allocation3 + $0x2a8] sm:$0xff]
    %v5671 = vld [vmem:[#allocation3 + $0x2b0] sm:$0xff]
    %v5672 = vld [vmem:[#allocation3 + $0x2b8] sm:$0xff]
    %v5673 = vld [vmem:[#allocation3 + $0x2c0] sm:$0xff]
    %v5674 = vld [vmem:[#allocation3 + $0x2c8] sm:$0xff]
    %v5675 = vld [vmem:[#allocation3 + $0x2d0] sm:$0xff]
    %v5676 = vld [vmem:[#allocation3 + $0x2d8] sm:$0xff]
    %v5677 = vld [vmem:[#allocation3 + $0x2e0] sm:$0xff]
    %v5678 = vld [vmem:[#allocation3 + $0x2e8] sm:$0xff]
    %v5679 = vld [vmem:[#allocation3 + $0x2f0] sm:$0xff]
    %v5680 = vld [vmem:[#allocation3 + $0x2f8] sm:$0xff]
    %v5681 = vld [vmem:[#allocation3 + $0x300] sm:$0xff]
    %v5682 = vld [vmem:[#allocation3 + $0x308] sm:$0xff]
    %v5683 = vld [vmem:[#allocation3 + $0x310] sm:$0xff]
    %v5684 = vld [vmem:[#allocation3 + $0x318] sm:$0xff]
    %v5685 = vld [vmem:[#allocation3 + $0x320] sm:$0xff]
    %v5686 = vld [vmem:[#allocation3 + $0x328] sm:$0xff]
    %v5687 = vld [vmem:[#allocation3 + $0x330] sm:$0xff]
    %v5688 = vld [vmem:[#allocation3 + $0x338] sm:$0xff]
    %v5689 = vld [vmem:[#allocation3 + $0x340] sm:$0xff]
    %v5690 = vld [vmem:[#allocation3 + $0x348] sm:$0xff]
    %v5691 = vld [vmem:[#allocation3 + $0x350] sm:$0xff]
    %v5692 = vld [vmem:[#allocation3 + $0x358] sm:$0xff]
    %v5693 = vld [vmem:[#allocation3 + $0x360] sm:$0xff]
    %v5694 = vld [vmem:[#allocation3 + $0x368] sm:$0xff]
    %v5695 = vld [vmem:[#allocation3 + $0x370] sm:$0xff]
    %v5696 = vld [vmem:[#allocation3 + $0x378] sm:$0xff]
    %v5697 = vld [vmem:[#allocation3 + $0x380] sm:$0xff]
    %v5698 = vld [vmem:[#allocation3 + $0x388] sm:$0xff]
    %v5699 = vld [vmem:[#allocation3 + $0x390] sm:$0xff]
    %v5700 = vld [vmem:[#allocation3 + $0x398] sm:$0xff]
    %v5701 = vld [vmem:[#allocation3 + $0x3a0] sm:$0xff]
    %v5702 = vld [vmem:[#allocation3 + $0x3a8] sm:$0xff]
    %v5703 = vld [vmem:[#allocation3 + $0x3b0] sm:$0xff]
    %v5704 = vld [vmem:[#allocation3 + $0x3b8] sm:$0xff]
    %v5705 = vld [vmem:[#allocation3 + $0x3c0] sm:$0xff]
    %v5706 = vld [vmem:[#allocation3 + $0x3c8] sm:$0xff]
    %v5707 = vld [vmem:[#allocation3 + $0x3d0] sm:$0xff]
    %v5708 = vld [vmem:[#allocation3 + $0x3d8] sm:$0xff]
    %v5709 = vld [vmem:[#allocation3 + $0x3e0] sm:$0xff]
    %v5710 = vld [vmem:[#allocation3 + $0x3e8] sm:$0xff]
    %v5711 = vld [vmem:[#allocation3 + $0x3f0] sm:$0xff]
    %v5712 = vld [vmem:[#allocation3 + $0x3f8] sm:$0xff]
    %v5713 = vld [vmem:[#allocation3 + $0x400] sm:$0xff]
    %v5714 = vld [vmem:[#allocation3 + $0x408] sm:$0xff]
    %v5715 = vld [vmem:[#allocation3 + $0x410] sm:$0xff]
    %v5716 = vld [vmem:[#allocation3 + $0x418] sm:$0xff]
    %v5717 = vld [vmem:[#allocation3 + $0x420] sm:$0xff]
    %v5718 = vld [vmem:[#allocation3 + $0x428] sm:$0xff]
    %v5719 = vld [vmem:[#allocation3 + $0x430] sm:$0xff]
    %v5720 = vld [vmem:[#allocation3 + $0x438] sm:$0xff]
    %v5721 = vld [vmem:[#allocation3 + $0x440] sm:$0xff]
    %v5722 = vld [vmem:[#allocation3 + $0x448] sm:$0xff]
    %v5723 = vld [vmem:[#allocation3 + $0x450] sm:$0xff]
    %v5724 = vld [vmem:[#allocation3 + $0x458] sm:$0xff]
    %v5725 = vld [vmem:[#allocation3 + $0x460] sm:$0xff]
    %v5726 = vld [vmem:[#allocation3 + $0x468] sm:$0xff]
    %v5727 = vld [vmem:[#allocation3 + $0x470] sm:$0xff]
    %v5728 = vld [vmem:[#allocation3 + $0x478] sm:$0xff]
    %v5729 = vld [vmem:[%s7] sm:$0x7]
    %v5731 = vlaneseq
    %v5732 = vshrl.u32 %v5731, 7
    %v5733 = vsub.s32 0, %v5732
    %v5734 = vrot.slane %v5729, %v5733
    %v5735 = vlaneseq
    %v5736 = vshrl.u32 %v5735, 7
    %v5737 = vsub.s32 1, %v5736
    %v5738 = vrot.slane %v5729, %v5737
    %v5739 = vlaneseq
    %v5740 = vshrl.u32 %v5739, 7
    %v5741 = vsub.s32 2, %v5740
    %v5742 = vrot.slane %v5729, %v5741
    %5746 = vmatprep.subr.mxu0 %v5586
    %5747 = vmatpush1.msra.mxu0 %v5585
    %5748 = vmatprep.subr.mxu0 %v5589
    %5749 = vmatpush1.msra.mxu0 %v5588
    %5750 = vmatprep.subr.mxu0 %v5592
    %5751 = vmatpush1.msra.mxu0 %v5591
    %5752 = vmatprep.subr.mxu0 %v5595
    %5753 = vmatpush1.msra.mxu0 %v5594
    %5754 = vmatprep.subr.mxu0 %v5598
    %5755 = vmatpush1.msra.mxu0 %v5597
    %5756 = vmatprep.subr.mxu0 %v5601
    %5757 = vmatpush1.msra.mxu0 %v5600
    %5758 = vmatprep.subr.mxu0 %v5604
    %5759 = vmatpush1.msra.mxu0 %v5603
    %5760 = vmatprep.subr.mxu0 %v5607
    %5761 = vmatpush1.msra.mxu0 %v5606
    %5762 = vmatprep.subr.mxu0 %v5610
    %5763 = vmatpush1.msra.mxu0 %v5609
    %5764 = vmatprep.subr.mxu0 %v5613
    %5765 = vmatpush1.msra.mxu0 %v5612
    %5766 = vmatprep.subr.mxu0 %v5616
    %5767 = vmatpush1.msra.mxu0 %v5615
    %5768 = vmatprep.subr.mxu0 %v5619
    %5769 = vmatpush1.msra.mxu0 %v5618
    %5770 = vmatprep.subr.mxu0 %v5622
    %5771 = vmatpush1.msra.mxu0 %v5621
    %5772 = vmatprep.subr.mxu0 %v5625
    %5773 = vmatpush1.msra.mxu0 %v5624
    %5774 = vmatprep.subr.mxu0 %v5628
    %5775 = vmatpush1.msra.mxu0 %v5627
    %5776 = vmatprep.subr.mxu0 %v5631
    %5777 = vmatpush1.msra.mxu0 %v5630
    %5778 = vmatprep.subr.mxu0 %v5634
    %5779 = vmatpush1.msra.mxu0 %v5633
    %5780 = vmatprep.subr.mxu0 %v5637
    %5781 = vmatpush1.msra.mxu0 %v5636
    %5782 = vmatprep.subr.mxu0 %v5640
    %5783 = vmatpush1.msra.mxu0 %v5639
    %5784 = vmatprep.subr.mxu0 %v5643
    %5785 = vmatpush1.msra.mxu0 %v5642
    %5786 = vmatprep.subr.mxu0 %v5646
    %5787 = vmatpush1.msra.mxu0 %v5645
    %5788 = vmatprep.subr.mxu0 %v5649
    %5789 = vmatpush1.msra.mxu0 %v5648
    %5790 = vmatprep.subr.mxu0 %v5652
    %5791 = vmatpush1.msra.mxu0 %v5651
    %5792 = vmatprep.subr.mxu0 %v5655
    %5793 = vmatpush1.msra.mxu0 %v5654
    %5794 = vmatprep.subr.mxu0 %v5658
    %5795 = vmatpush1.msra.mxu0 %v5657
    %5796 = vmatprep.subr.mxu0 %v5661
    %5797 = vmatpush1.msra.mxu0 %v5660
    %5798 = vmatprep.subr.mxu0 %v5664
    %5799 = vmatpush1.msra.mxu0 %v5663
    %5800 = vmatprep.subr.mxu0 %v5667
    %5801 = vmatpush1.msra.mxu0 %v5666
    %5802 = vmatprep.subr.mxu0 %v5670
    %5803 = vmatpush1.msra.mxu0 %v5669
    %5804 = vmatprep.subr.mxu0 %v5673
    %5805 = vmatpush1.msra.mxu0 %v5672
    %5806 = vmatprep.subr.mxu0 %v5676
    %5807 = vmatpush1.msra.mxu0 %v5675
    %5808 = vmatprep.subr.mxu0 %v5679
    %5809 = vmatpush1.msra.mxu0 %v5678
    %5810 = vmatprep.mubr.f32.mxu0 %v5583
    %5811 = vmatmul.mubr.f32.gmra.mrb[0].mxu0 %v5582
    %v5812 = vpop.f32.mrb[0].mxu0
    %v5813 = vadd.f32 %v5734, %v5812
    %v5814 = vpop.f32.mrb[0].mxu0
    %v5815 = vadd.f32 %v5738, %v5814
    %5816 = vdwg.mxu0
    %5817 = vmatprep.subr.mxu0 %v5682
    %5818 = vmatpush1.msra.mxu0 %v5681
    %5819 = vmatprep.subr.mxu0 %v5685
    %5820 = vmatpush1.msra.mxu0 %v5684
    %5821 = vmatprep.subr.mxu0 %v5688
    %5822 = vmatpush1.msra.mxu0 %v5687
    %5823 = vmatprep.subr.mxu0 %v5691
    %5824 = vmatpush1.msra.mxu0 %v5690
    %5825 = vmatprep.subr.mxu0 %v5694
    %5826 = vmatpush1.msra.mxu0 %v5693
    %5827 = vmatprep.subr.mxu0 %v5697
    %5828 = vmatpush1.msra.mxu0 %v5696
    %5829 = vmatprep.subr.mxu0 %v5700
    %5830 = vmatpush1.msra.mxu0 %v5699
    %5831 = vmatprep.subr.mxu0 %v5703
    %5832 = vmatpush1.msra.mxu0 %v5702
    %5833 = vmatprep.subr.mxu0 %v5706
    %5834 = vmatpush1.msra.mxu0 %v5705
    %5835 = vmatprep.subr.mxu0 %v5709
    %5836 = vmatpush1.msra.mxu0 %v5708
    %5837 = vmatprep.subr.mxu0 %v5712
    %5838 = vmatpush1.msra.mxu0 %v5711
    %5839 = vmatprep.subr.mxu0 %v5715
    %5840 = vmatpush1.msra.mxu0 %v5714
    %5841 = vmatprep.subr.mxu0 %v5718
    %5842 = vmatpush1.msra.mxu0 %v5717
    %5843 = vmatprep.subr.mxu0 %v5721
    %5844 = vmatpush1.msra.mxu0 %v5720
    %5845 = vmatprep.subr.mxu0 %v5724
    %5846 = vmatpush1.msra.mxu0 %v5723
    %5847 = vmatprep.subr.mxu0 %v5727
    %5848 = vmatpush1.msra.mxu0 %v5726
    %5849 = vmatprep.subr.mxu0 0.0
    %5850 = vmatpush1.msra.mxu0 0.0
    %5851 = vmatprep.subr.mxu0 0.0
    %5852 = vmatpush1.msra.mxu0 0.0
    %5853 = vmatprep.subr.mxu0 0.0
    %5854 = vmatpush1.msra.mxu0 0.0
    %5855 = vmatprep.subr.mxu0 0.0
    %5856 = vmatpush1.msra.mxu0 0.0
    %5857 = vmatprep.subr.mxu0 0.0
    %5858 = vmatpush1.msra.mxu0 0.0
    %5859 = vmatprep.subr.mxu0 0.0
    %5860 = vmatpush1.msra.mxu0 0.0
    %5861 = vmatprep.subr.mxu0 0.0
    %5862 = vmatpush1.msra.mxu0 0.0
    %5863 = vmatprep.subr.mxu0 0.0
    %5864 = vmatpush1.msra.mxu0 0.0
    %5865 = vmatprep.subr.mxu0 0.0
    %5866 = vmatpush1.msra.mxu0 0.0
    %5867 = vmatprep.subr.mxu0 0.0
    %5868 = vmatpush1.msra.mxu0 0.0
    %5869 = vmatprep.subr.mxu0 0.0
    %5870 = vmatpush1.msra.mxu0 0.0
    %5871 = vmatprep.subr.mxu0 0.0
    %5872 = vmatpush1.msra.mxu0 0.0
    %5873 = vmatprep.subr.mxu0 0.0
    %5874 = vmatpush1.msra.mxu0 0.0
    %5875 = vmatprep.subr.mxu0 0.0
    %5876 = vmatpush1.msra.mxu0 0.0
    %5877 = vmatprep.subr.mxu0 0.0
    %5878 = vmatpush1.msra.mxu0 0.0
    %5879 = vmatprep.subr.mxu0 0.0
    %5880 = vmatpush1.msra.mxu0 0.0
    %5881 = vmatprep.mubr.f32.mxu0 0.0
    %5882 = vmatmul.mubr.f32.gmra.mrb[0].mxu0 %v5584
    %v5883 = vpop.f32.mrb[0].mxu0
    %v5884 = vadd.f32 %v5813, %v5883
    %v5885 = vpop.f32.mrb[0].mxu0
    %v5886 = vadd.f32 %v5815, %v5885
    %5887 = vdwg.mxu0
    %5888 = vmatprep.subr.mxu0 0.0
    %5889 = vmatpush1.msra.mxu0 %v5587
    %5890 = vmatprep.subr.mxu0 0.0
    %5891 = vmatpush1.msra.mxu0 %v5590
    %5892 = vmatprep.subr.mxu0 0.0
    %5893 = vmatpush1.msra.mxu0 %v5593
    %5894 = vmatprep.subr.mxu0 0.0
    %5895 = vmatpush1.msra.mxu0 %v5596
    %5896 = vmatprep.subr.mxu0 0.0
    %5897 = vmatpush1.msra.mxu0 %v5599
    %5898 = vmatprep.subr.mxu0 0.0
    %5899 = vmatpush1.msra.mxu0 %v5602
    %5900 = vmatprep.subr.mxu0 0.0
    %5901 = vmatpush1.msra.mxu0 %v5605
    %5902 = vmatprep.subr.mxu0 0.0
    %5903 = vmatpush1.msra.mxu0 %v5608
    %5904 = vmatprep.subr.mxu0 0.0
    %5905 = vmatpush1.msra.mxu0 %v5611
    %5906 = vmatprep.subr.mxu0 0.0
    %5907 = vmatpush1.msra.mxu0 %v5614
    %5908 = vmatprep.subr.mxu0 0.0
    %5909 = vmatpush1.msra.mxu0 %v5617
    %5910 = vmatprep.subr.mxu0 0.0
    %5911 = vmatpush1.msra.mxu0 %v5620
    %5912 = vmatprep.subr.mxu0 0.0
    %5913 = vmatpush1.msra.mxu0 %v5623
    %5914 = vmatprep.subr.mxu0 0.0
    %5915 = vmatpush1.msra.mxu0 %v5626
    %5916 = vmatprep.subr.mxu0 0.0
    %5917 = vmatpush1.msra.mxu0 %v5629
    %5918 = vmatprep.subr.mxu0 0.0
    %5919 = vmatpush1.msra.mxu0 %v5632
    %5920 = vmatprep.subr.mxu0 0.0
    %5921 = vmatpush1.msra.mxu0 %v5635
    %5922 = vmatprep.subr.mxu0 0.0
    %5923 = vmatpush1.msra.mxu0 %v5638
    %5924 = vmatprep.subr.mxu0 0.0
    %5925 = vmatpush1.msra.mxu0 %v5641
    %5926 = vmatprep.subr.mxu0 0.0
    %5927 = vmatpush1.msra.mxu0 %v5644
    %5928 = vmatprep.subr.mxu0 0.0
    %5929 = vmatpush1.msra.mxu0 %v5647
    %5930 = vmatprep.subr.mxu0 0.0
    %5931 = vmatpush1.msra.mxu0 %v5650
    %5932 = vmatprep.subr.mxu0 0.0
    %5933 = vmatpush1.msra.mxu0 %v5653
    %5934 = vmatprep.subr.mxu0 0.0
    %5935 = vmatpush1.msra.mxu0 %v5656
    %5936 = vmatprep.subr.mxu0 0.0
    %5937 = vmatpush1.msra.mxu0 %v5659
    %5938 = vmatprep.subr.mxu0 0.0
    %5939 = vmatpush1.msra.mxu0 %v5662
    %5940 = vmatprep.subr.mxu0 0.0
    %5941 = vmatpush1.msra.mxu0 %v5665
    %5942 = vmatprep.subr.mxu0 0.0
    %5943 = vmatpush1.msra.mxu0 %v5668
    %5944 = vmatprep.subr.mxu0 0.0
    %5945 = vmatpush1.msra.mxu0 %v5671
    %5946 = vmatprep.subr.mxu0 0.0
    %5947 = vmatpush1.msra.mxu0 %v5674
    %5948 = vmatprep.subr.mxu0 0.0
    %5949 = vmatpush1.msra.mxu0 %v5677
    %5950 = vmatprep.subr.mxu0 0.0
    %5951 = vmatpush1.msra.mxu0 %v5680
    %5952 = vmatprep.mubr.f32.mxu0 %v5583
    %5953 = vmatmul.mubr.f32.gmra.mrb[0].mxu0 %v5582
    %v5954 = vpop.f32.mrb[0].mxu0
    %v5955 = vadd.f32 %v5742, %v5954
    %v5956 = vpop.f32.mrb[0].mxu0
    %5957 = vdwg.mxu0
    %5958 = vmatprep.subr.mxu0 0.0
    %5959 = vmatpush1.msra.mxu0 %v5683
    %5960 = vmatprep.subr.mxu0 0.0
    %5961 = vmatpush1.msra.mxu0 %v5686
    %5962 = vmatprep.subr.mxu0 0.0
    %5963 = vmatpush1.msra.mxu0 %v5689
    %5964 = vmatprep.subr.mxu0 0.0
    %5965 = vmatpush1.msra.mxu0 %v5692
    %5966 = vmatprep.subr.mxu0 0.0
    %5967 = vmatpush1.msra.mxu0 %v5695
    %5968 = vmatprep.subr.mxu0 0.0
    %5969 = vmatpush1.msra.mxu0 %v5698
    %5970 = vmatprep.subr.mxu0 0.0
    %5971 = vmatpush1.msra.mxu0 %v5701
    %5972 = vmatprep.subr.mxu0 0.0
    %5973 = vmatpush1.msra.mxu0 %v5704
    %5974 = vmatprep.subr.mxu0 0.0
    %5975 = vmatpush1.msra.mxu0 %v5707
    %5976 = vmatprep.subr.mxu0 0.0
    %5977 = vmatpush1.msra.mxu0 %v5710
    %5978 = vmatprep.subr.mxu0 0.0
    %5979 = vmatpush1.msra.mxu0 %v5713
    %5980 = vmatprep.subr.mxu0 0.0
    %5981 = vmatpush1.msra.mxu0 %v5716
    %5982 = vmatprep.subr.mxu0 0.0
    %5983 = vmatpush1.msra.mxu0 %v5719
    %5984 = vmatprep.subr.mxu0 0.0
    %5985 = vmatpush1.msra.mxu0 %v5722
    %5986 = vmatprep.subr.mxu0 0.0
    %5987 = vmatpush1.msra.mxu0 %v5725
    %5988 = vmatprep.subr.mxu0 0.0
    %5989 = vmatpush1.msra.mxu0 %v5728
    %5990 = vmatprep.subr.mxu0 0.0
    %5991 = vmatpush1.msra.mxu0 0.0
    %5992 = vmatprep.subr.mxu0 0.0
    %5993 = vmatpush1.msra.mxu0 0.0
    %5994 = vmatprep.subr.mxu0 0.0
    %5995 = vmatpush1.msra.mxu0 0.0
    %5996 = vmatprep.subr.mxu0 0.0
    %5997 = vmatpush1.msra.mxu0 0.0
    %5998 = vmatprep.subr.mxu0 0.0
    %5999 = vmatpush1.msra.mxu0 0.0
    %6000 = vmatprep.subr.mxu0 0.0
    %6001 = vmatpush1.msra.mxu0 0.0
    %6002 = vmatprep.subr.mxu0 0.0
    %6003 = vmatpush1.msra.mxu0 0.0
    %6004 = vmatprep.subr.mxu0 0.0
    %6005 = vmatpush1.msra.mxu0 0.0
    %6006 = vmatprep.subr.mxu0 0.0
    %6007 = vmatpush1.msra.mxu0 0.0
    %6008 = vmatprep.subr.mxu0 0.0
    %6009 = vmatpush1.msra.mxu0 0.0
    %6010 = vmatprep.subr.mxu0 0.0
    %6011 = vmatpush1.msra.mxu0 0.0
    %6012 = vmatprep.subr.mxu0 0.0
    %6013 = vmatpush1.msra.mxu0 0.0
    %6014 = vmatprep.subr.mxu0 0.0
    %6015 = vmatpush1.msra.mxu0 0.0
    %6016 = vmatprep.subr.mxu0 0.0
    %6017 = vmatpush1.msra.mxu0 0.0
    %6018 = vmatprep.subr.mxu0 0.0
    %6019 = vmatpush1.msra.mxu0 0.0
    %6020 = vmatprep.subr.mxu0 0.0
    %6021 = vmatpush1.msra.mxu0 0.0
    %6022 = vmatprep.mubr.f32.mxu0 0.0
    %6023 = vmatmul.mubr.f32.gmra.mrb[0].mxu0 %v5584
    %v6024 = vpop.f32.mrb[0].mxu0
    %v6025 = vadd.f32 %v5955, %v6024
    %v6026 = vpop.f32.mrb[0].mxu0
    %6027 = vdwg.mxu0
    %v6028 = vmax.f32 %v5884, 0.0
    %v6029 = vmax.f32 %v5886, 0.0
    %v6030 = vmax.f32 %v6025, 0.0
    %v6031 = vld [vmem:[#allocation6] sm:$0xff]
    %v6032 = vld [vmem:[#allocation6 + $0x8] sm:$0xff]
    %v6033 = vld [vmem:[#allocation6 + $0x10] sm:$0xff]
    %v6034 = vld [vmem:[#allocation6 + $0x18] sm:$0xff]
    %v6035 = vld [vmem:[#allocation6 + $0x20] sm:$0xff]
    %v6036 = vld [vmem:[#allocation6 + $0x28] sm:$0xff]
    %v6037 = vld [vmem:[#allocation6 + $0x30] sm:$0xff]
    %v6038 = vld [vmem:[#allocation6 + $0x38] sm:$0xff]
    %v6039 = vld [vmem:[#allocation6 + $0x40] sm:$0xff]
    %v6040 = vld [vmem:[#allocation6 + $0x48] sm:$0xff]
    %v6041 = vld [vmem:[#allocation6 + $0x50] sm:$0xff]
    %v6042 = vld [vmem:[#allocation6 + $0x58] sm:$0xff]
    %v6043 = vld [vmem:[#allocation6 + $0x60] sm:$0xff]
    %v6044 = vld [vmem:[#allocation6 + $0x68] sm:$0xff]
    %v6045 = vld [vmem:[#allocation6 + $0x70] sm:$0xff]
    %v6046 = vld [vmem:[#allocation6 + $0x78] sm:$0xff]
    %v6047 = vld [vmem:[#allocation6 + $0x80] sm:$0xff]
    %v6048 = vld [vmem:[#allocation6 + $0x88] sm:$0xff]
    %v6049 = vld [vmem:[#allocation6 + $0x90] sm:$0xff]
    %v6050 = vld [vmem:[#allocation6 + $0x98] sm:$0xff]
    %v6051 = vld [vmem:[#allocation6 + $0xa0] sm:$0xff]
    %v6052 = vld [vmem:[#allocation6 + $0xa8] sm:$0xff]
    %v6053 = vld [vmem:[#allocation6 + $0xb0] sm:$0xff]
    %v6054 = vld [vmem:[#allocation6 + $0xb8] sm:$0xff]
    %v6055 = vld [vmem:[#allocation6 + $0xc0] sm:$0xff]
    %v6056 = vld [vmem:[#allocation6 + $0xc8] sm:$0xff]
    %v6057 = vld [vmem:[#allocation6 + $0xd0] sm:$0xff]
    %v6058 = vld [vmem:[#allocation6 + $0xd8] sm:$0xff]
    %v6059 = vld [vmem:[#allocation6 + $0xe0] sm:$0xff]
    %v6060 = vld [vmem:[#allocation6 + $0xe8] sm:$0xff]
    %v6061 = vld [vmem:[#allocation6 + $0xf0] sm:$0xff]
    %v6062 = vld [vmem:[#allocation6 + $0xf8] sm:$0xff]
    %v6063 = vld [vmem:[#allocation6 + $0x100] sm:$0xff]
    %v6064 = vld [vmem:[#allocation6 + $0x108] sm:$0xff]
    %v6065 = vld [vmem:[#allocation6 + $0x110] sm:$0xff]
    %v6066 = vld [vmem:[#allocation6 + $0x118] sm:$0xff]
    %v6067 = vld [vmem:[#allocation6 + $0x120] sm:$0xff]
    %v6068 = vld [vmem:[#allocation6 + $0x128] sm:$0xff]
    %v6069 = vld [vmem:[#allocation6 + $0x130] sm:$0xff]
    %v6070 = vld [vmem:[#allocation6 + $0x138] sm:$0xff]
    %v6071 = vld [vmem:[#allocation6 + $0x140] sm:$0xff]
    %v6072 = vld [vmem:[#allocation6 + $0x148] sm:$0xff]
    %v6073 = vld [vmem:[#allocation6 + $0x150] sm:$0xff]
    %v6074 = vld [vmem:[#allocation6 + $0x158] sm:$0xff]
    %v6075 = vld [vmem:[#allocation6 + $0x160] sm:$0xff]
    %v6076 = vld [vmem:[#allocation6 + $0x168] sm:$0xff]
    %v6077 = vld [vmem:[#allocation6 + $0x170] sm:$0xff]
    %v6078 = vld [vmem:[#allocation6 + $0x178] sm:$0xff]
    %v6079 = vld [vmem:[#allocation6 + $0x180] sm:$0xff]
    %v6080 = vld [vmem:[#allocation6 + $0x188] sm:$0xff]
    %v6081 = vld [vmem:[#allocation6 + $0x190] sm:$0xff]
    %v6082 = vld [vmem:[#allocation6 + $0x198] sm:$0xff]
    %v6083 = vld [vmem:[#allocation6 + $0x1a0] sm:$0xff]
    %v6084 = vld [vmem:[#allocation6 + $0x1a8] sm:$0xff]
    %v6085 = vld [vmem:[#allocation6 + $0x1b0] sm:$0xff]
    %v6086 = vld [vmem:[#allocation6 + $0x1b8] sm:$0xff]
    %v6087 = vld [vmem:[#allocation6 + $0x1c0] sm:$0xff]
    %v6088 = vld [vmem:[#allocation6 + $0x1c8] sm:$0xff]
    %v6089 = vld [vmem:[#allocation6 + $0x1d0] sm:$0xff]
    %v6090 = vld [vmem:[#allocation6 + $0x1d8] sm:$0xff]
    %v6091 = vld [vmem:[#allocation6 + $0x1e0] sm:$0xff]
    %v6092 = vld [vmem:[#allocation6 + $0x1e8] sm:$0xff]
    %v6093 = vld [vmem:[#allocation6 + $0x1f0] sm:$0xff]
    %v6094 = vld [vmem:[#allocation6 + $0x1f8] sm:$0xff]
    %v6095 = vld [vmem:[#allocation6 + $0x200] sm:$0xff]
    %v6096 = vld [vmem:[#allocation6 + $0x208] sm:$0xff]
    %v6097 = vld [vmem:[#allocation6 + $0x210] sm:$0xff]
    %v6098 = vld [vmem:[#allocation6 + $0x218] sm:$0xff]
    %v6099 = vld [vmem:[#allocation6 + $0x220] sm:$0xff]
    %v6100 = vld [vmem:[#allocation6 + $0x228] sm:$0xff]
    %v6101 = vld [vmem:[#allocation6 + $0x230] sm:$0xff]
    %v6102 = vld [vmem:[#allocation6 + $0x238] sm:$0xff]
    %v6103 = vld [vmem:[#allocation6 + $0x240] sm:$0xff]
    %v6104 = vld [vmem:[#allocation6 + $0x248] sm:$0xff]
    %v6105 = vld [vmem:[#allocation6 + $0x250] sm:$0xff]
    %v6106 = vld [vmem:[#allocation6 + $0x258] sm:$0xff]
    %v6107 = vld [vmem:[#allocation6 + $0x260] sm:$0xff]
    %v6108 = vld [vmem:[#allocation6 + $0x268] sm:$0xff]
    %v6109 = vld [vmem:[#allocation6 + $0x270] sm:$0xff]
    %v6110 = vld [vmem:[#allocation6 + $0x278] sm:$0xff]
    %v6111 = vld [vmem:[#allocation6 + $0x280] sm:$0xff]
    %v6112 = vld [vmem:[#allocation6 + $0x288] sm:$0xff]
    %v6113 = vld [vmem:[#allocation6 + $0x290] sm:$0xff]
    %v6114 = vld [vmem:[#allocation6 + $0x298] sm:$0xff]
    %v6115 = vld [vmem:[#allocation6 + $0x2a0] sm:$0xff]
    %v6116 = vld [vmem:[#allocation6 + $0x2a8] sm:$0xff]
    %v6117 = vld [vmem:[#allocation6 + $0x2b0] sm:$0xff]
    %v6118 = vld [vmem:[#allocation6 + $0x2b8] sm:$0xff]
    %v6119 = vld [vmem:[#allocation6 + $0x2c0] sm:$0xff]
    %v6120 = vld [vmem:[#allocation6 + $0x2c8] sm:$0xff]
    %v6121 = vld [vmem:[#allocation6 + $0x2d0] sm:$0xff]
    %v6122 = vld [vmem:[#allocation6 + $0x2d8] sm:$0xff]
    %v6123 = vld [vmem:[#allocation6 + $0x2e0] sm:$0xff]
    %v6124 = vld [vmem:[#allocation6 + $0x2e8] sm:$0xff]
    %v6125 = vld [vmem:[#allocation6 + $0x2f0] sm:$0xff]
    %v6126 = vld [vmem:[#allocation6 + $0x2f8] sm:$0xff]
    %v6127 = vld [vmem:[#allocation6 + $0x300] sm:$0xff]
    %v6128 = vld [vmem:[#allocation6 + $0x308] sm:$0xff]
    %v6129 = vld [vmem:[#allocation6 + $0x310] sm:$0xff]
    %v6130 = vld [vmem:[#allocation6 + $0x318] sm:$0xff]
    %v6131 = vld [vmem:[#allocation6 + $0x320] sm:$0xff]
    %v6132 = vld [vmem:[#allocation6 + $0x328] sm:$0xff]
    %v6133 = vld [vmem:[#allocation6 + $0x330] sm:$0xff]
    %v6134 = vld [vmem:[#allocation6 + $0x338] sm:$0xff]
    %v6135 = vld [vmem:[#allocation6 + $0x340] sm:$0xff]
    %v6136 = vld [vmem:[#allocation6 + $0x348] sm:$0xff]
    %v6137 = vld [vmem:[#allocation6 + $0x350] sm:$0xff]
    %v6138 = vld [vmem:[#allocation6 + $0x358] sm:$0xff]
    %v6139 = vld [vmem:[#allocation6 + $0x360] sm:$0xff]
    %v6140 = vld [vmem:[#allocation6 + $0x368] sm:$0xff]
    %v6141 = vld [vmem:[#allocation6 + $0x370] sm:$0xff]
    %v6142 = vld [vmem:[#allocation6 + $0x378] sm:$0xff]
    %v6143 = vld [vmem:[#allocation6 + $0x380] sm:$0xff]
    %v6144 = vld [vmem:[#allocation6 + $0x388] sm:$0xff]
    %v6145 = vld [vmem:[#allocation6 + $0x390] sm:$0xff]
    %v6146 = vld [vmem:[#allocation6 + $0x398] sm:$0xff]
    %v6147 = vld [vmem:[#allocation6 + $0x3a0] sm:$0xff]
    %v6148 = vld [vmem:[#allocation6 + $0x3a8] sm:$0xff]
    %v6149 = vld [vmem:[#allocation6 + $0x3b0] sm:$0xff]
    %v6150 = vld [vmem:[#allocation6 + $0x3b8] sm:$0xff]
    %v6151 = vld [vmem:[#allocation6 + $0x3c0] sm:$0xff]
    %v6152 = vld [vmem:[#allocation6 + $0x3c8] sm:$0xff]
    %v6153 = vld [vmem:[#allocation6 + $0x3d0] sm:$0xff]
    %v6154 = vld [vmem:[#allocation6 + $0x3d8] sm:$0xff]
    %v6155 = vld [vmem:[#allocation6 + $0x3e0] sm:$0xff]
    %v6156 = vld [vmem:[#allocation6 + $0x3e8] sm:$0xff]
    %v6157 = vld [vmem:[#allocation6 + $0x3f0] sm:$0xff]
    %v6158 = vld [vmem:[#allocation6 + $0x3f8] sm:$0xff]
    %v6159 = vld [vmem:[#allocation6 + $0x400] sm:$0xff]
    %v6160 = vld [vmem:[#allocation6 + $0x408] sm:$0xff]
    %v6161 = vld [vmem:[#allocation6 + $0x410] sm:$0xff]
    %v6162 = vld [vmem:[#allocation6 + $0x418] sm:$0xff]
    %v6163 = vld [vmem:[#allocation6 + $0x420] sm:$0xff]
    %v6164 = vld [vmem:[#allocation6 + $0x428] sm:$0xff]
    %v6165 = vld [vmem:[#allocation6 + $0x430] sm:$0xff]
    %v6166 = vld [vmem:[#allocation6 + $0x438] sm:$0xff]
    %v6167 = vld [vmem:[#allocation6 + $0x440] sm:$0xff]
    %v6168 = vld [vmem:[#allocation6 + $0x448] sm:$0xff]
    %v6169 = vld [vmem:[#allocation6 + $0x450] sm:$0xff]
    %v6170 = vld [vmem:[#allocation6 + $0x458] sm:$0xff]
    %v6171 = vld [vmem:[#allocation6 + $0x460] sm:$0xff]
    %v6172 = vld [vmem:[#allocation6 + $0x468] sm:$0xff]
    %v6173 = vld [vmem:[#allocation6 + $0x470] sm:$0xff]
    %v6174 = vld [vmem:[#allocation6 + $0x478] sm:$0xff]
    %v6175 = vld [vmem:[%s9] sm:$0x7]
    %v6177 = vlaneseq
    %v6178 = vshrl.u32 %v6177, 7
    %v6179 = vsub.s32 0, %v6178
    %v6180 = vrot.slane %v6175, %v6179
    %v6181 = vlaneseq
    %v6182 = vshrl.u32 %v6181, 7
    %v6183 = vsub.s32 1, %v6182
    %v6184 = vrot.slane %v6175, %v6183
    %v6185 = vlaneseq
    %v6186 = vshrl.u32 %v6185, 7
    %v6187 = vsub.s32 2, %v6186
    %v6188 = vrot.slane %v6175, %v6187
    %6192 = vmatprep.subr.mxu0 %v6032
    %6193 = vmatpush1.msra.mxu0 %v6031
    %6194 = vmatprep.subr.mxu0 %v6035
    %6195 = vmatpush1.msra.mxu0 %v6034
    %6196 = vmatprep.subr.mxu0 %v6038
    %6197 = vmatpush1.msra.mxu0 %v6037
    %6198 = vmatprep.subr.mxu0 %v6041
    %6199 = vmatpush1.msra.mxu0 %v6040
    %6200 = vmatprep.subr.mxu0 %v6044
    %6201 = vmatpush1.msra.mxu0 %v6043
    %6202 = vmatprep.subr.mxu0 %v6047
    %6203 = vmatpush1.msra.mxu0 %v6046
    %6204 = vmatprep.subr.mxu0 %v6050
    %6205 = vmatpush1.msra.mxu0 %v6049
    %6206 = vmatprep.subr.mxu0 %v6053
    %6207 = vmatpush1.msra.mxu0 %v6052
    %6208 = vmatprep.subr.mxu0 %v6056
    %6209 = vmatpush1.msra.mxu0 %v6055
    %6210 = vmatprep.subr.mxu0 %v6059
    %6211 = vmatpush1.msra.mxu0 %v6058
    %6212 = vmatprep.subr.mxu0 %v6062
    %6213 = vmatpush1.msra.mxu0 %v6061
    %6214 = vmatprep.subr.mxu0 %v6065
    %6215 = vmatpush1.msra.mxu0 %v6064
    %6216 = vmatprep.subr.mxu0 %v6068
    %6217 = vmatpush1.msra.mxu0 %v6067
    %6218 = vmatprep.subr.mxu0 %v6071
    %6219 = vmatpush1.msra.mxu0 %v6070
    %6220 = vmatprep.subr.mxu0 %v6074
    %6221 = vmatpush1.msra.mxu0 %v6073
    %6222 = vmatprep.subr.mxu0 %v6077
    %6223 = vmatpush1.msra.mxu0 %v6076
    %6224 = vmatprep.subr.mxu0 %v6080
    %6225 = vmatpush1.msra.mxu0 %v6079
    %6226 = vmatprep.subr.mxu0 %v6083
    %6227 = vmatpush1.msra.mxu0 %v6082
    %6228 = vmatprep.subr.mxu0 %v6086
    %6229 = vmatpush1.msra.mxu0 %v6085
    %6230 = vmatprep.subr.mxu0 %v6089
    %6231 = vmatpush1.msra.mxu0 %v6088
    %6232 = vmatprep.subr.mxu0 %v6092
    %6233 = vmatpush1.msra.mxu0 %v6091
    %6234 = vmatprep.subr.mxu0 %v6095
    %6235 = vmatpush1.msra.mxu0 %v6094
    %6236 = vmatprep.subr.mxu0 %v6098
    %6237 = vmatpush1.msra.mxu0 %v6097
    %6238 = vmatprep.subr.mxu0 %v6101
    %6239 = vmatpush1.msra.mxu0 %v6100
    %6240 = vmatprep.subr.mxu0 %v6104
    %6241 = vmatpush1.msra.mxu0 %v6103
    %6242 = vmatprep.subr.mxu0 %v6107
    %6243 = vmatpush1.msra.mxu0 %v6106
    %6244 = vmatprep.subr.mxu0 %v6110
    %6245 = vmatpush1.msra.mxu0 %v6109
    %6246 = vmatprep.subr.mxu0 %v6113
    %6247 = vmatpush1.msra.mxu0 %v6112
    %6248 = vmatprep.subr.mxu0 %v6116
    %6249 = vmatpush1.msra.mxu0 %v6115
    %6250 = vmatprep.subr.mxu0 %v6119
    %6251 = vmatpush1.msra.mxu0 %v6118
    %6252 = vmatprep.subr.mxu0 %v6122
    %6253 = vmatpush1.msra.mxu0 %v6121
    %6254 = vmatprep.subr.mxu0 %v6125
    %6255 = vmatpush1.msra.mxu0 %v6124
    %6256 = vmatprep.mubr.f32.mxu0 %v6029
    %6257 = vmatmul.mubr.f32.gmra.mrb[0].mxu0 %v6028
    %v6258 = vpop.f32.mrb[0].mxu0
    %v6259 = vadd.f32 %v6180, %v6258
    %v6260 = vpop.f32.mrb[0].mxu0
    %v6261 = vadd.f32 %v6184, %v6260
    %6262 = vdwg.mxu0
    %6263 = vmatprep.subr.mxu0 %v6128
    %6264 = vmatpush1.msra.mxu0 %v6127
    %6265 = vmatprep.subr.mxu0 %v6131
    %6266 = vmatpush1.msra.mxu0 %v6130
    %6267 = vmatprep.subr.mxu0 %v6134
    %6268 = vmatpush1.msra.mxu0 %v6133
    %6269 = vmatprep.subr.mxu0 %v6137
    %6270 = vmatpush1.msra.mxu0 %v6136
    %6271 = vmatprep.subr.mxu0 %v6140
    %6272 = vmatpush1.msra.mxu0 %v6139
    %6273 = vmatprep.subr.mxu0 %v6143
    %6274 = vmatpush1.msra.mxu0 %v6142
    %6275 = vmatprep.subr.mxu0 %v6146
    %6276 = vmatpush1.msra.mxu0 %v6145
    %6277 = vmatprep.subr.mxu0 %v6149
    %6278 = vmatpush1.msra.mxu0 %v6148
    %6279 = vmatprep.subr.mxu0 %v6152
    %6280 = vmatpush1.msra.mxu0 %v6151
    %6281 = vmatprep.subr.mxu0 %v6155
    %6282 = vmatpush1.msra.mxu0 %v6154
    %6283 = vmatprep.subr.mxu0 %v6158
    %6284 = vmatpush1.msra.mxu0 %v6157
    %6285 = vmatprep.subr.mxu0 %v6161
    %6286 = vmatpush1.msra.mxu0 %v6160
    %6287 = vmatprep.subr.mxu0 %v6164
    %6288 = vmatpush1.msra.mxu0 %v6163
    %6289 = vmatprep.subr.mxu0 %v6167
    %6290 = vmatpush1.msra.mxu0 %v6166
    %6291 = vmatprep.subr.mxu0 %v6170
    %6292 = vmatpush1.msra.mxu0 %v6169
    %6293 = vmatprep.subr.mxu0 %v6173
    %6294 = vmatpush1.msra.mxu0 %v6172
    %6295 = vmatprep.subr.mxu0 0.0
    %6296 = vmatpush1.msra.mxu0 0.0
    %6297 = vmatprep.subr.mxu0 0.0
    %6298 = vmatpush1.msra.mxu0 0.0
    %6299 = vmatprep.subr.mxu0 0.0
    %6300 = vmatpush1.msra.mxu0 0.0
    %6301 = vmatprep.subr.mxu0 0.0
    %6302 = vmatpush1.msra.mxu0 0.0
    %6303 = vmatprep.subr.mxu0 0.0
    %6304 = vmatpush1.msra.mxu0 0.0
    %6305 = vmatprep.subr.mxu0 0.0
    %6306 = vmatpush1.msra.mxu0 0.0
    %6307 = vmatprep.subr.mxu0 0.0
    %6308 = vmatpush1.msra.mxu0 0.0
    %6309 = vmatprep.subr.mxu0 0.0
    %6310 = vmatpush1.msra.mxu0 0.0
    %6311 = vmatprep.subr.mxu0 0.0
    %6312 = vmatpush1.msra.mxu0 0.0
    %6313 = vmatprep.subr.mxu0 0.0
    %6314 = vmatpush1.msra.mxu0 0.0
    %6315 = vmatprep.subr.mxu0 0.0
    %6316 = vmatpush1.msra.mxu0 0.0
    %6317 = vmatprep.subr.mxu0 0.0
    %6318 = vmatpush1.msra.mxu0 0.0
    %6319 = vmatprep.subr.mxu0 0.0
    %6320 = vmatpush1.msra.mxu0 0.0
    %6321 = vmatprep.subr.mxu0 0.0
    %6322 = vmatpush1.msra.mxu0 0.0
    %6323 = vmatprep.subr.mxu0 0.0
    %6324 = vmatpush1.msra.mxu0 0.0
    %6325 = vmatprep.subr.mxu0 0.0
    %6326 = vmatpush1.msra.mxu0 0.0
    %6327 = vmatprep.mubr.f32.mxu0 0.0
    %6328 = vmatmul.mubr.f32.gmra.mrb[0].mxu0 %v6030
    %v6329 = vpop.f32.mrb[0].mxu0
    %v6330 = vadd.f32 %v6259, %v6329
    %v6331 = vpop.f32.mrb[0].mxu0
    %v6332 = vadd.f32 %v6261, %v6331
    %6333 = vdwg.mxu0
    %6334 = vmatprep.subr.mxu0 0.0
    %6335 = vmatpush1.msra.mxu0 %v6033
    %6336 = vmatprep.subr.mxu0 0.0
    %6337 = vmatpush1.msra.mxu0 %v6036
    %6338 = vmatprep.subr.mxu0 0.0
    %6339 = vmatpush1.msra.mxu0 %v6039
    %6340 = vmatprep.subr.mxu0 0.0
    %6341 = vmatpush1.msra.mxu0 %v6042
    %6342 = vmatprep.subr.mxu0 0.0
    %6343 = vmatpush1.msra.mxu0 %v6045
    %6344 = vmatprep.subr.mxu0 0.0
    %6345 = vmatpush1.msra.mxu0 %v6048
    %6346 = vmatprep.subr.mxu0 0.0
    %6347 = vmatpush1.msra.mxu0 %v6051
    %6348 = vmatprep.subr.mxu0 0.0
    %6349 = vmatpush1.msra.mxu0 %v6054
    %6350 = vmatprep.subr.mxu0 0.0
    %6351 = vmatpush1.msra.mxu0 %v6057
    %6352 = vmatprep.subr.mxu0 0.0
    %6353 = vmatpush1.msra.mxu0 %v6060
    %6354 = vmatprep.subr.mxu0 0.0
    %6355 = vmatpush1.msra.mxu0 %v6063
    %6356 = vmatprep.subr.mxu0 0.0
    %6357 = vmatpush1.msra.mxu0 %v6066
    %6358 = vmatprep.subr.mxu0 0.0
    %6359 = vmatpush1.msra.mxu0 %v6069
    %6360 = vmatprep.subr.mxu0 0.0
    %6361 = vmatpush1.msra.mxu0 %v6072
    %6362 = vmatprep.subr.mxu0 0.0
    %6363 = vmatpush1.msra.mxu0 %v6075
    %6364 = vmatprep.subr.mxu0 0.0
    %6365 = vmatpush1.msra.mxu0 %v6078
    %6366 = vmatprep.subr.mxu0 0.0
    %6367 = vmatpush1.msra.mxu0 %v6081
    %6368 = vmatprep.subr.mxu0 0.0
    %6369 = vmatpush1.msra.mxu0 %v6084
    %6370 = vmatprep.subr.mxu0 0.0
    %6371 = vmatpush1.msra.mxu0 %v6087
    %6372 = vmatprep.subr.mxu0 0.0
    %6373 = vmatpush1.msra.mxu0 %v6090
    %6374 = vmatprep.subr.mxu0 0.0
    %6375 = vmatpush1.msra.mxu0 %v6093
    %6376 = vmatprep.subr.mxu0 0.0
    %6377 = vmatpush1.msra.mxu0 %v6096
    %6378 = vmatprep.subr.mxu0 0.0
    %6379 = vmatpush1.msra.mxu0 %v6099
    %6380 = vmatprep.subr.mxu0 0.0
    %6381 = vmatpush1.msra.mxu0 %v6102
    %6382 = vmatprep.subr.mxu0 0.0
    %6383 = vmatpush1.msra.mxu0 %v6105
    %6384 = vmatprep.subr.mxu0 0.0
    %6385 = vmatpush1.msra.mxu0 %v6108
    %6386 = vmatprep.subr.mxu0 0.0
    %6387 = vmatpush1.msra.mxu0 %v6111
    %6388 = vmatprep.subr.mxu0 0.0
    %6389 = vmatpush1.msra.mxu0 %v6114
    %6390 = vmatprep.subr.mxu0 0.0
    %6391 = vmatpush1.msra.mxu0 %v6117
    %6392 = vmatprep.subr.mxu0 0.0
    %6393 = vmatpush1.msra.mxu0 %v6120
    %6394 = vmatprep.subr.mxu0 0.0
    %6395 = vmatpush1.msra.mxu0 %v6123
    %6396 = vmatprep.subr.mxu0 0.0
    %6397 = vmatpush1.msra.mxu0 %v6126
    %6398 = vmatprep.mubr.f32.mxu0 %v6029
    %6399 = vmatmul.mubr.f32.gmra.mrb[0].mxu0 %v6028
    %v6400 = vpop.f32.mrb[0].mxu0
    %v6401 = vadd.f32 %v6188, %v6400
    %v6402 = vpop.f32.mrb[0].mxu0
    %6403 = vdwg.mxu0
    %6404 = vmatprep.subr.mxu0 0.0
    %6405 = vmatpush1.msra.mxu0 %v6129
    %6406 = vmatprep.subr.mxu0 0.0
    %6407 = vmatpush1.msra.mxu0 %v6132
    %6408 = vmatprep.subr.mxu0 0.0
    %6409 = vmatpush1.msra.mxu0 %v6135
    %6410 = vmatprep.subr.mxu0 0.0
    %6411 = vmatpush1.msra.mxu0 %v6138
    %6412 = vmatprep.subr.mxu0 0.0
    %6413 = vmatpush1.msra.mxu0 %v6141
    %6414 = vmatprep.subr.mxu0 0.0
    %6415 = vmatpush1.msra.mxu0 %v6144
    %6416 = vmatprep.subr.mxu0 0.0
    %6417 = vmatpush1.msra.mxu0 %v6147
    %6418 = vmatprep.subr.mxu0 0.0
    %6419 = vmatpush1.msra.mxu0 %v6150
    %6420 = vmatprep.subr.mxu0 0.0
    %6421 = vmatpush1.msra.mxu0 %v6153
    %6422 = vmatprep.subr.mxu0 0.0
    %6423 = vmatpush1.msra.mxu0 %v6156
    %6424 = vmatprep.subr.mxu0 0.0
    %6425 = vmatpush1.msra.mxu0 %v6159
    %6426 = vmatprep.subr.mxu0 0.0
    %6427 = vmatpush1.msra.mxu0 %v6162
    %6428 = vmatprep.subr.mxu0 0.0
    %6429 = vmatpush1.msra.mxu0 %v6165
    %6430 = vmatprep.subr.mxu0 0.0
    %6431 = vmatpush1.msra.mxu0 %v6168
    %6432 = vmatprep.subr.mxu0 0.0
    %6433 = vmatpush1.msra.mxu0 %v6171
    %6434 = vmatprep.subr.mxu0 0.0
    %6435 = vmatpush1.msra.mxu0 %v6174
    %6436 = vmatprep.subr.mxu0 0.0
    %6437 = vmatpush1.msra.mxu0 0.0
    %6438 = vmatprep.subr.mxu0 0.0
    %6439 = vmatpush1.msra.mxu0 0.0
    %6440 = vmatprep.subr.mxu0 0.0
    %6441 = vmatpush1.msra.mxu0 0.0
    %6442 = vmatprep.subr.mxu0 0.0
    %6443 = vmatpush1.msra.mxu0 0.0
    %6444 = vmatprep.subr.mxu0 0.0
    %6445 = vmatpush1.msra.mxu0 0.0
    %6446 = vmatprep.subr.mxu0 0.0
    %6447 = vmatpush1.msra.mxu0 0.0
    %6448 = vmatprep.subr.mxu0 0.0
    %6449 = vmatpush1.msra.mxu0 0.0
    %6450 = vmatprep.subr.mxu0 0.0
    %6451 = vmatpush1.msra.mxu0 0.0
    %6452 = vmatprep.subr.mxu0 0.0
    %6453 = vmatpush1.msra.mxu0 0.0
    %6454 = vmatprep.subr.mxu0 0.0
    %6455 = vmatpush1.msra.mxu0 0.0
    %6456 = vmatprep.subr.mxu0 0.0
    %6457 = vmatpush1.msra.mxu0 0.0
    %6458 = vmatprep.subr.mxu0 0.0
    %6459 = vmatpush1.msra.mxu0 0.0
    %6460 = vmatprep.subr.mxu0 0.0
    %6461 = vmatpush1.msra.mxu0 0.0
    %6462 = vmatprep.subr.mxu0 0.0
    %6463 = vmatpush1.msra.mxu0 0.0
    %6464 = vmatprep.subr.mxu0 0.0
    %6465 = vmatpush1.msra.mxu0 0.0
    %6466 = vmatprep.subr.mxu0 0.0
    %6467 = vmatpush1.msra.mxu0 0.0
    %6468 = vmatprep.mubr.f32.mxu0 0.0
    %6469 = vmatmul.mubr.f32.gmra.mrb[0].mxu0 %v6030
    %v6470 = vpop.f32.mrb[0].mxu0
    %v6471 = vadd.f32 %v6401, %v6470
    %v6472 = vpop.f32.mrb[0].mxu0
    %6473 = vdwg.mxu0
    %6474 = vst [vmem:[#allocation8] sm:$0xff] %v6330
    %6475 = vst [vmem:[#allocation8 + $0x8] sm:$0xff] %v6332
    %6476 = vst [vmem:[#allocation8 + $0x10] sm:$0xff] %v6471
    // Predicated region
    $region50: #{net_short_circuit.1} parent=1 // pred_check
      _
    $region51: #{net_short_circuit.1} parent=1 // pred_check_branch
      %6478 = sbr.rel (0) target = $region53
    $region52: #{net_short_circuit.1} parent=1 // pred_region
      %s6480 = ssub.s32 384, 384
      %6481 = vsyncadd [#allocation5], %s6480
      %s6483 = sshll.u32 [#allocation8], 4
      %s6484 = int_to_ptr.vmem [resolvable:$true] %s6483
      %6486 = dma.vmem_to_hbm [thread:$0]  %s6484, 384, %s10, [#allocation5]
    $region53: #{net_short_circuit.1} parent=1 // pred_fallthru
      _
    // Predicated region
    $region54: #{net_short_circuit.1} parent=1 // pred_check
      _
    $region55: #{net_short_circuit.1} parent=1 // pred_check_branch
      %6488 = sbr.rel (0) target = $region57
    $region56: #{net_short_circuit.1} parent=1 // pred_region
      %6489 = dma.done [#allocation5], 384
    $region57: #{net_short_circuit.1} parent=1 // pred_fallthru
      _
    %6490 = vsyncpa [#allocation4], 1
    %6491 = vsyncpa [#allocation7], 1
    %6492 = vsyncpa [#allocation5], 1

</llo_original>
